<compile_context>
chip_gen: v6e
topology: v6e:2x2x1
jax: 0.10.0
libtpu: 0.0.40
codegen_flags: <defaults>
</compile_context>

<pallas_src>
import functools

import jax
import jax.numpy as jnp
import numpy as np
from jax.experimental import pallas as pl
from jax.experimental.pallas import tpu as pltpu

LANES = 128          # lane-dense padding for the classifier output
NUM_CLASSES = 10
CIN2 = 16            # conv2 input channels (= conv1 output channels)
WQ2 = 9              # conv2 phase flat pitch  (7 pooled cols + 2 slack)
HQ2 = 10             # conv2 phase rows (1 halo + 7 interior + 1 halo + 1 slack)
NPOS2 = 7 * WQ2      # 63 conv2 output rows in the flat-slack layout


# ----------------------------------------------------------- tap grouping ----

def _conv2_tap_groups(r, c):
    """Tap grouping for pool-window phase (r, c) of the 5x5 conv2.

    Returns [(source_phase, [(dy, dx, flat_offset), ...]), ...] where
    source_phase = 2*((r+dy)%2) + ((c+dx)%2) and flat_offset is the offset
    into the flat (pitch WQ2) phase block.  This order defines the K layout
    of the grouped conv2 weights (prepare_params) AND the in-kernel sublane
    concatenation - both sides call this same function, so they cannot drift.
    """
    groups = []
    for rho in (0, 1):
        for gam in (0, 1):
            taps = []
            for dy in range(5):
                if (r + dy) % 2 != rho:
                    continue
                for dx in range(5):
                    if (c + dx) % 2 != gam:
                        continue
                    off = ((r + dy) // 2) * WQ2 + ((c + dx) // 2)
                    taps.append((dy, dx, off))
            groups.append((2 * rho + gam, taps))
    return groups


# ---------------------------------------------------------------- kernels ----

def _fused_cnn_kernel(p_ref, w1_ref, b1_ref, w2g_ref, b2_ref, o_ref, ph2_ref,
                      *, bt):
    """conv1(5x5 SAME)+ReLU+pool2 -> conv2(5x5 SAME)+ReLU+pool2, one batch tile.

    p_ref  : (1, 4, 32, bt*196) conv1 patches: taps (25, zero-padded to 32) on
             sublanes, M = (image, pooled-output parity, 7, 7) on lanes; dim 1
             is the 2x2 pool-window phase (r, c).
    w1_ref : (16, 32)    conv1 weights (cout, tap), taps >= 25 are zero.
    b1_ref : (16, 1)
    w2g_ref: (4, 32, 400) conv2 weights grouped per pool phase (see
             _conv2_tap_groups); lanes = concat over source phases of the
             (cout=32, cin=16) tap blocks.
    b2_ref : (32, 1)
    o_ref  : (bt, 32, 63) pooled conv2 output, channels-first, positions in the
             flat-slack layout (pitch 9; columns 7, 8 of each row are garbage,
             zeroed out of the FC weight).
    ph2_ref: (bt, 4, 16, 90) VMEM scratch: conv2 input in zero-padded 4-phase,
             channels-on-sublanes layout.
    """
    # ---------------- conv1: one MXU patch-matmul per pool phase -----------
    pooled1 = None
    for rc in range(4):
        acc = jnp.dot(w1_ref[...], p_ref[0, rc],
                      preferred_element_type=jnp.float32)       # (16, bt*196)
        pooled1 = acc if pooled1 is None else jnp.maximum(pooled1, acc)
    act1 = jnp.maximum(pooled1 + b1_ref[...], 0.0)               # bias + ReLU

    # ------- scatter pooled conv1 into conv2's 4-phase VMEM layout ---------
    ph2_ref[...] = jnp.zeros_like(ph2_ref)                       # halo/slack=0
    for b in range(bt):
        for ph in range(4):
            base = (b * 4 + ph) * 49
            for i in range(7):
                dst = (i + 1) * WQ2 + 1
                src0 = base + 7 * i
                ph2_ref[b, ph, :, dst:dst + 7] = act1[:, src0:src0 + 7]

    # ------- conv2: 4 grouped-K dots per pool phase, then 2x2 max-pool -----
    # hoist the per-(pool-phase, source-phase) weight groups (loop invariant)
    wgroups, tgroups = [], []
    for r in (0, 1):
        for c in (0, 1):
            groups = _conv2_tap_groups(r, c)
            k0, wlist = 0, []
            for _, taps in groups:
                kg = CIN2 * len(taps)
                wlist.append(w2g_ref[2 * r + c, :, k0:k0 + kg])  # (32, kg)
                k0 += kg
            wgroups.append(wlist)
            tgroups.append(groups)

    for b in range(bt):
        slabs = {}   # (source_phase, offset) -> (16, 63) slice, de-duplicated
        pooled2 = None
        for rc in range(4):
            acc = None
            for gi, (src, taps) in enumerate(tgroups[rc]):
                pieces = []
                for (_, _, off) in taps:
                    key = (src, off)
                    if key not in slabs:
                        slabs[key] = ph2_ref[b, src, :, off:off + NPOS2]
                    pieces.append(slabs[key])
                xg = jnp.concatenate(pieces, axis=0)             # (kg, 63)
                part = jnp.dot(wgroups[rc][gi], xg,
                               preferred_element_type=jnp.float32)  # (32, 63)
                acc = part if acc is None else acc + part
            pooled2 = acc if pooled2 is None else jnp.maximum(pooled2, acc)
        o_ref[b] = jnp.maximum(pooled2 + b2_ref[...], 0.0)       # bias + ReLU


def _linear_logsoftmax_kernel(x_ref, w_ref, b_ref, o_ref):
    logits = jnp.dot(x_ref[...], w_ref[...],
                     preferred_element_type=jnp.float32) + b_ref[...]
    # mask the zero-padded lanes (>= NUM_CLASSES) out of the reduction
    col = jax.lax.broadcasted_iota(jnp.int32, logits.shape, 1)
    logits = jnp.where(col < NUM_CLASSES, logits, -1e30)
    m = jnp.max(logits, axis=-1, keepdims=True)
    s = logits - m
    lse = jnp.log(jnp.sum(jnp.exp(s), axis=-1, keepdims=True))
    o_ref[...] = (s - lse).astype(o_ref.dtype)


# --------------------------------------------------------- patch building ----

def _build_conv1_patches(x2d, bt):
    """conv1 patches in the fused kernel's transposed layout.

    Output (nb, 4, 32, bt*196) f32 with
      [n, 2r+c, 5dy+dx, ((b*4 + 2rho+gam)*7 + i)*7 + j]
         = xpad[n*bt + b, 4i + 2rho + r + dy, 4j + 2gam + c + dx]
    so the kernel folds the whole batch tile into one MXU dot per pool phase
    and can scatter the result straight into conv2's phase layout.
    """
    Bp = x2d.shape[0]
    nb = Bp // bt
    xpad = jnp.pad(x2d, ((0, 0), (2, 2), (2, 2)))                # (Bp, 32, 32)
    rc_parts = []
    for r in (0, 1):
        for c in (0, 1):
            tap_parts = []
            for dy in range(5):
                for dx in range(5):
                    ph_parts = []
                    for rho in (0, 1):
                        for gam in (0, 1):
                            u = 2 * rho + r + dy
                            v = 2 * gam + c + dx
                            ph_parts.append(xpad[:, u:u + 25:4, v:v + 25:4])
                    tap_parts.append(jnp.stack(ph_parts, axis=1))   # (Bp,4,7,7)
            rc_parts.append(jnp.stack(tap_parts, axis=1))           # (Bp,25,4,7,7)
    p = jnp.stack(rc_parts, axis=1)                                  # (Bp,4,25,4,7,7)
    p = jnp.pad(p, ((0, 0), (0, 0), (0, 7), (0, 0), (0, 0), (0, 0)))  # taps->32
    p = p.reshape(nb, bt, 4, 32, 4, 7, 7)
    p = jnp.transpose(p, (0, 2, 3, 1, 4, 5, 6))                      # (nb,4,32,bt,4,7,7)
    return p.reshape(nb, 4, 32, bt * 196)


# ----------------------------------------------------------------- params ----

def init_params():
    key = jax.random.PRNGKey(42)
    k1, k2, k3, k4, k5, k6 = jax.random.split(key, 6)
    return {
        "w1": jax.random.normal(k1, (16, 1, 5, 5), jnp.float32) * 0.1,
        "b1": jax.random.normal(k2, (16,), jnp.float32) * 0.01,
        "w2": jax.random.normal(k3, (32, 16, 5, 5), jnp.float32) * 0.05,
        "b2": jax.random.normal(k4, (32,), jnp.float32) * 0.01,
        "w_out": jax.random.normal(k5, (10, 32 * 7 * 7), jnp.float32) * 0.02,
        "b_out": jax.random.normal(k6, (10,), jnp.float32) * 0.01,
    }


def prepare_params(params):
    """One-time weight repacking into the kernels' layouts."""
    w1 = params["w1"].astype(jnp.float32)                       # (16, 1, 5, 5)
    w2 = params["w2"].astype(jnp.float32)                       # (32, 16, 5, 5)

    w1x = jnp.pad(w1.reshape(16, 25), ((0, 0), (0, 7)))         # taps 25 -> 32
    b1p = params["b1"].reshape(16, 1)

    w2g = []
    for r in (0, 1):
        for c in (0, 1):
            blocks = []
            for _, taps in _conv2_tap_groups(r, c):
                for (dy, dx, _) in taps:
                    blocks.append(w2[:, :, dy, dx])             # (32, 16)
            w2g.append(jnp.concatenate(blocks, axis=1))         # (32, 400)
    w2g = jnp.stack(w2g, axis=0)                                # (4, 32, 400)
    b2p = params["b2"].reshape(32, 1)

    # FC weight: torch flattens NCHW (ch, i, j); our features are
    # (ch, i*9 + j) with slack columns j in {7, 8} -> zero those weight rows.
    wo = params["w_out"].reshape(NUM_CLASSES, 32, 7, 7)
    wo = jnp.transpose(wo, (1, 2, 3, 0))                        # (ch, i, j, o)
    wo = jnp.pad(wo, ((0, 0), (0, 0), (0, WQ2 - 7), (0, 0)))    # j: 7 -> 9
    wo = wo.reshape(32 * NPOS2, NUM_CLASSES)
    w_out = jnp.pad(wo, ((0, 0), (0, LANES - NUM_CLASSES)))     # lane-dense
    b_out = jnp.pad(params["b_out"], (0, LANES - NUM_CLASSES)).reshape(1, LANES)
    return {"w1": w1x, "b1": b1p, "w2g": w2g, "b2": b2p,
            "w_out": w_out, "b_out": b_out}


# ---------------------------------------------------------------- forward ----

def forward(x_nchw, prep):
    if x_nchw.ndim != 4:
        raise ValueError("Expected input to a 4D tensor")
    B, C, H, W = x_nchw.shape
    if C != 1 or H != 28 or W != 28:
        raise ValueError("MyAwesomeModel expects (B, 1, 28, 28) inputs")

    # batch tile: <= 8 images per grid step, and >= 2 grid steps whenever
    # B >= 2 so both v7x TensorCores get work along the "parallel" axis.
    bt = max(1, min(8, pl.cdiv(B, 2)))
    Bp = pl.cdiv(B, bt) * bt
    nb = Bp // bt
    x2d = x_nchw[:, 0]
    if Bp != B:
        x2d = jnp.pad(x2d, ((0, Bp - B), (0, 0), (0, 0)))

    patches = _build_conv1_patches(x2d, bt)                     # (nb,4,32,bt*196)

    conv_out = pl.pallas_call(
        functools.partial(_fused_cnn_kernel, bt=bt),
        grid=(nb,),
        out_shape=jax.ShapeDtypeStruct((Bp, 32, NPOS2), jnp.float32),
        in_specs=[
            pl.BlockSpec((1, 4, 32, bt * 196), lambda n: (n, 0, 0, 0)),
            pl.BlockSpec((16, 32), lambda n: (0, 0)),            # resident
            pl.BlockSpec((16, 1), lambda n: (0, 0)),             # resident
            pl.BlockSpec((4, 32, 400), lambda n: (0, 0, 0)),     # resident
            pl.BlockSpec((32, 1), lambda n: (0, 0)),             # resident
        ],
        out_specs=pl.BlockSpec((bt, 32, NPOS2), lambda n: (n, 0, 0)),
        scratch_shapes=[pltpu.VMEM((bt, 4, CIN2, HQ2 * WQ2), jnp.float32)],
        compiler_params=pltpu.CompilerParams(
            dimension_semantics=("parallel",),
            vmem_limit_bytes=32 * 1024 * 1024,
        ),
    )(patches, prep["w1"], prep["b1"], prep["w2g"], prep["b2"])

    # channels-first flat features match torch's x.view(B, -1) NCHW order
    # (folded into the prepacked FC weight) -> zero-copy reshape.
    feats = conv_out.reshape(Bp, 32 * NPOS2)
    Bq = pl.cdiv(Bp, 8) * 8                                      # sublane-align
    if Bq != Bp:
        feats = jnp.pad(feats, ((0, Bq - Bp), (0, 0)))
    btl = min(Bq, 128)
    out = pl.pallas_call(
        _linear_logsoftmax_kernel,
        grid=(Bq // btl,),
        out_shape=jax.ShapeDtypeStruct((Bq, LANES), jnp.float32),
        in_specs=[
            pl.BlockSpec((btl, 32 * NPOS2), lambda i: (i, 0)),
            pl.BlockSpec((32 * NPOS2, LANES), lambda i: (0, 0)),  # resident
            pl.BlockSpec((1, LANES), lambda i: (0, 0)),           # resident
        ],
        out_specs=pl.BlockSpec((btl, LANES), lambda i: (i, 0)),
        compiler_params=pltpu.CompilerParams(
            dimension_semantics=("parallel",),
            vmem_limit_bytes=32 * 1024 * 1024,
        ),
    )(feats, prep["w_out"], prep["b_out"])
    return out[:B, :NUM_CLASSES]


# --------------------------------------------------------------- reference ----

def reference_forward(x, params):
    """Pure-JAX/XLA implementation of the exact PyTorch forward pass."""
    def conv_relu_pool(y, w, b):
        dn = jax.lax.conv_dimension_numbers(y.shape, w.shape,
                                            ("NCHW", "OIHW", "NCHW"))
        y = jax.lax.conv_general_dilated(y, w, (1, 1), ((2, 2), (2, 2)),
                                         dimension_numbers=dn)
        y = jax.nn.relu(y + b[None, :, None, None])
        return jax.lax.reduce_window(y, -jnp.inf, jax.lax.max,
                                     (1, 1, 2, 2), (1, 1, 2, 2), "VALID")

    y = conv_relu_pool(x, params["w1"], params["b1"])
    y = conv_relu_pool(y, params["w2"], params["b2"])
    y = y.reshape(y.shape[0], -1)
    logits = y @ params["w_out"].T + params["b_out"]
    return jax.nn.log_softmax(logits, axis=-1)


if __name__ == "__main__":
    params = init_params()
    prep = prepare_params(params)
    # 28x28 spatial is required by the 32*7*7 linear layer of the module.
    x = jax.random.normal(jax.random.PRNGKey(0), (2, 1, 28, 28), jnp.float32)

    out = jax.block_until_ready(jax.jit(forward)(x, prep))
    assert out.shape == (2, NUM_CLASSES)
    # log_softmax rows must exponentiate-and-sum to 1
    assert bool(jnp.all(jnp.abs(jnp.sum(jnp.exp(out), axis=1) - 1.0) < 1e-3))
    # full numerics check against lax.conv + reduce_window + log_softmax
    ref = reference_forward(x, params)
    np.testing.assert_allclose(np.asarray(out), np.asarray(ref),
                               atol=3e-2, rtol=3e-2)
    print("KERNEL_OK")
</pallas_src>

<mosaic_0001>
module attributes {stable_mosaic.version = 11 : i64} {
  func.func @_fused_cnn_kernel(%arg0: i32, %arg1: memref<1x4x32x196xf32, #tpu.memory_space<vmem>>, %arg2: memref<16x32xf32, #tpu.memory_space<vmem>>, %arg3: memref<16x1xf32, #tpu.memory_space<vmem>>, %arg4: memref<4x32x400xf32, #tpu.memory_space<vmem>>, %arg5: memref<32x1xf32, #tpu.memory_space<vmem>>, %arg6: memref<1x32x63xf32, #tpu.memory_space<vmem>>, %arg7: memref<1x4x16x90xf32, #tpu.memory_space<vmem>>) attributes {dimension_semantics = [#tpu.dimension_semantics<parallel>], iteration_bounds = array<i64: 2>, scalar_prefetch = 0 : i64, scratch_operands = 1 : i64, tpu.core_type = #tpu.core_type<tc>, window_params = [{transform_indices = @transform_0, window_bounds = array<i64: 1, 4, 32, 196>}, {pipeline_mode = #tpu.pipeline_mode<synchronous>, transform_indices = @transform_1, window_bounds = array<i64: 16, 32>}, {pipeline_mode = #tpu.pipeline_mode<synchronous>, transform_indices = @transform_2, window_bounds = array<i64: 16, 1>}, {pipeline_mode = #tpu.pipeline_mode<synchronous>, transform_indices = @transform_3, window_bounds = array<i64: 4, 32, 400>}, {pipeline_mode = #tpu.pipeline_mode<synchronous>, transform_indices = @transform_4, window_bounds = array<i64: 32, 1>}, {transform_indices = @transform_5, window_bounds = array<i64: 1, 32, 63>}]} {
    %c0 = arith.constant 0 : index
    %c0_0 = arith.constant 0 : index
    %0 = vector.load %arg2[%c0, %c0_0] : memref<16x32xf32, #tpu.memory_space<vmem>>, vector<16x32xf32>
    %c0_1 = arith.constant 0 : index
    %c0_2 = arith.constant 0 : index
    %c0_3 = arith.constant 0 : index
    %c0_4 = arith.constant 0 : index
    %1 = vector.load %arg1[%c0_1, %c0_2, %c0_3, %c0_4] : memref<1x4x32x196xf32, #tpu.memory_space<vmem>>, vector<1x1x32x196xf32>
    %2 = vector.shape_cast %1 : vector<1x1x32x196xf32> to vector<32x196xf32>
    %cst = arith.constant dense<0.000000e+00> : vector<16x196xf32>
    %3 = tpu.matmul %0, %2, %cst {dimension_numbers = #tpu.dot_dimension_numbers<[1], [0], [0], [1], [0, 0, 1, 1], [], []>} : vector<16x32xf32>, vector<32x196xf32>, vector<16x196xf32> -> vector<16x196xf32>
    %c0_5 = arith.constant 0 : index
    %c0_6 = arith.constant 0 : index
    %4 = vector.load %arg2[%c0_5, %c0_6] : memref<16x32xf32, #tpu.memory_space<vmem>>, vector<16x32xf32>
    %c0_7 = arith.constant 0 : index
    %c1 = arith.constant 1 : index
    %c0_8 = arith.constant 0 : index
    %c0_9 = arith.constant 0 : index
    %5 = vector.load %arg1[%c0_7, %c1, %c0_8, %c0_9] : memref<1x4x32x196xf32, #tpu.memory_space<vmem>>, vector<1x1x32x196xf32>
    %6 = vector.shape_cast %5 : vector<1x1x32x196xf32> to vector<32x196xf32>
    %cst_10 = arith.constant dense<0.000000e+00> : vector<16x196xf32>
    %7 = tpu.matmul %4, %6, %cst_10 {dimension_numbers = #tpu.dot_dimension_numbers<[1], [0], [0], [1], [0, 0, 1, 1], [], []>} : vector<16x32xf32>, vector<32x196xf32>, vector<16x196xf32> -> vector<16x196xf32>
    %8 = arith.maximumf %3, %7 : vector<16x196xf32>
    %c0_11 = arith.constant 0 : index
    %c0_12 = arith.constant 0 : index
    %9 = vector.load %arg2[%c0_11, %c0_12] : memref<16x32xf32, #tpu.memory_space<vmem>>, vector<16x32xf32>
    %c0_13 = arith.constant 0 : index
    %c2 = arith.constant 2 : index
    %c0_14 = arith.constant 0 : index
    %c0_15 = arith.constant 0 : index
    %10 = vector.load %arg1[%c0_13, %c2, %c0_14, %c0_15] : memref<1x4x32x196xf32, #tpu.memory_space<vmem>>, vector<1x1x32x196xf32>
    %11 = vector.shape_cast %10 : vector<1x1x32x196xf32> to vector<32x196xf32>
    %cst_16 = arith.constant dense<0.000000e+00> : vector<16x196xf32>
    %12 = tpu.matmul %9, %11, %cst_16 {dimension_numbers = #tpu.dot_dimension_numbers<[1], [0], [0], [1], [0, 0, 1, 1], [], []>} : vector<16x32xf32>, vector<32x196xf32>, vector<16x196xf32> -> vector<16x196xf32>
    %13 = arith.maximumf %8, %12 : vector<16x196xf32>
    %c0_17 = arith.constant 0 : index
    %c0_18 = arith.constant 0 : index
    %14 = vector.load %arg2[%c0_17, %c0_18] : memref<16x32xf32, #tpu.memory_space<vmem>>, vector<16x32xf32>
    %c0_19 = arith.constant 0 : index
    %c3 = arith.constant 3 : index
    %c0_20 = arith.constant 0 : index
    %c0_21 = arith.constant 0 : index
    %15 = vector.load %arg1[%c0_19, %c3, %c0_20, %c0_21] : memref<1x4x32x196xf32, #tpu.memory_space<vmem>>, vector<1x1x32x196xf32>
    %16 = vector.shape_cast %15 : vector<1x1x32x196xf32> to vector<32x196xf32>
    %cst_22 = arith.constant dense<0.000000e+00> : vector<16x196xf32>
    %17 = tpu.matmul %14, %16, %cst_22 {dimension_numbers = #tpu.dot_dimension_numbers<[1], [0], [0], [1], [0, 0, 1, 1], [], []>} : vector<16x32xf32>, vector<32x196xf32>, vector<16x196xf32> -> vector<16x196xf32>
    %18 = arith.maximumf %13, %17 : vector<16x196xf32>
    %c0_23 = arith.constant 0 : index
    %c0_24 = arith.constant 0 : index
    %19 = vector.load %arg3[%c0_23, %c0_24] : memref<16x1xf32, #tpu.memory_space<vmem>>, vector<16x1xf32>
    %20 = vector.broadcast %19 : vector<16x1xf32> to vector<16x196xf32>
    %21 = arith.addf %18, %20 : vector<16x196xf32>
    %cst_25 = arith.constant 0.000000e+00 : f32
    %22 = vector.broadcast %cst_25 : f32 to vector<16x196xf32>
    %23 = arith.maximumf %21, %22 : vector<16x196xf32>
    %cst_26 = arith.constant 0.000000e+00 : f32
    %24 = vector.broadcast %cst_26 : f32 to vector<1x4x16x90xf32>
    %c0_27 = arith.constant 0 : index
    %c0_28 = arith.constant 0 : index
    %c0_29 = arith.constant 0 : index
    %c0_30 = arith.constant 0 : index
    %25 = vector.load %arg7[%c0_27, %c0_28, %c0_29, %c0_30] : memref<1x4x16x90xf32, #tpu.memory_space<vmem>>, vector<1x4x16x90xf32>
    tpu.vector_store %arg7[%c0_27, %c0_28, %c0_29, %c0_30], %24 {strides = array<i32>} : memref<1x4x16x90xf32, #tpu.memory_space<vmem>>, vector<1x4x16x90xf32>,
    %26 = vector.extract_strided_slice %23 {offsets = [0, 0], sizes = [16, 7], strides = [1, 1]} : vector<16x196xf32> to vector<16x7xf32>
    %c0_31 = arith.constant 0 : index
    %c0_32 = arith.constant 0 : index
    %c0_33 = arith.constant 0 : index
    %c10 = arith.constant 10 : index
    %27 = vector.load %arg7[%c0_31, %c0_32, %c0_33, %c10] : memref<1x4x16x90xf32, #tpu.memory_space<vmem>>, vector<1x1x16x7xf32>
    %28 = vector.shape_cast %27 : vector<1x1x16x7xf32> to vector<16x7xf32>
    %29 = vector.shape_cast %26 : vector<16x7xf32> to vector<1x1x16x7xf32>
    tpu.vector_store %arg7[%c0_31, %c0_32, %c0_33, %c10], %29 {strides = array<i32>} : memref<1x4x16x90xf32, #tpu.memory_space<vmem>>, vector<1x1x16x7xf32>,
    %30 = vector.extract_strided_slice %23 {offsets = [0, 7], sizes = [16, 7], strides = [1, 1]} : vector<16x196xf32> to vector<16x7xf32>
    %c0_34 = arith.constant 0 : index
    %c0_35 = arith.constant 0 : index
    %c0_36 = arith.constant 0 : index
    %c19 = arith.constant 19 : index
    %31 = vector.load %arg7[%c0_34, %c0_35, %c0_36, %c19] : memref<1x4x16x90xf32, #tpu.memory_space<vmem>>, vector<1x1x16x7xf32>
    %32 = vector.shape_cast %31 : vector<1x1x16x7xf32> to vector<16x7xf32>
    %33 = vector.shape_cast %30 : vector<16x7xf32> to vector<1x1x16x7xf32>
    tpu.vector_store %arg7[%c0_34, %c0_35, %c0_36, %c19], %33 {strides = array<i32>} : memref<1x4x16x90xf32, #tpu.memory_space<vmem>>, vector<1x1x16x7xf32>,
    %34 = vector.extract_strided_slice %23 {offsets = [0, 14], sizes = [16, 7], strides = [1, 1]} : vector<16x196xf32> to vector<16x7xf32>
    %c0_37 = arith.constant 0 : index
    %c0_38 = arith.constant 0 : index
    %c0_39 = arith.constant 0 : index
    %c28 = arith.constant 28 : index
    %35 = vector.load %arg7[%c0_37, %c0_38, %c0_39, %c28] : memref<1x4x16x90xf32, #tpu.memory_space<vmem>>, vector<1x1x16x7xf32>
    %36 = vector.shape_cast %35 : vector<1x1x16x7xf32> to vector<16x7xf32>
    %37 = vector.shape_cast %34 : vector<16x7xf32> to vector<1x1x16x7xf32>
    tpu.vector_store %arg7[%c0_37, %c0_38, %c0_39, %c28], %37 {strides = array<i32>} : memref<1x4x16x90xf32, #tpu.memory_space<vmem>>, vector<1x1x16x7xf32>,
    %38 = vector.extract_strided_slice %23 {offsets = [0, 21], sizes = [16, 7], strides = [1, 1]} : vector<16x196xf32> to vector<16x7xf32>
    %c0_40 = arith.constant 0 : index
    %c0_41 = arith.constant 0 : index
    %c0_42 = arith.constant 0 : index
    %c37 = arith.constant 37 : index
    %39 = vector.load %arg7[%c0_40, %c0_41, %c0_42, %c37] : memref<1x4x16x90xf32, #tpu.memory_space<vmem>>, vector<1x1x16x7xf32>
    %40 = vector.shape_cast %39 : vector<1x1x16x7xf32> to vector<16x7xf32>
    %41 = vector.shape_cast %38 : vector<16x7xf32> to vector<1x1x16x7xf32>
    tpu.vector_store %arg7[%c0_40, %c0_41, %c0_42, %c37], %41 {strides = array<i32>} : memref<1x4x16x90xf32, #tpu.memory_space<vmem>>, vector<1x1x16x7xf32>,
    %42 = vector.extract_strided_slice %23 {offsets = [0, 28], sizes = [16, 7], strides = [1, 1]} : vector<16x196xf32> to vector<16x7xf32>
    %c0_43 = arith.constant 0 : index
    %c0_44 = arith.constant 0 : index
    %c0_45 = arith.constant 0 : index
    %c46 = arith.constant 46 : index
    %43 = vector.load %arg7[%c0_43, %c0_44, %c0_45, %c46] : memref<1x4x16x90xf32, #tpu.memory_space<vmem>>, vector<1x1x16x7xf32>
    %44 = vector.shape_cast %43 : vector<1x1x16x7xf32> to vector<16x7xf32>
    %45 = vector.shape_cast %42 : vector<16x7xf32> to vector<1x1x16x7xf32>
    tpu.vector_store %arg7[%c0_43, %c0_44, %c0_45, %c46], %45 {strides = array<i32>} : memref<1x4x16x90xf32, #tpu.memory_space<vmem>>, vector<1x1x16x7xf32>,
    %46 = vector.extract_strided_slice %23 {offsets = [0, 35], sizes = [16, 7], strides = [1, 1]} : vector<16x196xf32> to vector<16x7xf32>
    %c0_46 = arith.constant 0 : index
    %c0_47 = arith.constant 0 : index
    %c0_48 = arith.constant 0 : index
    %c55 = arith.constant 55 : index
    %47 = vector.load %arg7[%c0_46, %c0_47, %c0_48, %c55] : memref<1x4x16x90xf32, #tpu.memory_space<vmem>>, vector<1x1x16x7xf32>
    %48 = vector.shape_cast %47 : vector<1x1x16x7xf32> to vector<16x7xf32>
    %49 = vector.shape_cast %46 : vector<16x7xf32> to vector<1x1x16x7xf32>
    tpu.vector_store %arg7[%c0_46, %c0_47, %c0_48, %c55], %49 {strides = array<i32>} : memref<1x4x16x90xf32, #tpu.memory_space<vmem>>, vector<1x1x16x7xf32>,
    %50 = vector.extract_strided_slice %23 {offsets = [0, 42], sizes = [16, 7], strides = [1, 1]} : vector<16x196xf32> to vector<16x7xf32>
    %c0_49 = arith.constant 0 : index
    %c0_50 = arith.constant 0 : index
    %c0_51 = arith.constant 0 : index
    %c64 = arith.constant 64 : index
    %51 = vector.load %arg7[%c0_49, %c0_50, %c0_51, %c64] : memref<1x4x16x90xf32, #tpu.memory_space<vmem>>, vector<1x1x16x7xf32>
    %52 = vector.shape_cast %51 : vector<1x1x16x7xf32> to vector<16x7xf32>
    %53 = vector.shape_cast %50 : vector<16x7xf32> to vector<1x1x16x7xf32>
    tpu.vector_store %arg7[%c0_49, %c0_50, %c0_51, %c64], %53 {strides = array<i32>} : memref<1x4x16x90xf32, #tpu.memory_space<vmem>>, vector<1x1x16x7xf32>,
    %54 = vector.extract_strided_slice %23 {offsets = [0, 49], sizes = [16, 7], strides = [1, 1]} : vector<16x196xf32> to vector<16x7xf32>
    %c0_52 = arith.constant 0 : index
    %c1_53 = arith.constant 1 : index
    %c0_54 = arith.constant 0 : index
    %c10_55 = arith.constant 10 : index
    %55 = vector.load %arg7[%c0_52, %c1_53, %c0_54, %c10_55] : memref<1x4x16x90xf32, #tpu.memory_space<vmem>>, vector<1x1x16x7xf32>
    %56 = vector.shape_cast %55 : vector<1x1x16x7xf32> to vector<16x7xf32>
    %57 = vector.shape_cast %54 : vector<16x7xf32> to vector<1x1x16x7xf32>
    tpu.vector_store %arg7[%c0_52, %c1_53, %c0_54, %c10_55], %57 {strides = array<i32>} : memref<1x4x16x90xf32, #tpu.memory_space<vmem>>, vector<1x1x16x7xf32>,
    %58 = vector.extract_strided_slice %23 {offsets = [0, 56], sizes = [16, 7], strides = [1, 1]} : vector<16x196xf32> to vector<16x7xf32>
    %c0_56 = arith.constant 0 : index
    %c1_57 = arith.constant 1 : index
    %c0_58 = arith.constant 0 : index
    %c19_59 = arith.constant 19 : index
    %59 = vector.load %arg7[%c0_56, %c1_57, %c0_58, %c19_59] : memref<1x4x16x90xf32, #tpu.memory_space<vmem>>, vector<1x1x16x7xf32>
    %60 = vector.shape_cast %59 : vector<1x1x16x7xf32> to vector<16x7xf32>
    %61 = vector.shape_cast %58 : vector<16x7xf32> to vector<1x1x16x7xf32>
    tpu.vector_store %arg7[%c0_56, %c1_57, %c0_58, %c19_59], %61 {strides = array<i32>} : memref<1x4x16x90xf32, #tpu.memory_space<vmem>>, vector<1x1x16x7xf32>,
    %62 = vector.extract_strided_slice %23 {offsets = [0, 63], sizes = [16, 7], strides = [1, 1]} : vector<16x196xf32> to vector<16x7xf32>
    %c0_60 = arith.constant 0 : index
    %c1_61 = arith.constant 1 : index
    %c0_62 = arith.constant 0 : index
    %c28_63 = arith.constant 28 : index
    %63 = vector.load %arg7[%c0_60, %c1_61, %c0_62, %c28_63] : memref<1x4x16x90xf32, #tpu.memory_space<vmem>>, vector<1x1x16x7xf32>
    %64 = vector.shape_cast %63 : vector<1x1x16x7xf32> to vector<16x7xf32>
    %65 = vector.shape_cast %62 : vector<16x7xf32> to vector<1x1x16x7xf32>
    tpu.vector_store %arg7[%c0_60, %c1_61, %c0_62, %c28_63], %65 {strides = array<i32>} : memref<1x4x16x90xf32, #tpu.memory_space<vmem>>, vector<1x1x16x7xf32>,
    %66 = vector.extract_strided_slice %23 {offsets = [0, 70], sizes = [16, 7], strides = [1, 1]} : vector<16x196xf32> to vector<16x7xf32>
    %c0_64 = arith.constant 0 : index
    %c1_65 = arith.constant 1 : index
    %c0_66 = arith.constant 0 : index
    %c37_67 = arith.constant 37 : index
    %67 = vector.load %arg7[%c0_64, %c1_65, %c0_66, %c37_67] : memref<1x4x16x90xf32, #tpu.memory_space<vmem>>, vector<1x1x16x7xf32>
    %68 = vector.shape_cast %67 : vector<1x1x16x7xf32> to vector<16x7xf32>
    %69 = vector.shape_cast %66 : vector<16x7xf32> to vector<1x1x16x7xf32>
    tpu.vector_store %arg7[%c0_64, %c1_65, %c0_66, %c37_67], %69 {strides = array<i32>} : memref<1x4x16x90xf32, #tpu.memory_space<vmem>>, vector<1x1x16x7xf32>,
    %70 = vector.extract_strided_slice %23 {offsets = [0, 77], sizes = [16, 7], strides = [1, 1]} : vector<16x196xf32> to vector<16x7xf32>
    %c0_68 = arith.constant 0 : index
    %c1_69 = arith.constant 1 : index
    %c0_70 = arith.constant 0 : index
    %c46_71 = arith.constant 46 : index
    %71 = vector.load %arg7[%c0_68, %c1_69, %c0_70, %c46_71] : memref<1x4x16x90xf32, #tpu.memory_space<vmem>>, vector<1x1x16x7xf32>
    %72 = vector.shape_cast %71 : vector<1x1x16x7xf32> to vector<16x7xf32>
    %73 = vector.shape_cast %70 : vector<16x7xf32> to vector<1x1x16x7xf32>
    tpu.vector_store %arg7[%c0_68, %c1_69, %c0_70, %c46_71], %73 {strides = array<i32>} : memref<1x4x16x90xf32, #tpu.memory_space<vmem>>, vector<1x1x16x7xf32>,
    %74 = vector.extract_strided_slice %23 {offsets = [0, 84], sizes = [16, 7], strides = [1, 1]} : vector<16x196xf32> to vector<16x7xf32>
    %c0_72 = arith.constant 0 : index
    %c1_73 = arith.constant 1 : index
    %c0_74 = arith.constant 0 : index
    %c55_75 = arith.constant 55 : index
    %75 = vector.load %arg7[%c0_72, %c1_73, %c0_74, %c55_75] : memref<1x4x16x90xf32, #tpu.memory_space<vmem>>, vector<1x1x16x7xf32>
    %76 = vector.shape_cast %75 : vector<1x1x16x7xf32> to vector<16x7xf32>
    %77 = vector.shape_cast %74 : vector<16x7xf32> to vector<1x1x16x7xf32>
    tpu.vector_store %arg7[%c0_72, %c1_73, %c0_74, %c55_75], %77 {strides = array<i32>} : memref<1x4x16x90xf32, #tpu.memory_space<vmem>>, vector<1x1x16x7xf32>,
    %78 = vector.extract_strided_slice %23 {offsets = [0, 91], sizes = [16, 7], strides = [1, 1]} : vector<16x196xf32> to vector<16x7xf32>
    %c0_76 = arith.constant 0 : index
    %c1_77 = arith.constant 1 : index
    %c0_78 = arith.constant 0 : index
    %c64_79 = arith.constant 64 : index
    %79 = vector.load %arg7[%c0_76, %c1_77, %c0_78, %c64_79] : memref<1x4x16x90xf32, #tpu.memory_space<vmem>>, vector<1x1x16x7xf32>
    %80 = vector.shape_cast %79 : vector<1x1x16x7xf32> to vector<16x7xf32>
    %81 = vector.shape_cast %78 : vector<16x7xf32> to vector<1x1x16x7xf32>
    tpu.vector_store %arg7[%c0_76, %c1_77, %c0_78, %c64_79], %81 {strides = array<i32>} : memref<1x4x16x90xf32, #tpu.memory_space<vmem>>, vector<1x1x16x7xf32>,
    %82 = vector.extract_strided_slice %23 {offsets = [0, 98], sizes = [16, 7], strides = [1, 1]} : vector<16x196xf32> to vector<16x7xf32>
    %c0_80 = arith.constant 0 : index
    %c2_81 = arith.constant 2 : index
    %c0_82 = arith.constant 0 : index
    %c10_83 = arith.constant 10 : index
    %83 = vector.load %arg7[%c0_80, %c2_81, %c0_82, %c10_83] : memref<1x4x16x90xf32, #tpu.memory_space<vmem>>, vector<1x1x16x7xf32>
    %84 = vector.shape_cast %83 : vector<1x1x16x7xf32> to vector<16x7xf32>
    %85 = vector.shape_cast %82 : vector<16x7xf32> to vector<1x1x16x7xf32>
    tpu.vector_store %arg7[%c0_80, %c2_81, %c0_82, %c10_83], %85 {strides = array<i32>} : memref<1x4x16x90xf32, #tpu.memory_space<vmem>>, vector<1x1x16x7xf32>,
    %86 = vector.extract_strided_slice %23 {offsets = [0, 105], sizes = [16, 7], strides = [1, 1]} : vector<16x196xf32> to vector<16x7xf32>
    %c0_84 = arith.constant 0 : index
    %c2_85 = arith.constant 2 : index
    %c0_86 = arith.constant 0 : index
    %c19_87 = arith.constant 19 : index
    %87 = vector.load %arg7[%c0_84, %c2_85, %c0_86, %c19_87] : memref<1x4x16x90xf32, #tpu.memory_space<vmem>>, vector<1x1x16x7xf32>
    %88 = vector.shape_cast %87 : vector<1x1x16x7xf32> to vector<16x7xf32>
    %89 = vector.shape_cast %86 : vector<16x7xf32> to vector<1x1x16x7xf32>
    tpu.vector_store %arg7[%c0_84, %c2_85, %c0_86, %c19_87], %89 {strides = array<i32>} : memref<1x4x16x90xf32, #tpu.memory_space<vmem>>, vector<1x1x16x7xf32>,
    %90 = vector.extract_strided_slice %23 {offsets = [0, 112], sizes = [16, 7], strides = [1, 1]} : vector<16x196xf32> to vector<16x7xf32>
    %c0_88 = arith.constant 0 : index
    %c2_89 = arith.constant 2 : index
    %c0_90 = arith.constant 0 : index
    %c28_91 = arith.constant 28 : index
    %91 = vector.load %arg7[%c0_88, %c2_89, %c0_90, %c28_91] : memref<1x4x16x90xf32, #tpu.memory_space<vmem>>, vector<1x1x16x7xf32>
    %92 = vector.shape_cast %91 : vector<1x1x16x7xf32> to vector<16x7xf32>
    %93 = vector.shape_cast %90 : vector<16x7xf32> to vector<1x1x16x7xf32>
    tpu.vector_store %arg7[%c0_88, %c2_89, %c0_90, %c28_91], %93 {strides = array<i32>} : memref<1x4x16x90xf32, #tpu.memory_space<vmem>>, vector<1x1x16x7xf32>,
    %94 = vector.extract_strided_slice %23 {offsets = [0, 119], sizes = [16, 7], strides = [1, 1]} : vector<16x196xf32> to vector<16x7xf32>
    %c0_92 = arith.constant 0 : index
    %c2_93 = arith.constant 2 : index
    %c0_94 = arith.constant 0 : index
    %c37_95 = arith.constant 37 : index
    %95 = vector.load %arg7[%c0_92, %c2_93, %c0_94, %c37_95] : memref<1x4x16x90xf32, #tpu.memory_space<vmem>>, vector<1x1x16x7xf32>
    %96 = vector.shape_cast %95 : vector<1x1x16x7xf32> to vector<16x7xf32>
    %97 = vector.shape_cast %94 : vector<16x7xf32> to vector<1x1x16x7xf32>
    tpu.vector_store %arg7[%c0_92, %c2_93, %c0_94, %c37_95], %97 {strides = array<i32>} : memref<1x4x16x90xf32, #tpu.memory_space<vmem>>, vector<1x1x16x7xf32>,
    %98 = vector.extract_strided_slice %23 {offsets = [0, 126], sizes = [16, 7], strides = [1, 1]} : vector<16x196xf32> to vector<16x7xf32>
    %c0_96 = arith.constant 0 : index
    %c2_97 = arith.constant 2 : index
    %c0_98 = arith.constant 0 : index
    %c46_99 = arith.constant 46 : index
    %99 = vector.load %arg7[%c0_96, %c2_97, %c0_98, %c46_99] : memref<1x4x16x90xf32, #tpu.memory_space<vmem>>, vector<1x1x16x7xf32>
    %100 = vector.shape_cast %99 : vector<1x1x16x7xf32> to vector<16x7xf32>
    %101 = vector.shape_cast %98 : vector<16x7xf32> to vector<1x1x16x7xf32>
    tpu.vector_store %arg7[%c0_96, %c2_97, %c0_98, %c46_99], %101 {strides = array<i32>} : memref<1x4x16x90xf32, #tpu.memory_space<vmem>>, vector<1x1x16x7xf32>,
    %102 = vector.extract_strided_slice %23 {offsets = [0, 133], sizes = [16, 7], strides = [1, 1]} : vector<16x196xf32> to vector<16x7xf32>
    %c0_100 = arith.constant 0 : index
    %c2_101 = arith.constant 2 : index
    %c0_102 = arith.constant 0 : index
    %c55_103 = arith.constant 55 : index
    %103 = vector.load %arg7[%c0_100, %c2_101, %c0_102, %c55_103] : memref<1x4x16x90xf32, #tpu.memory_space<vmem>>, vector<1x1x16x7xf32>
    %104 = vector.shape_cast %103 : vector<1x1x16x7xf32> to vector<16x7xf32>
    %105 = vector.shape_cast %102 : vector<16x7xf32> to vector<1x1x16x7xf32>
    tpu.vector_store %arg7[%c0_100, %c2_101, %c0_102, %c55_103], %105 {strides = array<i32>} : memref<1x4x16x90xf32, #tpu.memory_space<vmem>>, vector<1x1x16x7xf32>,
    %106 = vector.extract_strided_slice %23 {offsets = [0, 140], sizes = [16, 7], strides = [1, 1]} : vector<16x196xf32> to vector<16x7xf32>
    %c0_104 = arith.constant 0 : index
    %c2_105 = arith.constant 2 : index
    %c0_106 = arith.constant 0 : index
    %c64_107 = arith.constant 64 : index
    %107 = vector.load %arg7[%c0_104, %c2_105, %c0_106, %c64_107] : memref<1x4x16x90xf32, #tpu.memory_space<vmem>>, vector<1x1x16x7xf32>
    %108 = vector.shape_cast %107 : vector<1x1x16x7xf32> to vector<16x7xf32>
    %109 = vector.shape_cast %106 : vector<16x7xf32> to vector<1x1x16x7xf32>
    tpu.vector_store %arg7[%c0_104, %c2_105, %c0_106, %c64_107], %109 {strides = array<i32>} : memref<1x4x16x90xf32, #tpu.memory_space<vmem>>, vector<1x1x16x7xf32>,
    %110 = vector.extract_strided_slice %23 {offsets = [0, 147], sizes = [16, 7], strides = [1, 1]} : vector<16x196xf32> to vector<16x7xf32>
    %c0_108 = arith.constant 0 : index
    %c3_109 = arith.constant 3 : index
    %c0_110 = arith.constant 0 : index
    %c10_111 = arith.constant 10 : index
    %111 = vector.load %arg7[%c0_108, %c3_109, %c0_110, %c10_111] : memref<1x4x16x90xf32, #tpu.memory_space<vmem>>, vector<1x1x16x7xf32>
    %112 = vector.shape_cast %111 : vector<1x1x16x7xf32> to vector<16x7xf32>
    %113 = vector.shape_cast %110 : vector<16x7xf32> to vector<1x1x16x7xf32>
    tpu.vector_store %arg7[%c0_108, %c3_109, %c0_110, %c10_111], %113 {strides = array<i32>} : memref<1x4x16x90xf32, #tpu.memory_space<vmem>>, vector<1x1x16x7xf32>,
    %114 = vector.extract_strided_slice %23 {offsets = [0, 154], sizes = [16, 7], strides = [1, 1]} : vector<16x196xf32> to vector<16x7xf32>
    %c0_112 = arith.constant 0 : index
    %c3_113 = arith.constant 3 : index
    %c0_114 = arith.constant 0 : index
    %c19_115 = arith.constant 19 : index
    %115 = vector.load %arg7[%c0_112, %c3_113, %c0_114, %c19_115] : memref<1x4x16x90xf32, #tpu.memory_space<vmem>>, vector<1x1x16x7xf32>
    %116 = vector.shape_cast %115 : vector<1x1x16x7xf32> to vector<16x7xf32>
    %117 = vector.shape_cast %114 : vector<16x7xf32> to vector<1x1x16x7xf32>
    tpu.vector_store %arg7[%c0_112, %c3_113, %c0_114, %c19_115], %117 {strides = array<i32>} : memref<1x4x16x90xf32, #tpu.memory_space<vmem>>, vector<1x1x16x7xf32>,
    %118 = vector.extract_strided_slice %23 {offsets = [0, 161], sizes = [16, 7], strides = [1, 1]} : vector<16x196xf32> to vector<16x7xf32>
    %c0_116 = arith.constant 0 : index
    %c3_117 = arith.constant 3 : index
    %c0_118 = arith.constant 0 : index
    %c28_119 = arith.constant 28 : index
    %119 = vector.load %arg7[%c0_116, %c3_117, %c0_118, %c28_119] : memref<1x4x16x90xf32, #tpu.memory_space<vmem>>, vector<1x1x16x7xf32>
    %120 = vector.shape_cast %119 : vector<1x1x16x7xf32> to vector<16x7xf32>
    %121 = vector.shape_cast %118 : vector<16x7xf32> to vector<1x1x16x7xf32>
    tpu.vector_store %arg7[%c0_116, %c3_117, %c0_118, %c28_119], %121 {strides = array<i32>} : memref<1x4x16x90xf32, #tpu.memory_space<vmem>>, vector<1x1x16x7xf32>,
    %122 = vector.extract_strided_slice %23 {offsets = [0, 168], sizes = [16, 7], strides = [1, 1]} : vector<16x196xf32> to vector<16x7xf32>
    %c0_120 = arith.constant 0 : index
    %c3_121 = arith.constant 3 : index
    %c0_122 = arith.constant 0 : index
    %c37_123 = arith.constant 37 : index
    %123 = vector.load %arg7[%c0_120, %c3_121, %c0_122, %c37_123] : memref<1x4x16x90xf32, #tpu.memory_space<vmem>>, vector<1x1x16x7xf32>
    %124 = vector.shape_cast %123 : vector<1x1x16x7xf32> to vector<16x7xf32>
    %125 = vector.shape_cast %122 : vector<16x7xf32> to vector<1x1x16x7xf32>
    tpu.vector_store %arg7[%c0_120, %c3_121, %c0_122, %c37_123], %125 {strides = array<i32>} : memref<1x4x16x90xf32, #tpu.memory_space<vmem>>, vector<1x1x16x7xf32>,
    %126 = vector.extract_strided_slice %23 {offsets = [0, 175], sizes = [16, 7], strides = [1, 1]} : vector<16x196xf32> to vector<16x7xf32>
    %c0_124 = arith.constant 0 : index
    %c3_125 = arith.constant 3 : index
    %c0_126 = arith.constant 0 : index
    %c46_127 = arith.constant 46 : index
    %127 = vector.load %arg7[%c0_124, %c3_125, %c0_126, %c46_127] : memref<1x4x16x90xf32, #tpu.memory_space<vmem>>, vector<1x1x16x7xf32>
    %128 = vector.shape_cast %127 : vector<1x1x16x7xf32> to vector<16x7xf32>
    %129 = vector.shape_cast %126 : vector<16x7xf32> to vector<1x1x16x7xf32>
    tpu.vector_store %arg7[%c0_124, %c3_125, %c0_126, %c46_127], %129 {strides = array<i32>} : memref<1x4x16x90xf32, #tpu.memory_space<vmem>>, vector<1x1x16x7xf32>,
    %130 = vector.extract_strided_slice %23 {offsets = [0, 182], sizes = [16, 7], strides = [1, 1]} : vector<16x196xf32> to vector<16x7xf32>
    %c0_128 = arith.constant 0 : index
    %c3_129 = arith.constant 3 : index
    %c0_130 = arith.constant 0 : index
    %c55_131 = arith.constant 55 : index
    %131 = vector.load %arg7[%c0_128, %c3_129, %c0_130, %c55_131] : memref<1x4x16x90xf32, #tpu.memory_space<vmem>>, vector<1x1x16x7xf32>
    %132 = vector.shape_cast %131 : vector<1x1x16x7xf32> to vector<16x7xf32>
    %133 = vector.shape_cast %130 : vector<16x7xf32> to vector<1x1x16x7xf32>
    tpu.vector_store %arg7[%c0_128, %c3_129, %c0_130, %c55_131], %133 {strides = array<i32>} : memref<1x4x16x90xf32, #tpu.memory_space<vmem>>, vector<1x1x16x7xf32>,
    %134 = vector.extract_strided_slice %23 {offsets = [0, 189], sizes = [16, 7], strides = [1, 1]} : vector<16x196xf32> to vector<16x7xf32>
    %c0_132 = arith.constant 0 : index
    %c3_133 = arith.constant 3 : index
    %c0_134 = arith.constant 0 : index
    %c64_135 = arith.constant 64 : index
    %135 = vector.load %arg7[%c0_132, %c3_133, %c0_134, %c64_135] : memref<1x4x16x90xf32, #tpu.memory_space<vmem>>, vector<1x1x16x7xf32>
    %136 = vector.shape_cast %135 : vector<1x1x16x7xf32> to vector<16x7xf32>
    %137 = vector.shape_cast %134 : vector<16x7xf32> to vector<1x1x16x7xf32>
    tpu.vector_store %arg7[%c0_132, %c3_133, %c0_134, %c64_135], %137 {strides = array<i32>} : memref<1x4x16x90xf32, #tpu.memory_space<vmem>>, vector<1x1x16x7xf32>,
    %c0_136 = arith.constant 0 : index
    %c0_137 = arith.constant 0 : index
    %c0_138 = arith.constant 0 : index
    %138 = vector.load %arg4[%c0_136, %c0_137, %c0_138] : memref<4x32x400xf32, #tpu.memory_space<vmem>>, vector<1x32x144xf32>
    %139 = vector.shape_cast %138 : vector<1x32x144xf32> to vector<32x144xf32>
    %c0_139 = arith.constant 0 : index
    %c0_140 = arith.constant 0 : index
    %c144 = arith.constant 144 : index
    %140 = vector.load %arg4[%c0_139, %c0_140, %c144] : memref<4x32x400xf32, #tpu.memory_space<vmem>>, vector<1x32x96xf32>
    %141 = vector.shape_cast %140 : vector<1x32x96xf32> to vector<32x96xf32>
    %c0_141 = arith.constant 0 : index
    %c0_142 = arith.constant 0 : index
    %c240 = arith.constant 240 : index
    %142 = vector.load %arg4[%c0_141, %c0_142, %c240] : memref<4x32x400xf32, #tpu.memory_space<vmem>>, vector<1x32x96xf32>
    %143 = vector.shape_cast %142 : vector<1x32x96xf32> to vector<32x96xf32>
    %c0_143 = arith.constant 0 : index
    %c0_144 = arith.constant 0 : index
    %c336 = arith.constant 336 : index
    %144 = vector.load %arg4[%c0_143, %c0_144, %c336] : memref<4x32x400xf32, #tpu.memory_space<vmem>>, vector<1x32x64xf32>
    %145 = vector.shape_cast %144 : vector<1x32x64xf32> to vector<32x64xf32>
    %c1_145 = arith.constant 1 : index
    %c0_146 = arith.constant 0 : index
    %c0_147 = arith.constant 0 : index
    %146 = vector.load %arg4[%c1_145, %c0_146, %c0_147] : memref<4x32x400xf32, #tpu.memory_space<vmem>>, vector<1x32x96xf32>
    %147 = vector.shape_cast %146 : vector<1x32x96xf32> to vector<32x96xf32>
    %c1_148 = arith.constant 1 : index
    %c0_149 = arith.constant 0 : index
    %c96 = arith.constant 96 : index
    %148 = vector.load %arg4[%c1_148, %c0_149, %c96] : memref<4x32x400xf32, #tpu.memory_space<vmem>>, vector<1x32x144xf32>
    %149 = vector.shape_cast %148 : vector<1x32x144xf32> to vector<32x144xf32>
    %c1_150 = arith.constant 1 : index
    %c0_151 = arith.constant 0 : index
    %c240_152 = arith.constant 240 : index
    %150 = vector.load %arg4[%c1_150, %c0_151, %c240_152] : memref<4x32x400xf32, #tpu.memory_space<vmem>>, vector<1x32x64xf32>
    %151 = vector.shape_cast %150 : vector<1x32x64xf32> to vector<32x64xf32>
    %c1_153 = arith.constant 1 : index
    %c0_154 = arith.constant 0 : index
    %c304 = arith.constant 304 : index
    %152 = vector.load %arg4[%c1_153, %c0_154, %c304] : memref<4x32x400xf32, #tpu.memory_space<vmem>>, vector<1x32x96xf32>
    %153 = vector.shape_cast %152 : vector<1x32x96xf32> to vector<32x96xf32>
    %c2_155 = arith.constant 2 : index
    %c0_156 = arith.constant 0 : index
    %c0_157 = arith.constant 0 : index
    %154 = vector.load %arg4[%c2_155, %c0_156, %c0_157] : memref<4x32x400xf32, #tpu.memory_space<vmem>>, vector<1x32x96xf32>
    %155 = vector.shape_cast %154 : vector<1x32x96xf32> to vector<32x96xf32>
    %c2_158 = arith.constant 2 : index
    %c0_159 = arith.constant 0 : index
    %c96_160 = arith.constant 96 : index
    %156 = vector.load %arg4[%c2_158, %c0_159, %c96_160] : memref<4x32x400xf32, #tpu.memory_space<vmem>>, vector<1x32x64xf32>
    %157 = vector.shape_cast %156 : vector<1x32x64xf32> to vector<32x64xf32>
    %c2_161 = arith.constant 2 : index
    %c0_162 = arith.constant 0 : index
    %c160 = arith.constant 160 : index
    %158 = vector.load %arg4[%c2_161, %c0_162, %c160] : memref<4x32x400xf32, #tpu.memory_space<vmem>>, vector<1x32x144xf32>
    %159 = vector.shape_cast %158 : vector<1x32x144xf32> to vector<32x144xf32>
    %c2_163 = arith.constant 2 : index
    %c0_164 = arith.constant 0 : index
    %c304_165 = arith.constant 304 : index
    %160 = vector.load %arg4[%c2_163, %c0_164, %c304_165] : memref<4x32x400xf32, #tpu.memory_space<vmem>>, vector<1x32x96xf32>
    %161 = vector.shape_cast %160 : vector<1x32x96xf32> to vector<32x96xf32>
    %c3_166 = arith.constant 3 : index
    %c0_167 = arith.constant 0 : index
    %c0_168 = arith.constant 0 : index
    %162 = vector.load %arg4[%c3_166, %c0_167, %c0_168] : memref<4x32x400xf32, #tpu.memory_space<vmem>>, vector<1x32x64xf32>
    %163 = vector.shape_cast %162 : vector<1x32x64xf32> to vector<32x64xf32>
    %c3_169 = arith.constant 3 : index
    %c0_170 = arith.constant 0 : index
    %c64_171 = arith.constant 64 : index
    %164 = vector.load %arg4[%c3_169, %c0_170, %c64_171] : memref<4x32x400xf32, #tpu.memory_space<vmem>>, vector<1x32x96xf32>
    %165 = vector.shape_cast %164 : vector<1x32x96xf32> to vector<32x96xf32>
    %c3_172 = arith.constant 3 : index
    %c0_173 = arith.constant 0 : index
    %c160_174 = arith.constant 160 : index
    %166 = vector.load %arg4[%c3_172, %c0_173, %c160_174] : memref<4x32x400xf32, #tpu.memory_space<vmem>>, vector<1x32x96xf32>
    %167 = vector.shape_cast %166 : vector<1x32x96xf32> to vector<32x96xf32>
    %c3_175 = arith.constant 3 : index
    %c0_176 = arith.constant 0 : index
    %c256 = arith.constant 256 : index
    %168 = vector.load %arg4[%c3_175, %c0_176, %c256] : memref<4x32x400xf32, #tpu.memory_space<vmem>>, vector<1x32x144xf32>
    %169 = vector.shape_cast %168 : vector<1x32x144xf32> to vector<32x144xf32>
    %c0_177 = arith.constant 0 : index
    %c0_178 = arith.constant 0 : index
    %c0_179 = arith.constant 0 : index
    %c0_180 = arith.constant 0 : index
    %170 = vector.load %arg7[%c0_177, %c0_178, %c0_179, %c0_180] : memref<1x4x16x90xf32, #tpu.memory_space<vmem>>, vector<1x1x16x63xf32>
    %171 = vector.shape_cast %170 : vector<1x1x16x63xf32> to vector<16x63xf32>
    %c0_181 = arith.constant 0 : index
    %c0_182 = arith.constant 0 : index
    %c0_183 = arith.constant 0 : index
    %c1_184 = arith.constant 1 : index
    %172 = vector.load %arg7[%c0_181, %c0_182, %c0_183, %c1_184] : memref<1x4x16x90xf32, #tpu.memory_space<vmem>>, vector<1x1x16x63xf32>
    %173 = vector.shape_cast %172 : vector<1x1x16x63xf32> to vector<16x63xf32>
    %c0_185 = arith.constant 0 : index
    %c0_186 = arith.constant 0 : index
    %c0_187 = arith.constant 0 : index
    %c2_188 = arith.constant 2 : index
    %174 = vector.load %arg7[%c0_185, %c0_186, %c0_187, %c2_188] : memref<1x4x16x90xf32, #tpu.memory_space<vmem>>, vector<1x1x16x63xf32>
    %175 = vector.shape_cast %174 : vector<1x1x16x63xf32> to vector<16x63xf32>
    %c0_189 = arith.constant 0 : index
    %c0_190 = arith.constant 0 : index
    %c0_191 = arith.constant 0 : index
    %c9 = arith.constant 9 : index
    %176 = vector.load %arg7[%c0_189, %c0_190, %c0_191, %c9] : memref<1x4x16x90xf32, #tpu.memory_space<vmem>>, vector<1x1x16x63xf32>
    %177 = vector.shape_cast %176 : vector<1x1x16x63xf32> to vector<16x63xf32>
    %c0_192 = arith.constant 0 : index
    %c0_193 = arith.constant 0 : index
    %c0_194 = arith.constant 0 : index
    %c10_195 = arith.constant 10 : index
    %178 = vector.load %arg7[%c0_192, %c0_193, %c0_194, %c10_195] : memref<1x4x16x90xf32, #tpu.memory_space<vmem>>, vector<1x1x16x63xf32>
    %179 = vector.shape_cast %178 : vector<1x1x16x63xf32> to vector<16x63xf32>
    %c0_196 = arith.constant 0 : index
    %c0_197 = arith.constant 0 : index
    %c0_198 = arith.constant 0 : index
    %c11 = arith.constant 11 : index
    %180 = vector.load %arg7[%c0_196, %c0_197, %c0_198, %c11] : memref<1x4x16x90xf32, #tpu.memory_space<vmem>>, vector<1x1x16x63xf32>
    %181 = vector.shape_cast %180 : vector<1x1x16x63xf32> to vector<16x63xf32>
    %c0_199 = arith.constant 0 : index
    %c0_200 = arith.constant 0 : index
    %c0_201 = arith.constant 0 : index
    %c18 = arith.constant 18 : index
    %182 = vector.load %arg7[%c0_199, %c0_200, %c0_201, %c18] : memref<1x4x16x90xf32, #tpu.memory_space<vmem>>, vector<1x1x16x63xf32>
    %183 = vector.shape_cast %182 : vector<1x1x16x63xf32> to vector<16x63xf32>
    %c0_202 = arith.constant 0 : index
    %c0_203 = arith.constant 0 : index
    %c0_204 = arith.constant 0 : index
    %c19_205 = arith.constant 19 : index
    %184 = vector.load %arg7[%c0_202, %c0_203, %c0_204, %c19_205] : memref<1x4x16x90xf32, #tpu.memory_space<vmem>>, vector<1x1x16x63xf32>
    %185 = vector.shape_cast %184 : vector<1x1x16x63xf32> to vector<16x63xf32>
    %c0_206 = arith.constant 0 : index
    %c0_207 = arith.constant 0 : index
    %c0_208 = arith.constant 0 : index
    %c20 = arith.constant 20 : index
    %186 = vector.load %arg7[%c0_206, %c0_207, %c0_208, %c20] : memref<1x4x16x90xf32, #tpu.memory_space<vmem>>, vector<1x1x16x63xf32>
    %187 = vector.shape_cast %186 : vector<1x1x16x63xf32> to vector<16x63xf32>
    %188 = tpu.concatenate %171, %173, %175, %177, %179, %181, %183, %185, %187 in 0 : vector<16x63xf32>, vector<16x63xf32>, vector<16x63xf32>, vector<16x63xf32>, vector<16x63xf32>, vector<16x63xf32>, vector<16x63xf32>, vector<16x63xf32>, vector<16x63xf32> -> vector<144x63xf32>
    %cst_209 = arith.constant dense<0.000000e+00> : vector<32x63xf32>
    %189 = tpu.matmul %139, %188, %cst_209 {dimension_numbers = #tpu.dot_dimension_numbers<[1], [0], [0], [1], [0, 0, 1, 1], [], []>} : vector<32x144xf32>, vector<144x63xf32>, vector<32x63xf32> -> vector<32x63xf32>
    %c0_210 = arith.constant 0 : index
    %c1_211 = arith.constant 1 : index
    %c0_212 = arith.constant 0 : index
    %c0_213 = arith.constant 0 : index
    %190 = vector.load %arg7[%c0_210, %c1_211, %c0_212, %c0_213] : memref<1x4x16x90xf32, #tpu.memory_space<vmem>>, vector<1x1x16x63xf32>
    %191 = vector.shape_cast %190 : vector<1x1x16x63xf32> to vector<16x63xf32>
    %c0_214 = arith.constant 0 : index
    %c1_215 = arith.constant 1 : index
    %c0_216 = arith.constant 0 : index
    %c1_217 = arith.constant 1 : index
    %192 = vector.load %arg7[%c0_214, %c1_215, %c0_216, %c1_217] : memref<1x4x16x90xf32, #tpu.memory_space<vmem>>, vector<1x1x16x63xf32>
    %193 = vector.shape_cast %192 : vector<1x1x16x63xf32> to vector<16x63xf32>
    %c0_218 = arith.constant 0 : index
    %c1_219 = arith.constant 1 : index
    %c0_220 = arith.constant 0 : index
    %c9_221 = arith.constant 9 : index
    %194 = vector.load %arg7[%c0_218, %c1_219, %c0_220, %c9_221] : memref<1x4x16x90xf32, #tpu.memory_space<vmem>>, vector<1x1x16x63xf32>
    %195 = vector.shape_cast %194 : vector<1x1x16x63xf32> to vector<16x63xf32>
    %c0_222 = arith.constant 0 : index
    %c1_223 = arith.constant 1 : index
    %c0_224 = arith.constant 0 : index
    %c10_225 = arith.constant 10 : index
    %196 = vector.load %arg7[%c0_222, %c1_223, %c0_224, %c10_225] : memref<1x4x16x90xf32, #tpu.memory_space<vmem>>, vector<1x1x16x63xf32>
    %197 = vector.shape_cast %196 : vector<1x1x16x63xf32> to vector<16x63xf32>
    %c0_226 = arith.constant 0 : index
    %c1_227 = arith.constant 1 : index
    %c0_228 = arith.constant 0 : index
    %c18_229 = arith.constant 18 : index
    %198 = vector.load %arg7[%c0_226, %c1_227, %c0_228, %c18_229] : memref<1x4x16x90xf32, #tpu.memory_space<vmem>>, vector<1x1x16x63xf32>
    %199 = vector.shape_cast %198 : vector<1x1x16x63xf32> to vector<16x63xf32>
    %c0_230 = arith.constant 0 : index
    %c1_231 = arith.constant 1 : index
    %c0_232 = arith.constant 0 : index
    %c19_233 = arith.constant 19 : index
    %200 = vector.load %arg7[%c0_230, %c1_231, %c0_232, %c19_233] : memref<1x4x16x90xf32, #tpu.memory_space<vmem>>, vector<1x1x16x63xf32>
    %201 = vector.shape_cast %200 : vector<1x1x16x63xf32> to vector<16x63xf32>
    %202 = tpu.concatenate %191, %193, %195, %197, %199, %201 in 0 : vector<16x63xf32>, vector<16x63xf32>, vector<16x63xf32>, vector<16x63xf32>, vector<16x63xf32>, vector<16x63xf32> -> vector<96x63xf32>
    %cst_234 = arith.constant dense<0.000000e+00> : vector<32x63xf32>
    %203 = tpu.matmul %141, %202, %cst_234 {dimension_numbers = #tpu.dot_dimension_numbers<[1], [0], [0], [1], [0, 0, 1, 1], [], []>} : vector<32x96xf32>, vector<96x63xf32>, vector<32x63xf32> -> vector<32x63xf32>
    %204 = arith.addf %189, %203 : vector<32x63xf32>
    %c0_235 = arith.constant 0 : index
    %c2_236 = arith.constant 2 : index
    %c0_237 = arith.constant 0 : index
    %c0_238 = arith.constant 0 : index
    %205 = vector.load %arg7[%c0_235, %c2_236, %c0_237, %c0_238] : memref<1x4x16x90xf32, #tpu.memory_space<vmem>>, vector<1x1x16x63xf32>
    %206 = vector.shape_cast %205 : vector<1x1x16x63xf32> to vector<16x63xf32>
    %c0_239 = arith.constant 0 : index
    %c2_240 = arith.constant 2 : index
    %c0_241 = arith.constant 0 : index
    %c1_242 = arith.constant 1 : index
    %207 = vector.load %arg7[%c0_239, %c2_240, %c0_241, %c1_242] : memref<1x4x16x90xf32, #tpu.memory_space<vmem>>, vector<1x1x16x63xf32>
    %208 = vector.shape_cast %207 : vector<1x1x16x63xf32> to vector<16x63xf32>
    %c0_243 = arith.constant 0 : index
    %c2_244 = arith.constant 2 : index
    %c0_245 = arith.constant 0 : index
    %c2_246 = arith.constant 2 : index
    %209 = vector.load %arg7[%c0_243, %c2_244, %c0_245, %c2_246] : memref<1x4x16x90xf32, #tpu.memory_space<vmem>>, vector<1x1x16x63xf32>
    %210 = vector.shape_cast %209 : vector<1x1x16x63xf32> to vector<16x63xf32>
    %c0_247 = arith.constant 0 : index
    %c2_248 = arith.constant 2 : index
    %c0_249 = arith.constant 0 : index
    %c9_250 = arith.constant 9 : index
    %211 = vector.load %arg7[%c0_247, %c2_248, %c0_249, %c9_250] : memref<1x4x16x90xf32, #tpu.memory_space<vmem>>, vector<1x1x16x63xf32>
    %212 = vector.shape_cast %211 : vector<1x1x16x63xf32> to vector<16x63xf32>
    %c0_251 = arith.constant 0 : index
    %c2_252 = arith.constant 2 : index
    %c0_253 = arith.constant 0 : index
    %c10_254 = arith.constant 10 : index
    %213 = vector.load %arg7[%c0_251, %c2_252, %c0_253, %c10_254] : memref<1x4x16x90xf32, #tpu.memory_space<vmem>>, vector<1x1x16x63xf32>
    %214 = vector.shape_cast %213 : vector<1x1x16x63xf32> to vector<16x63xf32>
    %c0_255 = arith.constant 0 : index
    %c2_256 = arith.constant 2 : index
    %c0_257 = arith.constant 0 : index
    %c11_258 = arith.constant 11 : index
    %215 = vector.load %arg7[%c0_255, %c2_256, %c0_257, %c11_258] : memref<1x4x16x90xf32, #tpu.memory_space<vmem>>, vector<1x1x16x63xf32>
    %216 = vector.shape_cast %215 : vector<1x1x16x63xf32> to vector<16x63xf32>
    %217 = tpu.concatenate %206, %208, %210, %212, %214, %216 in 0 : vector<16x63xf32>, vector<16x63xf32>, vector<16x63xf32>, vector<16x63xf32>, vector<16x63xf32>, vector<16x63xf32> -> vector<96x63xf32>
    %cst_259 = arith.constant dense<0.000000e+00> : vector<32x63xf32>
    %218 = tpu.matmul %143, %217, %cst_259 {dimension_numbers = #tpu.dot_dimension_numbers<[1], [0], [0], [1], [0, 0, 1, 1], [], []>} : vector<32x96xf32>, vector<96x63xf32>, vector<32x63xf32> -> vector<32x63xf32>
    %219 = arith.addf %204, %218 : vector<32x63xf32>
    %c0_260 = arith.constant 0 : index
    %c3_261 = arith.constant 3 : index
    %c0_262 = arith.constant 0 : index
    %c0_263 = arith.constant 0 : index
    %220 = vector.load %arg7[%c0_260, %c3_261, %c0_262, %c0_263] : memref<1x4x16x90xf32, #tpu.memory_space<vmem>>, vector<1x1x16x63xf32>
    %221 = vector.shape_cast %220 : vector<1x1x16x63xf32> to vector<16x63xf32>
    %c0_264 = arith.constant 0 : index
    %c3_265 = arith.constant 3 : index
    %c0_266 = arith.constant 0 : index
    %c1_267 = arith.constant 1 : index
    %222 = vector.load %arg7[%c0_264, %c3_265, %c0_266, %c1_267] : memref<1x4x16x90xf32, #tpu.memory_space<vmem>>, vector<1x1x16x63xf32>
    %223 = vector.shape_cast %222 : vector<1x1x16x63xf32> to vector<16x63xf32>
    %c0_268 = arith.constant 0 : index
    %c3_269 = arith.constant 3 : index
    %c0_270 = arith.constant 0 : index
    %c9_271 = arith.constant 9 : index
    %224 = vector.load %arg7[%c0_268, %c3_269, %c0_270, %c9_271] : memref<1x4x16x90xf32, #tpu.memory_space<vmem>>, vector<1x1x16x63xf32>
    %225 = vector.shape_cast %224 : vector<1x1x16x63xf32> to vector<16x63xf32>
    %c0_272 = arith.constant 0 : index
    %c3_273 = arith.constant 3 : index
    %c0_274 = arith.constant 0 : index
    %c10_275 = arith.constant 10 : index
    %226 = vector.load %arg7[%c0_272, %c3_273, %c0_274, %c10_275] : memref<1x4x16x90xf32, #tpu.memory_space<vmem>>, vector<1x1x16x63xf32>
    %227 = vector.shape_cast %226 : vector<1x1x16x63xf32> to vector<16x63xf32>
    %228 = tpu.concatenate %221, %223, %225, %227 in 0 : vector<16x63xf32>, vector<16x63xf32>, vector<16x63xf32>, vector<16x63xf32> -> vector<64x63xf32>
    %cst_276 = arith.constant dense<0.000000e+00> : vector<32x63xf32>
    %229 = tpu.matmul %145, %228, %cst_276 {dimension_numbers = #tpu.dot_dimension_numbers<[1], [0], [0], [1], [0, 0, 1, 1], [], []>} : vector<32x64xf32>, vector<64x63xf32>, vector<32x63xf32> -> vector<32x63xf32>
    %230 = arith.addf %219, %229 : vector<32x63xf32>
    %231 = tpu.concatenate %173, %175, %179, %181, %185, %187 in 0 : vector<16x63xf32>, vector<16x63xf32>, vector<16x63xf32>, vector<16x63xf32>, vector<16x63xf32>, vector<16x63xf32> -> vector<96x63xf32>
    %cst_277 = arith.constant dense<0.000000e+00> : vector<32x63xf32>
    %232 = tpu.matmul %147, %231, %cst_277 {dimension_numbers = #tpu.dot_dimension_numbers<[1], [0], [0], [1], [0, 0, 1, 1], [], []>} : vector<32x96xf32>, vector<96x63xf32>, vector<32x63xf32> -> vector<32x63xf32>
    %c0_278 = arith.constant 0 : index
    %c1_279 = arith.constant 1 : index
    %c0_280 = arith.constant 0 : index
    %c2_281 = arith.constant 2 : index
    %233 = vector.load %arg7[%c0_278, %c1_279, %c0_280, %c2_281] : memref<1x4x16x90xf32, #tpu.memory_space<vmem>>, vector<1x1x16x63xf32>
    %234 = vector.shape_cast %233 : vector<1x1x16x63xf32> to vector<16x63xf32>
    %c0_282 = arith.constant 0 : index
    %c1_283 = arith.constant 1 : index
    %c0_284 = arith.constant 0 : index
    %c11_285 = arith.constant 11 : index
    %235 = vector.load %arg7[%c0_282, %c1_283, %c0_284, %c11_285] : memref<1x4x16x90xf32, #tpu.memory_space<vmem>>, vector<1x1x16x63xf32>
    %236 = vector.shape_cast %235 : vector<1x1x16x63xf32> to vector<16x63xf32>
    %c0_286 = arith.constant 0 : index
    %c1_287 = arith.constant 1 : index
    %c0_288 = arith.constant 0 : index
    %c20_289 = arith.constant 20 : index
    %237 = vector.load %arg7[%c0_286, %c1_287, %c0_288, %c20_289] : memref<1x4x16x90xf32, #tpu.memory_space<vmem>>, vector<1x1x16x63xf32>
    %238 = vector.shape_cast %237 : vector<1x1x16x63xf32> to vector<16x63xf32>
    %239 = tpu.concatenate %191, %193, %234, %195, %197, %236, %199, %201, %238 in 0 : vector<16x63xf32>, vector<16x63xf32>, vector<16x63xf32>, vector<16x63xf32>, vector<16x63xf32>, vector<16x63xf32>, vector<16x63xf32>, vector<16x63xf32>, vector<16x63xf32> -> vector<144x63xf32>
    %cst_290 = arith.constant dense<0.000000e+00> : vector<32x63xf32>
    %240 = tpu.matmul %149, %239, %cst_290 {dimension_numbers = #tpu.dot_dimension_numbers<[1], [0], [0], [1], [0, 0, 1, 1], [], []>} : vector<32x144xf32>, vector<144x63xf32>, vector<32x63xf32> -> vector<32x63xf32>
    %241 = arith.addf %232, %240 : vector<32x63xf32>
    %242 = tpu.concatenate %208, %210, %214, %216 in 0 : vector<16x63xf32>, vector<16x63xf32>, vector<16x63xf32>, vector<16x63xf32> -> vector<64x63xf32>
    %cst_291 = arith.constant dense<0.000000e+00> : vector<32x63xf32>
    %243 = tpu.matmul %151, %242, %cst_291 {dimension_numbers = #tpu.dot_dimension_numbers<[1], [0], [0], [1], [0, 0, 1, 1], [], []>} : vector<32x64xf32>, vector<64x63xf32>, vector<32x63xf32> -> vector<32x63xf32>
    %244 = arith.addf %241, %243 : vector<32x63xf32>
    %c0_292 = arith.constant 0 : index
    %c3_293 = arith.constant 3 : index
    %c0_294 = arith.constant 0 : index
    %c2_295 = arith.constant 2 : index
    %245 = vector.load %arg7[%c0_292, %c3_293, %c0_294, %c2_295] : memref<1x4x16x90xf32, #tpu.memory_space<vmem>>, vector<1x1x16x63xf32>
    %246 = vector.shape_cast %245 : vector<1x1x16x63xf32> to vector<16x63xf32>
    %c0_296 = arith.constant 0 : index
    %c3_297 = arith.constant 3 : index
    %c0_298 = arith.constant 0 : index
    %c11_299 = arith.constant 11 : index
    %247 = vector.load %arg7[%c0_296, %c3_297, %c0_298, %c11_299] : memref<1x4x16x90xf32, #tpu.memory_space<vmem>>, vector<1x1x16x63xf32>
    %248 = vector.shape_cast %247 : vector<1x1x16x63xf32> to vector<16x63xf32>
    %249 = tpu.concatenate %221, %223, %246, %225, %227, %248 in 0 : vector<16x63xf32>, vector<16x63xf32>, vector<16x63xf32>, vector<16x63xf32>, vector<16x63xf32>, vector<16x63xf32> -> vector<96x63xf32>
    %cst_300 = arith.constant dense<0.000000e+00> : vector<32x63xf32>
    %250 = tpu.matmul %153, %249, %cst_300 {dimension_numbers = #tpu.dot_dimension_numbers<[1], [0], [0], [1], [0, 0, 1, 1], [], []>} : vector<32x96xf32>, vector<96x63xf32>, vector<32x63xf32> -> vector<32x63xf32>
    %251 = arith.addf %244, %250 : vector<32x63xf32>
    %252 = arith.maximumf %230, %251 : vector<32x63xf32>
    %253 = tpu.concatenate %177, %179, %181, %183, %185, %187 in 0 : vector<16x63xf32>, vector<16x63xf32>, vector<16x63xf32>, vector<16x63xf32>, vector<16x63xf32>, vector<16x63xf32> -> vector<96x63xf32>
    %cst_301 = arith.constant dense<0.000000e+00> : vector<32x63xf32>
    %254 = tpu.matmul %155, %253, %cst_301 {dimension_numbers = #tpu.dot_dimension_numbers<[1], [0], [0], [1], [0, 0, 1, 1], [], []>} : vector<32x96xf32>, vector<96x63xf32>, vector<32x63xf32> -> vector<32x63xf32>
    %255 = tpu.concatenate %195, %197, %199, %201 in 0 : vector<16x63xf32>, vector<16x63xf32>, vector<16x63xf32>, vector<16x63xf32> -> vector<64x63xf32>
    %cst_302 = arith.constant dense<0.000000e+00> : vector<32x63xf32>
    %256 = tpu.matmul %157, %255, %cst_302 {dimension_numbers = #tpu.dot_dimension_numbers<[1], [0], [0], [1], [0, 0, 1, 1], [], []>} : vector<32x64xf32>, vector<64x63xf32>, vector<32x63xf32> -> vector<32x63xf32>
    %257 = arith.addf %254, %256 : vector<32x63xf32>
    %c0_303 = arith.constant 0 : index
    %c2_304 = arith.constant 2 : index
    %c0_305 = arith.constant 0 : index
    %c18_306 = arith.constant 18 : index
    %258 = vector.load %arg7[%c0_303, %c2_304, %c0_305, %c18_306] : memref<1x4x16x90xf32, #tpu.memory_space<vmem>>, vector<1x1x16x63xf32>
    %259 = vector.shape_cast %258 : vector<1x1x16x63xf32> to vector<16x63xf32>
    %c0_307 = arith.constant 0 : index
    %c2_308 = arith.constant 2 : index
    %c0_309 = arith.constant 0 : index
    %c19_310 = arith.constant 19 : index
    %260 = vector.load %arg7[%c0_307, %c2_308, %c0_309, %c19_310] : memref<1x4x16x90xf32, #tpu.memory_space<vmem>>, vector<1x1x16x63xf32>
    %261 = vector.shape_cast %260 : vector<1x1x16x63xf32> to vector<16x63xf32>
    %c0_311 = arith.constant 0 : index
    %c2_312 = arith.constant 2 : index
    %c0_313 = arith.constant 0 : index
    %c20_314 = arith.constant 20 : index
    %262 = vector.load %arg7[%c0_311, %c2_312, %c0_313, %c20_314] : memref<1x4x16x90xf32, #tpu.memory_space<vmem>>, vector<1x1x16x63xf32>
    %263 = vector.shape_cast %262 : vector<1x1x16x63xf32> to vector<16x63xf32>
    %264 = tpu.concatenate %206, %208, %210, %212, %214, %216, %259, %261, %263 in 0 : vector<16x63xf32>, vector<16x63xf32>, vector<16x63xf32>, vector<16x63xf32>, vector<16x63xf32>, vector<16x63xf32>, vector<16x63xf32>, vector<16x63xf32>, vector<16x63xf32> -> vector<144x63xf32>
    %cst_315 = arith.constant dense<0.000000e+00> : vector<32x63xf32>
    %265 = tpu.matmul %159, %264, %cst_315 {dimension_numbers = #tpu.dot_dimension_numbers<[1], [0], [0], [1], [0, 0, 1, 1], [], []>} : vector<32x144xf32>, vector<144x63xf32>, vector<32x63xf32> -> vector<32x63xf32>
    %266 = arith.addf %257, %265 : vector<32x63xf32>
    %c0_316 = arith.constant 0 : index
    %c3_317 = arith.constant 3 : index
    %c0_318 = arith.constant 0 : index
    %c18_319 = arith.constant 18 : index
    %267 = vector.load %arg7[%c0_316, %c3_317, %c0_318, %c18_319] : memref<1x4x16x90xf32, #tpu.memory_space<vmem>>, vector<1x1x16x63xf32>
    %268 = vector.shape_cast %267 : vector<1x1x16x63xf32> to vector<16x63xf32>
    %c0_320 = arith.constant 0 : index
    %c3_321 = arith.constant 3 : index
    %c0_322 = arith.constant 0 : index
    %c19_323 = arith.constant 19 : index
    %269 = vector.load %arg7[%c0_320, %c3_321, %c0_322, %c19_323] : memref<1x4x16x90xf32, #tpu.memory_space<vmem>>, vector<1x1x16x63xf32>
    %270 = vector.shape_cast %269 : vector<1x1x16x63xf32> to vector<16x63xf32>
    %271 = tpu.concatenate %221, %223, %225, %227, %268, %270 in 0 : vector<16x63xf32>, vector<16x63xf32>, vector<16x63xf32>, vector<16x63xf32>, vector<16x63xf32>, vector<16x63xf32> -> vector<96x63xf32>
    %cst_324 = arith.constant dense<0.000000e+00> : vector<32x63xf32>
    %272 = tpu.matmul %161, %271, %cst_324 {dimension_numbers = #tpu.dot_dimension_numbers<[1], [0], [0], [1], [0, 0, 1, 1], [], []>} : vector<32x96xf32>, vector<96x63xf32>, vector<32x63xf32> -> vector<32x63xf32>
    %273 = arith.addf %266, %272 : vector<32x63xf32>
    %274 = arith.maximumf %252, %273 : vector<32x63xf32>
    %275 = tpu.concatenate %179, %181, %185, %187 in 0 : vector<16x63xf32>, vector<16x63xf32>, vector<16x63xf32>, vector<16x63xf32> -> vector<64x63xf32>
    %cst_325 = arith.constant dense<0.000000e+00> : vector<32x63xf32>
    %276 = tpu.matmul %163, %275, %cst_325 {dimension_numbers = #tpu.dot_dimension_numbers<[1], [0], [0], [1], [0, 0, 1, 1], [], []>} : vector<32x64xf32>, vector<64x63xf32>, vector<32x63xf32> -> vector<32x63xf32>
    %277 = tpu.concatenate %195, %197, %236, %199, %201, %238 in 0 : vector<16x63xf32>, vector<16x63xf32>, vector<16x63xf32>, vector<16x63xf32>, vector<16x63xf32>, vector<16x63xf32> -> vector<96x63xf32>
    %cst_326 = arith.constant dense<0.000000e+00> : vector<32x63xf32>
    %278 = tpu.matmul %165, %277, %cst_326 {dimension_numbers = #tpu.dot_dimension_numbers<[1], [0], [0], [1], [0, 0, 1, 1], [], []>} : vector<32x96xf32>, vector<96x63xf32>, vector<32x63xf32> -> vector<32x63xf32>
    %279 = arith.addf %276, %278 : vector<32x63xf32>
    %280 = tpu.concatenate %208, %210, %214, %216, %261, %263 in 0 : vector<16x63xf32>, vector<16x63xf32>, vector<16x63xf32>, vector<16x63xf32>, vector<16x63xf32>, vector<16x63xf32> -> vector<96x63xf32>
    %cst_327 = arith.constant dense<0.000000e+00> : vector<32x63xf32>
    %281 = tpu.matmul %167, %280, %cst_327 {dimension_numbers = #tpu.dot_dimension_numbers<[1], [0], [0], [1], [0, 0, 1, 1], [], []>} : vector<32x96xf32>, vector<96x63xf32>, vector<32x63xf32> -> vector<32x63xf32>
    %282 = arith.addf %279, %281 : vector<32x63xf32>
    %c0_328 = arith.constant 0 : index
    %c3_329 = arith.constant 3 : index
    %c0_330 = arith.constant 0 : index
    %c20_331 = arith.constant 20 : index
    %283 = vector.load %arg7[%c0_328, %c3_329, %c0_330, %c20_331] : memref<1x4x16x90xf32, #tpu.memory_space<vmem>>, vector<1x1x16x63xf32>
    %284 = vector.shape_cast %283 : vector<1x1x16x63xf32> to vector<16x63xf32>
    %285 = tpu.concatenate %221, %223, %246, %225, %227, %248, %268, %270, %284 in 0 : vector<16x63xf32>, vector<16x63xf32>, vector<16x63xf32>, vector<16x63xf32>, vector<16x63xf32>, vector<16x63xf32>, vector<16x63xf32>, vector<16x63xf32>, vector<16x63xf32> -> vector<144x63xf32>
    %cst_332 = arith.constant dense<0.000000e+00> : vector<32x63xf32>
    %286 = tpu.matmul %169, %285, %cst_332 {dimension_numbers = #tpu.dot_dimension_numbers<[1], [0], [0], [1], [0, 0, 1, 1], [], []>} : vector<32x144xf32>, vector<144x63xf32>, vector<32x63xf32> -> vector<32x63xf32>
    %287 = arith.addf %282, %286 : vector<32x63xf32>
    %288 = arith.maximumf %274, %287 : vector<32x63xf32>
    %c0_333 = arith.constant 0 : index
    %c0_334 = arith.constant 0 : index
    %289 = vector.load %arg5[%c0_333, %c0_334] : memref<32x1xf32, #tpu.memory_space<vmem>>, vector<32x1xf32>
    %290 = vector.broadcast %289 : vector<32x1xf32> to vector<32x63xf32>
    %291 = arith.addf %288, %290 : vector<32x63xf32>
    %cst_335 = arith.constant 0.000000e+00 : f32
    %292 = vector.broadcast %cst_335 : f32 to vector<32x63xf32>
    %293 = arith.maximumf %291, %292 : vector<32x63xf32>
    %c0_336 = arith.constant 0 : index
    %c0_337 = arith.constant 0 : index
    %c0_338 = arith.constant 0 : index
    %294 = vector.load %arg6[%c0_336, %c0_337, %c0_338] : memref<1x32x63xf32, #tpu.memory_space<vmem>>, vector<1x32x63xf32>
    %295 = vector.shape_cast %294 : vector<1x32x63xf32> to vector<32x63xf32>
    %296 = vector.shape_cast %293 : vector<32x63xf32> to vector<1x32x63xf32>
    tpu.vector_store %arg6[%c0_336, %c0_337, %c0_338], %296 {strides = array<i32>} : memref<1x32x63xf32, #tpu.memory_space<vmem>>, vector<1x32x63xf32>,
    return
  }
  func.func @transform_0(%arg0: i32) -> (i32, i32, i32, i32) {
    %c0_i32 = arith.constant 0 : i32
    %c0_i32_0 = arith.constant 0 : i32
    %c0_i32_1 = arith.constant 0 : i32
    %c0_i32_2 = arith.constant 0 : i32
    return %arg0, %c0_i32, %c0_i32_0, %c0_i32_1 : i32, i32, i32, i32
  }
  func.func @transform_1(%arg0: i32) -> (i32, i32) {
    %c0_i32 = arith.constant 0 : i32
    %c0_i32_0 = arith.constant 0 : i32
    %c0_i32_1 = arith.constant 0 : i32
    return %c0_i32, %c0_i32_0 : i32, i32
  }
  func.func @transform_2(%arg0: i32) -> (i32, i32) {
    %c0_i32 = arith.constant 0 : i32
    %c0_i32_0 = arith.constant 0 : i32
    %c0_i32_1 = arith.constant 0 : i32
    return %c0_i32, %c0_i32_0 : i32, i32
  }
  func.func @transform_3(%arg0: i32) -> (i32, i32, i32) {
    %c0_i32 = arith.constant 0 : i32
    %c0_i32_0 = arith.constant 0 : i32
    %c0_i32_1 = arith.constant 0 : i32
    %c0_i32_2 = arith.constant 0 : i32
    return %c0_i32, %c0_i32_0, %c0_i32_1 : i32, i32, i32
  }
  func.func @transform_4(%arg0: i32) -> (i32, i32) {
    %c0_i32 = arith.constant 0 : i32
    %c0_i32_0 = arith.constant 0 : i32
    %c0_i32_1 = arith.constant 0 : i32
    return %c0_i32, %c0_i32_0 : i32, i32
  }
  func.func @transform_5(%arg0: i32) -> (i32, i32, i32) {
    %c0_i32 = arith.constant 0 : i32
    %c0_i32_0 = arith.constant 0 : i32
    %c0_i32_1 = arith.constant 0 : i32
    return %arg0, %c0_i32, %c0_i32_0 : i32, i32, i32
  }
}

module attributes {stable_mosaic.version = 11 : i64} {
  func.func @_linear_logsoftmax_kernel(%arg0: i32, %arg1: memref<8x2016xf32, #tpu.memory_space<vmem>>, %arg2: memref<2016x128xf32, #tpu.memory_space<vmem>>, %arg3: memref<1x128xf32, #tpu.memory_space<vmem>>, %arg4: memref<8x128xf32, #tpu.memory_space<vmem>>) attributes {dimension_semantics = [#tpu.dimension_semantics<parallel>], iteration_bounds = array<i64: 1>, scalar_prefetch = 0 : i64, scratch_operands = 0 : i64, tpu.core_type = #tpu.core_type<tc>, window_params = [{transform_indices = @transform_0, window_bounds = array<i64: 8, 2016>}, {pipeline_mode = #tpu.pipeline_mode<synchronous>, transform_indices = @transform_1, window_bounds = array<i64: 2016, 128>}, {pipeline_mode = #tpu.pipeline_mode<synchronous>, transform_indices = @transform_2, window_bounds = array<i64: 1, 128>}, {transform_indices = @transform_3, window_bounds = array<i64: 8, 128>}]} {
    %c0 = arith.constant 0 : index
    %c0_0 = arith.constant 0 : index
    %0 = vector.load %arg1[%c0, %c0_0] : memref<8x2016xf32, #tpu.memory_space<vmem>>, vector<8x2016xf32>
    %c0_1 = arith.constant 0 : index
    %c0_2 = arith.constant 0 : index
    %1 = vector.load %arg2[%c0_1, %c0_2] : memref<2016x128xf32, #tpu.memory_space<vmem>>, vector<2016x128xf32>
    %cst = arith.constant dense<0.000000e+00> : vector<8x128xf32>
    %2 = tpu.matmul %0, %1, %cst {dimension_numbers = #tpu.dot_dimension_numbers<[1], [0], [0], [1], [0, 0, 1, 1], [], []>} : vector<8x2016xf32>, vector<2016x128xf32>, vector<8x128xf32> -> vector<8x128xf32>
    %c0_3 = arith.constant 0 : index
    %c0_4 = arith.constant 0 : index
    %3 = vector.load %arg3[%c0_3, %c0_4] : memref<1x128xf32, #tpu.memory_space<vmem>>, vector<1x128xf32>
    %4 = vector.broadcast %3 : vector<1x128xf32> to vector<8x128xf32>
    %5 = arith.addf %2, %4 : vector<8x128xf32>
    %6 = tpu.iota {dimensions = array<i32: 1>} : vector<8x128xi32>
    %c10_i32 = arith.constant 10 : i32
    %7 = vector.broadcast %c10_i32 : i32 to vector<8x128xi32>
    %8 = arith.cmpi slt, %6, %7 : vector<8x128xi32>
    %cst_5 = arith.constant -1.000000e+30 : f32
    %9 = vector.broadcast %cst_5 : f32 to vector<8x128xf32>
    %10 = arith.select %8, %5, %9 : vector<8x128xi1>, vector<8x128xf32>
    %cst_6 = arith.constant dense<0xFF800000> : vector<8xf32>
    %11 = vector.multi_reduction <maximumf>, %10, %cst_6 [1] : vector<8x128xf32> to vector<8xf32>
    %12 = vector.shape_cast %11 : vector<8xf32> to vector<8x1xf32>
    %13 = vector.broadcast %12 : vector<8x1xf32> to vector<8x128xf32>
    %14 = arith.subf %10, %13 : vector<8x128xf32>
    %15 = math.exp %14 : vector<8x128xf32>
    %cst_7 = arith.constant dense<0.000000e+00> : vector<8xf32>
    %16 = vector.multi_reduction <add>, %15, %cst_7 [1] : vector<8x128xf32> to vector<8xf32>
    %17 = vector.shape_cast %16 : vector<8xf32> to vector<8x1xf32>
    %18 = math.log %17 : vector<8x1xf32>
    %19 = vector.broadcast %18 : vector<8x1xf32> to vector<8x128xf32>
    %20 = arith.subf %14, %19 : vector<8x128xf32>
    %c0_8 = arith.constant 0 : index
    %c0_9 = arith.constant 0 : index
    %21 = vector.load %arg4[%c0_8, %c0_9] : memref<8x128xf32, #tpu.memory_space<vmem>>, vector<8x128xf32>
    tpu.vector_store %arg4[%c0_8, %c0_9], %20 {strides = array<i32>} : memref<8x128xf32, #tpu.memory_space<vmem>>, vector<8x128xf32>,
    return
  }
  func.func @transform_0(%arg0: i32) -> (i32, i32) {
    %c0_i32 = arith.constant 0 : i32
    %c0_i32_0 = arith.constant 0 : i32
    return %arg0, %c0_i32 : i32, i32
  }
  func.func @transform_1(%arg0: i32) -> (i32, i32) {
    %c0_i32 = arith.constant 0 : i32
    %c0_i32_0 = arith.constant 0 : i32
    %c0_i32_1 = arith.constant 0 : i32
    return %c0_i32, %c0_i32_0 : i32, i32
  }
  func.func @transform_2(%arg0: i32) -> (i32, i32) {
    %c0_i32 = arith.constant 0 : i32
    %c0_i32_0 = arith.constant 0 : i32
    %c0_i32_1 = arith.constant 0 : i32
    return %c0_i32, %c0_i32_0 : i32, i32
  }
  func.func @transform_3(%arg0: i32) -> (i32, i32) {
    %c0_i32 = arith.constant 0 : i32
    %c0_i32_0 = arith.constant 0 : i32
    return %arg0, %c0_i32 : i32, i32
  }
}

</mosaic_0001>

<llo_original>
// kernel: forward.3
$region0: #{forward.3}
  #allocation0 [shape = 'u32[]', space=smem, size = 0x4, offset = 0x4, fixed_abs, tag = 'smem constant byte address 0x4 - core index']
  #allocation1 [shape = 'u32[144,128]{1,0:T(1,128)}', space=vmem, size = 0x12000, scoped, tag = 'internal scratch']
  %s0 = inlined_call_operand.vmem [shape: f32[8,2016], index: 0, kind: input, shape index: {}]
  %s1 = inlined_call_operand.vmem [shape: f32[2016,128], index: 1, kind: input, shape index: {}]
  %s2 = inlined_call_operand.vmem [shape: f32[1,128], index: 2, kind: input, shape index: {}]
  %s3 = inlined_call_operand.vmem [shape: f32[8,128], index: 3, kind: output, shape index: {}]
  %s4 = sld [smem:[#allocation0]]
  $region22: #{forward.3} parent=0
    _
  %s6 = ssub.s32 1, %s4
  %s7 = scalar_select 0, %s6, %s4
  // Predicated region
  $region2: #{forward.3} parent=0 // pred_check
    _
  $region3: #{forward.3} parent=0 // pred_check_branch
    %9 = sbr.rel (0) target = $region5
  $region4: #{forward.3} parent=0 // pred_region
    _
  $region5: #{forward.3} parent=0 // pred_fallthru
    _
  // Predicated region
  $region6: #{forward.3} parent=0 // pred_check
    _
  $region7: #{forward.3} parent=0 // pred_check_branch
    %11 = sbr.rel (0) target = $region9
  $region8: #{forward.3} parent=0 // pred_region
    _
  $region9: #{forward.3} parent=0 // pred_fallthru
    _
  // Predicated region
  $region10: #{forward.3} parent=0 // pred_check
    _
  $region11: #{forward.3} parent=0 // pred_check_branch
    %13 = sbr.rel (0) target = $region13
  $region12: #{forward.3} parent=0 // pred_region
    _
  $region13: #{forward.3} parent=0 // pred_fallthru
    _
  %v14 = vld [vmem:[%s0] sm:$0xff]
  %v15 = vld [vmem:[%s0 + $0x8] sm:$0xff]
  %v16 = vld [vmem:[%s0 + $0x10] sm:$0xff]
  %v17 = vld [vmem:[%s0 + $0x18] sm:$0xff]
  %v18 = vld [vmem:[%s0 + $0x20] sm:$0xff]
  %v19 = vld [vmem:[%s0 + $0x28] sm:$0xff]
  %v20 = vld [vmem:[%s0 + $0x30] sm:$0xff]
  %v21 = vld [vmem:[%s0 + $0x38] sm:$0xff]
  %v22 = vld [vmem:[%s0 + $0x40] sm:$0xff]
  %v23 = vld [vmem:[%s0 + $0x48] sm:$0xff]
  %v24 = vld [vmem:[%s0 + $0x50] sm:$0xff]
  %v25 = vld [vmem:[%s0 + $0x58] sm:$0xff]
  %v26 = vld [vmem:[%s0 + $0x60] sm:$0xff]
  %v27 = vld [vmem:[%s0 + $0x68] sm:$0xff]
  %v28 = vld [vmem:[%s0 + $0x70] sm:$0xff]
  %v29 = vld [vmem:[%s0 + $0x78] sm:$0xff]
  %v30 = vld [vmem:[%s1] sm:$0xff]
  %v31 = vld [vmem:[%s1 + $0x8] sm:$0xff]
  %v32 = vld [vmem:[%s1 + $0x10] sm:$0xff]
  %v33 = vld [vmem:[%s1 + $0x18] sm:$0xff]
  %v34 = vld [vmem:[%s1 + $0x20] sm:$0xff]
  %v35 = vld [vmem:[%s1 + $0x28] sm:$0xff]
  %v36 = vld [vmem:[%s1 + $0x30] sm:$0xff]
  %v37 = vld [vmem:[%s1 + $0x38] sm:$0xff]
  %v38 = vld [vmem:[%s1 + $0x40] sm:$0xff]
  %v39 = vld [vmem:[%s1 + $0x48] sm:$0xff]
  %v40 = vld [vmem:[%s1 + $0x50] sm:$0xff]
  %v41 = vld [vmem:[%s1 + $0x58] sm:$0xff]
  %v42 = vld [vmem:[%s1 + $0x60] sm:$0xff]
  %v43 = vld [vmem:[%s1 + $0x68] sm:$0xff]
  %v44 = vld [vmem:[%s1 + $0x70] sm:$0xff]
  %v45 = vld [vmem:[%s1 + $0x78] sm:$0xff]
  %v46 = vld [vmem:[%s1 + $0x80] sm:$0xff]
  %v47 = vld [vmem:[%s1 + $0x88] sm:$0xff]
  %v48 = vld [vmem:[%s1 + $0x90] sm:$0xff]
  %v49 = vld [vmem:[%s1 + $0x98] sm:$0xff]
  %v50 = vld [vmem:[%s1 + $0xa0] sm:$0xff]
  %v51 = vld [vmem:[%s1 + $0xa8] sm:$0xff]
  %v52 = vld [vmem:[%s1 + $0xb0] sm:$0xff]
  %v53 = vld [vmem:[%s1 + $0xb8] sm:$0xff]
  %v54 = vld [vmem:[%s1 + $0xc0] sm:$0xff]
  %v55 = vld [vmem:[%s1 + $0xc8] sm:$0xff]
  %v56 = vld [vmem:[%s1 + $0xd0] sm:$0xff]
  %v57 = vld [vmem:[%s1 + $0xd8] sm:$0xff]
  %v58 = vld [vmem:[%s1 + $0xe0] sm:$0xff]
  %v59 = vld [vmem:[%s1 + $0xe8] sm:$0xff]
  %v60 = vld [vmem:[%s1 + $0xf0] sm:$0xff]
  %v61 = vld [vmem:[%s1 + $0xf8] sm:$0xff]
  %v62 = vld [vmem:[%s1 + $0x100] sm:$0xff]
  %v63 = vld [vmem:[%s1 + $0x108] sm:$0xff]
  %v64 = vld [vmem:[%s1 + $0x110] sm:$0xff]
  %v65 = vld [vmem:[%s1 + $0x118] sm:$0xff]
  %v66 = vld [vmem:[%s1 + $0x120] sm:$0xff]
  %v67 = vld [vmem:[%s1 + $0x128] sm:$0xff]
  %v68 = vld [vmem:[%s1 + $0x130] sm:$0xff]
  %v69 = vld [vmem:[%s1 + $0x138] sm:$0xff]
  %v70 = vld [vmem:[%s1 + $0x140] sm:$0xff]
  %v71 = vld [vmem:[%s1 + $0x148] sm:$0xff]
  %v72 = vld [vmem:[%s1 + $0x150] sm:$0xff]
  %v73 = vld [vmem:[%s1 + $0x158] sm:$0xff]
  %v74 = vld [vmem:[%s1 + $0x160] sm:$0xff]
  %v75 = vld [vmem:[%s1 + $0x168] sm:$0xff]
  %v76 = vld [vmem:[%s1 + $0x170] sm:$0xff]
  %v77 = vld [vmem:[%s1 + $0x178] sm:$0xff]
  %v78 = vld [vmem:[%s1 + $0x180] sm:$0xff]
  %v79 = vld [vmem:[%s1 + $0x188] sm:$0xff]
  %v80 = vld [vmem:[%s1 + $0x190] sm:$0xff]
  %v81 = vld [vmem:[%s1 + $0x198] sm:$0xff]
  %v82 = vld [vmem:[%s1 + $0x1a0] sm:$0xff]
  %v83 = vld [vmem:[%s1 + $0x1a8] sm:$0xff]
  %v84 = vld [vmem:[%s1 + $0x1b0] sm:$0xff]
  %v85 = vld [vmem:[%s1 + $0x1b8] sm:$0xff]
  %v86 = vld [vmem:[%s1 + $0x1c0] sm:$0xff]
  %v87 = vld [vmem:[%s1 + $0x1c8] sm:$0xff]
  %v88 = vld [vmem:[%s1 + $0x1d0] sm:$0xff]
  %v89 = vld [vmem:[%s1 + $0x1d8] sm:$0xff]
  %v90 = vld [vmem:[%s1 + $0x1e0] sm:$0xff]
  %v91 = vld [vmem:[%s1 + $0x1e8] sm:$0xff]
  %v92 = vld [vmem:[%s1 + $0x1f0] sm:$0xff]
  %v93 = vld [vmem:[%s1 + $0x1f8] sm:$0xff]
  %v94 = vld [vmem:[%s1 + $0x200] sm:$0xff]
  %v95 = vld [vmem:[%s1 + $0x208] sm:$0xff]
  %v96 = vld [vmem:[%s1 + $0x210] sm:$0xff]
  %v97 = vld [vmem:[%s1 + $0x218] sm:$0xff]
  %v98 = vld [vmem:[%s1 + $0x220] sm:$0xff]
  %v99 = vld [vmem:[%s1 + $0x228] sm:$0xff]
  %v100 = vld [vmem:[%s1 + $0x230] sm:$0xff]
  %v101 = vld [vmem:[%s1 + $0x238] sm:$0xff]
  %v102 = vld [vmem:[%s1 + $0x240] sm:$0xff]
  %v103 = vld [vmem:[%s1 + $0x248] sm:$0xff]
  %v104 = vld [vmem:[%s1 + $0x250] sm:$0xff]
  %v105 = vld [vmem:[%s1 + $0x258] sm:$0xff]
  %v106 = vld [vmem:[%s1 + $0x260] sm:$0xff]
  %v107 = vld [vmem:[%s1 + $0x268] sm:$0xff]
  %v108 = vld [vmem:[%s1 + $0x270] sm:$0xff]
  %v109 = vld [vmem:[%s1 + $0x278] sm:$0xff]
  %v110 = vld [vmem:[%s1 + $0x280] sm:$0xff]
  %v111 = vld [vmem:[%s1 + $0x288] sm:$0xff]
  %v112 = vld [vmem:[%s1 + $0x290] sm:$0xff]
  %v113 = vld [vmem:[%s1 + $0x298] sm:$0xff]
  %v114 = vld [vmem:[%s1 + $0x2a0] sm:$0xff]
  %v115 = vld [vmem:[%s1 + $0x2a8] sm:$0xff]
  %v116 = vld [vmem:[%s1 + $0x2b0] sm:$0xff]
  %v117 = vld [vmem:[%s1 + $0x2b8] sm:$0xff]
  %v118 = vld [vmem:[%s1 + $0x2c0] sm:$0xff]
  %v119 = vld [vmem:[%s1 + $0x2c8] sm:$0xff]
  %v120 = vld [vmem:[%s1 + $0x2d0] sm:$0xff]
  %v121 = vld [vmem:[%s1 + $0x2d8] sm:$0xff]
  %v122 = vld [vmem:[%s1 + $0x2e0] sm:$0xff]
  %v123 = vld [vmem:[%s1 + $0x2e8] sm:$0xff]
  %v124 = vld [vmem:[%s1 + $0x2f0] sm:$0xff]
  %v125 = vld [vmem:[%s1 + $0x2f8] sm:$0xff]
  %v126 = vld [vmem:[%s1 + $0x300] sm:$0xff]
  %v127 = vld [vmem:[%s1 + $0x308] sm:$0xff]
  %v128 = vld [vmem:[%s1 + $0x310] sm:$0xff]
  %v129 = vld [vmem:[%s1 + $0x318] sm:$0xff]
  %v130 = vld [vmem:[%s1 + $0x320] sm:$0xff]
  %v131 = vld [vmem:[%s1 + $0x328] sm:$0xff]
  %v132 = vld [vmem:[%s1 + $0x330] sm:$0xff]
  %v133 = vld [vmem:[%s1 + $0x338] sm:$0xff]
  %v134 = vld [vmem:[%s1 + $0x340] sm:$0xff]
  %v135 = vld [vmem:[%s1 + $0x348] sm:$0xff]
  %v136 = vld [vmem:[%s1 + $0x350] sm:$0xff]
  %v137 = vld [vmem:[%s1 + $0x358] sm:$0xff]
  %v138 = vld [vmem:[%s1 + $0x360] sm:$0xff]
  %v139 = vld [vmem:[%s1 + $0x368] sm:$0xff]
  %v140 = vld [vmem:[%s1 + $0x370] sm:$0xff]
  %v141 = vld [vmem:[%s1 + $0x378] sm:$0xff]
  %v142 = vld [vmem:[%s1 + $0x380] sm:$0xff]
  %v143 = vld [vmem:[%s1 + $0x388] sm:$0xff]
  %v144 = vld [vmem:[%s1 + $0x390] sm:$0xff]
  %v145 = vld [vmem:[%s1 + $0x398] sm:$0xff]
  %v146 = vld [vmem:[%s1 + $0x3a0] sm:$0xff]
  %v147 = vld [vmem:[%s1 + $0x3a8] sm:$0xff]
  %v148 = vld [vmem:[%s1 + $0x3b0] sm:$0xff]
  %v149 = vld [vmem:[%s1 + $0x3b8] sm:$0xff]
  %v150 = vld [vmem:[%s1 + $0x3c0] sm:$0xff]
  %v151 = vld [vmem:[%s1 + $0x3c8] sm:$0xff]
  %v152 = vld [vmem:[%s1 + $0x3d0] sm:$0xff]
  %v153 = vld [vmem:[%s1 + $0x3d8] sm:$0xff]
  %v154 = vld [vmem:[%s1 + $0x3e0] sm:$0xff]
  %v155 = vld [vmem:[%s1 + $0x3e8] sm:$0xff]
  %v156 = vld [vmem:[%s1 + $0x3f0] sm:$0xff]
  %v157 = vld [vmem:[%s1 + $0x3f8] sm:$0xff]
  %v158 = vld [vmem:[%s1 + $0x400] sm:$0xff]
  %v159 = vld [vmem:[%s1 + $0x408] sm:$0xff]
  %v160 = vld [vmem:[%s1 + $0x410] sm:$0xff]
  %v161 = vld [vmem:[%s1 + $0x418] sm:$0xff]
  %v162 = vld [vmem:[%s1 + $0x420] sm:$0xff]
  %v163 = vld [vmem:[%s1 + $0x428] sm:$0xff]
  %v164 = vld [vmem:[%s1 + $0x430] sm:$0xff]
  %v165 = vld [vmem:[%s1 + $0x438] sm:$0xff]
  %v166 = vld [vmem:[%s1 + $0x440] sm:$0xff]
  %v167 = vld [vmem:[%s1 + $0x448] sm:$0xff]
  %v168 = vld [vmem:[%s1 + $0x450] sm:$0xff]
  %v169 = vld [vmem:[%s1 + $0x458] sm:$0xff]
  %v170 = vld [vmem:[%s1 + $0x460] sm:$0xff]
  %v171 = vld [vmem:[%s1 + $0x468] sm:$0xff]
  %v172 = vld [vmem:[%s1 + $0x470] sm:$0xff]
  %v173 = vld [vmem:[%s1 + $0x478] sm:$0xff]
  %v174 = vld [vmem:[%s1 + $0x480] sm:$0xff]
  %v175 = vld [vmem:[%s1 + $0x488] sm:$0xff]
  %v176 = vld [vmem:[%s1 + $0x490] sm:$0xff]
  %v177 = vld [vmem:[%s1 + $0x498] sm:$0xff]
  %v178 = vld [vmem:[%s1 + $0x4a0] sm:$0xff]
  %v179 = vld [vmem:[%s1 + $0x4a8] sm:$0xff]
  %v180 = vld [vmem:[%s1 + $0x4b0] sm:$0xff]
  %v181 = vld [vmem:[%s1 + $0x4b8] sm:$0xff]
  %v182 = vld [vmem:[%s1 + $0x4c0] sm:$0xff]
  %v183 = vld [vmem:[%s1 + $0x4c8] sm:$0xff]
  %v184 = vld [vmem:[%s1 + $0x4d0] sm:$0xff]
  %v185 = vld [vmem:[%s1 + $0x4d8] sm:$0xff]
  %v186 = vld [vmem:[%s1 + $0x4e0] sm:$0xff]
  %v187 = vld [vmem:[%s1 + $0x4e8] sm:$0xff]
  %v188 = vld [vmem:[%s1 + $0x4f0] sm:$0xff]
  %v189 = vld [vmem:[%s1 + $0x4f8] sm:$0xff]
  %v190 = vld [vmem:[%s1 + $0x500] sm:$0xff]
  %v191 = vld [vmem:[%s1 + $0x508] sm:$0xff]
  %v192 = vld [vmem:[%s1 + $0x510] sm:$0xff]
  %v193 = vld [vmem:[%s1 + $0x518] sm:$0xff]
  %v194 = vld [vmem:[%s1 + $0x520] sm:$0xff]
  %v195 = vld [vmem:[%s1 + $0x528] sm:$0xff]
  %v196 = vld [vmem:[%s1 + $0x530] sm:$0xff]
  %v197 = vld [vmem:[%s1 + $0x538] sm:$0xff]
  %v198 = vld [vmem:[%s1 + $0x540] sm:$0xff]
  %v199 = vld [vmem:[%s1 + $0x548] sm:$0xff]
  %v200 = vld [vmem:[%s1 + $0x550] sm:$0xff]
  %v201 = vld [vmem:[%s1 + $0x558] sm:$0xff]
  %v202 = vld [vmem:[%s1 + $0x560] sm:$0xff]
  %v203 = vld [vmem:[%s1 + $0x568] sm:$0xff]
  %v204 = vld [vmem:[%s1 + $0x570] sm:$0xff]
  %v205 = vld [vmem:[%s1 + $0x578] sm:$0xff]
  %v206 = vld [vmem:[%s1 + $0x580] sm:$0xff]
  %v207 = vld [vmem:[%s1 + $0x588] sm:$0xff]
  %v208 = vld [vmem:[%s1 + $0x590] sm:$0xff]
  %v209 = vld [vmem:[%s1 + $0x598] sm:$0xff]
  %v210 = vld [vmem:[%s1 + $0x5a0] sm:$0xff]
  %v211 = vld [vmem:[%s1 + $0x5a8] sm:$0xff]
  %v212 = vld [vmem:[%s1 + $0x5b0] sm:$0xff]
  %v213 = vld [vmem:[%s1 + $0x5b8] sm:$0xff]
  %v214 = vld [vmem:[%s1 + $0x5c0] sm:$0xff]
  %v215 = vld [vmem:[%s1 + $0x5c8] sm:$0xff]
  %v216 = vld [vmem:[%s1 + $0x5d0] sm:$0xff]
  %v217 = vld [vmem:[%s1 + $0x5d8] sm:$0xff]
  %v218 = vld [vmem:[%s1 + $0x5e0] sm:$0xff]
  %v219 = vld [vmem:[%s1 + $0x5e8] sm:$0xff]
  %v220 = vld [vmem:[%s1 + $0x5f0] sm:$0xff]
  %v221 = vld [vmem:[%s1 + $0x5f8] sm:$0xff]
  %v222 = vld [vmem:[%s1 + $0x600] sm:$0xff]
  %v223 = vld [vmem:[%s1 + $0x608] sm:$0xff]
  %v224 = vld [vmem:[%s1 + $0x610] sm:$0xff]
  %v225 = vld [vmem:[%s1 + $0x618] sm:$0xff]
  %v226 = vld [vmem:[%s1 + $0x620] sm:$0xff]
  %v227 = vld [vmem:[%s1 + $0x628] sm:$0xff]
  %v228 = vld [vmem:[%s1 + $0x630] sm:$0xff]
  %v229 = vld [vmem:[%s1 + $0x638] sm:$0xff]
  %v230 = vld [vmem:[%s1 + $0x640] sm:$0xff]
  %v231 = vld [vmem:[%s1 + $0x648] sm:$0xff]
  %v232 = vld [vmem:[%s1 + $0x650] sm:$0xff]
  %v233 = vld [vmem:[%s1 + $0x658] sm:$0xff]
  %v234 = vld [vmem:[%s1 + $0x660] sm:$0xff]
  %v235 = vld [vmem:[%s1 + $0x668] sm:$0xff]
  %v236 = vld [vmem:[%s1 + $0x670] sm:$0xff]
  %v237 = vld [vmem:[%s1 + $0x678] sm:$0xff]
  %v238 = vld [vmem:[%s1 + $0x680] sm:$0xff]
  %v239 = vld [vmem:[%s1 + $0x688] sm:$0xff]
  %v240 = vld [vmem:[%s1 + $0x690] sm:$0xff]
  %v241 = vld [vmem:[%s1 + $0x698] sm:$0xff]
  %v242 = vld [vmem:[%s1 + $0x6a0] sm:$0xff]
  %v243 = vld [vmem:[%s1 + $0x6a8] sm:$0xff]
  %v244 = vld [vmem:[%s1 + $0x6b0] sm:$0xff]
  %v245 = vld [vmem:[%s1 + $0x6b8] sm:$0xff]
  %v246 = vld [vmem:[%s1 + $0x6c0] sm:$0xff]
  %v247 = vld [vmem:[%s1 + $0x6c8] sm:$0xff]
  %v248 = vld [vmem:[%s1 + $0x6d0] sm:$0xff]
  %v249 = vld [vmem:[%s1 + $0x6d8] sm:$0xff]
  %v250 = vld [vmem:[%s1 + $0x6e0] sm:$0xff]
  %v251 = vld [vmem:[%s1 + $0x6e8] sm:$0xff]
  %v252 = vld [vmem:[%s1 + $0x6f0] sm:$0xff]
  %v253 = vld [vmem:[%s1 + $0x6f8] sm:$0xff]
  %v254 = vld [vmem:[%s1 + $0x700] sm:$0xff]
  %v255 = vld [vmem:[%s1 + $0x708] sm:$0xff]
  %v256 = vld [vmem:[%s1 + $0x710] sm:$0xff]
  %v257 = vld [vmem:[%s1 + $0x718] sm:$0xff]
  %v258 = vld [vmem:[%s1 + $0x720] sm:$0xff]
  %v259 = vld [vmem:[%s1 + $0x728] sm:$0xff]
  %v260 = vld [vmem:[%s1 + $0x730] sm:$0xff]
  %v261 = vld [vmem:[%s1 + $0x738] sm:$0xff]
  %v262 = vld [vmem:[%s1 + $0x740] sm:$0xff]
  %v263 = vld [vmem:[%s1 + $0x748] sm:$0xff]
  %v264 = vld [vmem:[%s1 + $0x750] sm:$0xff]
  %v265 = vld [vmem:[%s1 + $0x758] sm:$0xff]
  %v266 = vld [vmem:[%s1 + $0x760] sm:$0xff]
  %v267 = vld [vmem:[%s1 + $0x768] sm:$0xff]
  %v268 = vld [vmem:[%s1 + $0x770] sm:$0xff]
  %v269 = vld [vmem:[%s1 + $0x778] sm:$0xff]
  %v270 = vld [vmem:[%s1 + $0x780] sm:$0xff]
  %v271 = vld [vmem:[%s1 + $0x788] sm:$0xff]
  %v272 = vld [vmem:[%s1 + $0x790] sm:$0xff]
  %v273 = vld [vmem:[%s1 + $0x798] sm:$0xff]
  %v274 = vld [vmem:[%s1 + $0x7a0] sm:$0xff]
  %v275 = vld [vmem:[%s1 + $0x7a8] sm:$0xff]
  %v276 = vld [vmem:[%s1 + $0x7b0] sm:$0xff]
  %v277 = vld [vmem:[%s1 + $0x7b8] sm:$0xff]
  %v278 = vld [vmem:[%s1 + $0x7c0] sm:$0xff]
  %v279 = vld [vmem:[%s1 + $0x7c8] sm:$0xff]
  %v280 = vld [vmem:[%s1 + $0x7d0] sm:$0xff]
  %v281 = vld [vmem:[%s1 + $0x7d8] sm:$0xff]
  %v282 = vld [vmem:[%s2] sm:$0x1]
  %v284 = vlaneseq
  %v285 = vshrl.u32 %v284, 7
  %v286 = vsub.s32 0, %v285
  %v287 = vrot.slane %v282, %v286
  %vm289 = vcmask 785408
  %v291 = vsel %vm289, %v29, 0
  %293 = vmatprep.subr.mxu0 0.0
  %294 = vmatpush1.msra.mxu0 %v45
  %295 = vmatprep.subr.mxu0 0.0
  %296 = vmatpush1.msra.mxu0 %v44
  %297 = vmatprep.subr.mxu0 0.0
  %298 = vmatpush1.msra.mxu0 %v43
  %299 = vmatprep.subr.mxu0 0.0
  %300 = vmatpush1.msra.mxu0 %v42
  %301 = vmatprep.subr.mxu0 0.0
  %302 = vmatpush1.msra.mxu0 %v41
  %303 = vmatprep.subr.mxu0 0.0
  %304 = vmatpush1.msra.mxu0 %v40
  %305 = vmatprep.subr.mxu0 0.0
  %306 = vmatpush1.msra.mxu0 %v39
  %307 = vmatprep.subr.mxu0 0.0
  %308 = vmatpush1.msra.mxu0 %v38
  %309 = vmatprep.subr.mxu0 0.0
  %310 = vmatpush1.msra.mxu0 %v37
  %311 = vmatprep.subr.mxu0 0.0
  %312 = vmatpush1.msra.mxu0 %v36
  %313 = vmatprep.subr.mxu0 0.0
  %314 = vmatpush1.msra.mxu0 %v35
  %315 = vmatprep.subr.mxu0 0.0
  %316 = vmatpush1.msra.mxu0 %v34
  %317 = vmatprep.subr.mxu0 0.0
  %318 = vmatpush1.msra.mxu0 %v33
  %319 = vmatprep.subr.mxu0 0.0
  %320 = vmatpush1.msra.mxu0 %v32
  %321 = vmatprep.subr.mxu0 0.0
  %322 = vmatpush1.msra.mxu0 %v31
  %323 = vmatprep.subr.mxu0 0.0
  %324 = vmatpush1.msra.mxu0 %v30
  %325 = vmatprep.subr.mxu0 0.0
  %326 = vmatpush2.msra.mxu0 %v61
  %327 = vmatprep.subr.mxu0 0.0
  %328 = vmatpush2.msra.mxu0 %v60
  %329 = vmatprep.subr.mxu0 0.0
  %330 = vmatpush2.msra.mxu0 %v59
  %331 = vmatprep.subr.mxu0 0.0
  %332 = vmatpush2.msra.mxu0 %v58
  %333 = vmatprep.subr.mxu0 0.0
  %334 = vmatpush2.msra.mxu0 %v57
  %335 = vmatprep.subr.mxu0 0.0
  %336 = vmatpush2.msra.mxu0 %v56
  %337 = vmatprep.subr.mxu0 0.0
  %338 = vmatpush2.msra.mxu0 %v55
  %339 = vmatprep.subr.mxu0 0.0
  %340 = vmatpush2.msra.mxu0 %v54
  %341 = vmatprep.subr.mxu0 0.0
  %342 = vmatpush2.msra.mxu0 %v53
  %343 = vmatprep.subr.mxu0 0.0
  %344 = vmatpush2.msra.mxu0 %v52
  %345 = vmatprep.subr.mxu0 0.0
  %346 = vmatpush2.msra.mxu0 %v51
  %347 = vmatprep.subr.mxu0 0.0
  %348 = vmatpush2.msra.mxu0 %v50
  %349 = vmatprep.subr.mxu0 0.0
  %350 = vmatpush2.msra.mxu0 %v49
  %351 = vmatprep.subr.mxu0 0.0
  %352 = vmatpush2.msra.mxu0 %v48
  %353 = vmatprep.subr.mxu0 0.0
  %354 = vmatpush2.msra.mxu0 %v47
  %355 = vmatprep.subr.mxu0 0.0
  %356 = vmatpush2.msra.mxu0 %v46
  %357 = vmatprep.mubr.f32.mxu0 %v15
  %358 = vmatmul.mubr.f32.gmra.mxu0 %v14
  %v359 = vpop.f32.mrf.mxu0
  %v360 = vadd.f32 %v287, %v359
  %v361 = vpop.f32.mrf.mxu0
  %362 = vdwg.mxu0
  %363 = vmatprep.subr.mxu0 0.0
  %364 = vmatpush1.msra.mxu0 %v77
  %365 = vmatprep.subr.mxu0 0.0
  %366 = vmatpush1.msra.mxu0 %v76
  %367 = vmatprep.subr.mxu0 0.0
  %368 = vmatpush1.msra.mxu0 %v75
  %369 = vmatprep.subr.mxu0 0.0
  %370 = vmatpush1.msra.mxu0 %v74
  %371 = vmatprep.subr.mxu0 0.0
  %372 = vmatpush1.msra.mxu0 %v73
  %373 = vmatprep.subr.mxu0 0.0
  %374 = vmatpush1.msra.mxu0 %v72
  %375 = vmatprep.subr.mxu0 0.0
  %376 = vmatpush1.msra.mxu0 %v71
  %377 = vmatprep.subr.mxu0 0.0
  %378 = vmatpush1.msra.mxu0 %v70
  %379 = vmatprep.subr.mxu0 0.0
  %380 = vmatpush1.msra.mxu0 %v69
  %381 = vmatprep.subr.mxu0 0.0
  %382 = vmatpush1.msra.mxu0 %v68
  %383 = vmatprep.subr.mxu0 0.0
  %384 = vmatpush1.msra.mxu0 %v67
  %385 = vmatprep.subr.mxu0 0.0
  %386 = vmatpush1.msra.mxu0 %v66
  %387 = vmatprep.subr.mxu0 0.0
  %388 = vmatpush1.msra.mxu0 %v65
  %389 = vmatprep.subr.mxu0 0.0
  %390 = vmatpush1.msra.mxu0 %v64
  %391 = vmatprep.subr.mxu0 0.0
  %392 = vmatpush1.msra.mxu0 %v63
  %393 = vmatprep.subr.mxu0 0.0
  %394 = vmatpush1.msra.mxu0 %v62
  %395 = vmatprep.subr.mxu0 0.0
  %396 = vmatpush2.msra.mxu0 %v93
  %397 = vmatprep.subr.mxu0 0.0
  %398 = vmatpush2.msra.mxu0 %v92
  %399 = vmatprep.subr.mxu0 0.0
  %400 = vmatpush2.msra.mxu0 %v91
  %401 = vmatprep.subr.mxu0 0.0
  %402 = vmatpush2.msra.mxu0 %v90
  %403 = vmatprep.subr.mxu0 0.0
  %404 = vmatpush2.msra.mxu0 %v89
  %405 = vmatprep.subr.mxu0 0.0
  %406 = vmatpush2.msra.mxu0 %v88
  %407 = vmatprep.subr.mxu0 0.0
  %408 = vmatpush2.msra.mxu0 %v87
  %409 = vmatprep.subr.mxu0 0.0
  %410 = vmatpush2.msra.mxu0 %v86
  %411 = vmatprep.subr.mxu0 0.0
  %412 = vmatpush2.msra.mxu0 %v85
  %413 = vmatprep.subr.mxu0 0.0
  %414 = vmatpush2.msra.mxu0 %v84
  %415 = vmatprep.subr.mxu0 0.0
  %416 = vmatpush2.msra.mxu0 %v83
  %417 = vmatprep.subr.mxu0 0.0
  %418 = vmatpush2.msra.mxu0 %v82
  %419 = vmatprep.subr.mxu0 0.0
  %420 = vmatpush2.msra.mxu0 %v81
  %421 = vmatprep.subr.mxu0 0.0
  %422 = vmatpush2.msra.mxu0 %v80
  %423 = vmatprep.subr.mxu0 0.0
  %424 = vmatpush2.msra.mxu0 %v79
  %425 = vmatprep.subr.mxu0 0.0
  %426 = vmatpush2.msra.mxu0 %v78
  %427 = vmatprep.mubr.f32.mxu0 %v17
  %428 = vmatmul.mubr.f32.gmra.mxu0 %v16
  %v429 = vpop.f32.mrf.mxu0
  %v430 = vadd.f32 %v360, %v429
  %v431 = vpop.f32.mrf.mxu0
  %432 = vdwg.mxu0
  %433 = vmatprep.subr.mxu0 0.0
  %434 = vmatpush1.msra.mxu0 %v109
  %435 = vmatprep.subr.mxu0 0.0
  %436 = vmatpush1.msra.mxu0 %v108
  %437 = vmatprep.subr.mxu0 0.0
  %438 = vmatpush1.msra.mxu0 %v107
  %439 = vmatprep.subr.mxu0 0.0
  %440 = vmatpush1.msra.mxu0 %v106
  %441 = vmatprep.subr.mxu0 0.0
  %442 = vmatpush1.msra.mxu0 %v105
  %443 = vmatprep.subr.mxu0 0.0
  %444 = vmatpush1.msra.mxu0 %v104
  %445 = vmatprep.subr.mxu0 0.0
  %446 = vmatpush1.msra.mxu0 %v103
  %447 = vmatprep.subr.mxu0 0.0
  %448 = vmatpush1.msra.mxu0 %v102
  %449 = vmatprep.subr.mxu0 0.0
  %450 = vmatpush1.msra.mxu0 %v101
  %451 = vmatprep.subr.mxu0 0.0
  %452 = vmatpush1.msra.mxu0 %v100
  %453 = vmatprep.subr.mxu0 0.0
  %454 = vmatpush1.msra.mxu0 %v99
  %455 = vmatprep.subr.mxu0 0.0
  %456 = vmatpush1.msra.mxu0 %v98
  %457 = vmatprep.subr.mxu0 0.0
  %458 = vmatpush1.msra.mxu0 %v97
  %459 = vmatprep.subr.mxu0 0.0
  %460 = vmatpush1.msra.mxu0 %v96
  %461 = vmatprep.subr.mxu0 0.0
  %462 = vmatpush1.msra.mxu0 %v95
  %463 = vmatprep.subr.mxu0 0.0
  %464 = vmatpush1.msra.mxu0 %v94
  %465 = vmatprep.subr.mxu0 0.0
  %466 = vmatpush2.msra.mxu0 %v125
  %467 = vmatprep.subr.mxu0 0.0
  %468 = vmatpush2.msra.mxu0 %v124
  %469 = vmatprep.subr.mxu0 0.0
  %470 = vmatpush2.msra.mxu0 %v123
  %471 = vmatprep.subr.mxu0 0.0
  %472 = vmatpush2.msra.mxu0 %v122
  %473 = vmatprep.subr.mxu0 0.0
  %474 = vmatpush2.msra.mxu0 %v121
  %475 = vmatprep.subr.mxu0 0.0
  %476 = vmatpush2.msra.mxu0 %v120
  %477 = vmatprep.subr.mxu0 0.0
  %478 = vmatpush2.msra.mxu0 %v119
  %479 = vmatprep.subr.mxu0 0.0
  %480 = vmatpush2.msra.mxu0 %v118
  %481 = vmatprep.subr.mxu0 0.0
  %482 = vmatpush2.msra.mxu0 %v117
  %483 = vmatprep.subr.mxu0 0.0
  %484 = vmatpush2.msra.mxu0 %v116
  %485 = vmatprep.subr.mxu0 0.0
  %486 = vmatpush2.msra.mxu0 %v115
  %487 = vmatprep.subr.mxu0 0.0
  %488 = vmatpush2.msra.mxu0 %v114
  %489 = vmatprep.subr.mxu0 0.0
  %490 = vmatpush2.msra.mxu0 %v113
  %491 = vmatprep.subr.mxu0 0.0
  %492 = vmatpush2.msra.mxu0 %v112
  %493 = vmatprep.subr.mxu0 0.0
  %494 = vmatpush2.msra.mxu0 %v111
  %495 = vmatprep.subr.mxu0 0.0
  %496 = vmatpush2.msra.mxu0 %v110
  %497 = vmatprep.mubr.f32.mxu0 %v19
  %498 = vmatmul.mubr.f32.gmra.mxu0 %v18
  %v499 = vpop.f32.mrf.mxu0
  %v500 = vadd.f32 %v430, %v499
  %v501 = vpop.f32.mrf.mxu0
  %502 = vdwg.mxu0
  %503 = vmatprep.subr.mxu0 0.0
  %504 = vmatpush1.msra.mxu0 %v141
  %505 = vmatprep.subr.mxu0 0.0
  %506 = vmatpush1.msra.mxu0 %v140
  %507 = vmatprep.subr.mxu0 0.0
  %508 = vmatpush1.msra.mxu0 %v139
  %509 = vmatprep.subr.mxu0 0.0
  %510 = vmatpush1.msra.mxu0 %v138
  %511 = vmatprep.subr.mxu0 0.0
  %512 = vmatpush1.msra.mxu0 %v137
  %513 = vmatprep.subr.mxu0 0.0
  %514 = vmatpush1.msra.mxu0 %v136
  %515 = vmatprep.subr.mxu0 0.0
  %516 = vmatpush1.msra.mxu0 %v135
  %517 = vmatprep.subr.mxu0 0.0
  %518 = vmatpush1.msra.mxu0 %v134
  %519 = vmatprep.subr.mxu0 0.0
  %520 = vmatpush1.msra.mxu0 %v133
  %521 = vmatprep.subr.mxu0 0.0
  %522 = vmatpush1.msra.mxu0 %v132
  %523 = vmatprep.subr.mxu0 0.0
  %524 = vmatpush1.msra.mxu0 %v131
  %525 = vmatprep.subr.mxu0 0.0
  %526 = vmatpush1.msra.mxu0 %v130
  %527 = vmatprep.subr.mxu0 0.0
  %528 = vmatpush1.msra.mxu0 %v129
  %529 = vmatprep.subr.mxu0 0.0
  %530 = vmatpush1.msra.mxu0 %v128
  %531 = vmatprep.subr.mxu0 0.0
  %532 = vmatpush1.msra.mxu0 %v127
  %533 = vmatprep.subr.mxu0 0.0
  %534 = vmatpush1.msra.mxu0 %v126
  %535 = vmatprep.subr.mxu0 0.0
  %536 = vmatpush2.msra.mxu0 %v157
  %537 = vmatprep.subr.mxu0 0.0
  %538 = vmatpush2.msra.mxu0 %v156
  %539 = vmatprep.subr.mxu0 0.0
  %540 = vmatpush2.msra.mxu0 %v155
  %541 = vmatprep.subr.mxu0 0.0
  %542 = vmatpush2.msra.mxu0 %v154
  %543 = vmatprep.subr.mxu0 0.0
  %544 = vmatpush2.msra.mxu0 %v153
  %545 = vmatprep.subr.mxu0 0.0
  %546 = vmatpush2.msra.mxu0 %v152
  %547 = vmatprep.subr.mxu0 0.0
  %548 = vmatpush2.msra.mxu0 %v151
  %549 = vmatprep.subr.mxu0 0.0
  %550 = vmatpush2.msra.mxu0 %v150
  %551 = vmatprep.subr.mxu0 0.0
  %552 = vmatpush2.msra.mxu0 %v149
  %553 = vmatprep.subr.mxu0 0.0
  %554 = vmatpush2.msra.mxu0 %v148
  %555 = vmatprep.subr.mxu0 0.0
  %556 = vmatpush2.msra.mxu0 %v147
  %557 = vmatprep.subr.mxu0 0.0
  %558 = vmatpush2.msra.mxu0 %v146
  %559 = vmatprep.subr.mxu0 0.0
  %560 = vmatpush2.msra.mxu0 %v145
  %561 = vmatprep.subr.mxu0 0.0
  %562 = vmatpush2.msra.mxu0 %v144
  %563 = vmatprep.subr.mxu0 0.0
  %564 = vmatpush2.msra.mxu0 %v143
  %565 = vmatprep.subr.mxu0 0.0
  %566 = vmatpush2.msra.mxu0 %v142
  %567 = vmatprep.mubr.f32.mxu0 %v21
  %568 = vmatmul.mubr.f32.gmra.mxu0 %v20
  %v569 = vpop.f32.mrf.mxu0
  %v570 = vadd.f32 %v500, %v569
  %v571 = vpop.f32.mrf.mxu0
  %572 = vdwg.mxu0
  %573 = vmatprep.subr.mxu0 0.0
  %574 = vmatpush1.msra.mxu0 %v173
  %575 = vmatprep.subr.mxu0 0.0
  %576 = vmatpush1.msra.mxu0 %v172
  %577 = vmatprep.subr.mxu0 0.0
  %578 = vmatpush1.msra.mxu0 %v171
  %579 = vmatprep.subr.mxu0 0.0
  %580 = vmatpush1.msra.mxu0 %v170
  %581 = vmatprep.subr.mxu0 0.0
  %582 = vmatpush1.msra.mxu0 %v169
  %583 = vmatprep.subr.mxu0 0.0
  %584 = vmatpush1.msra.mxu0 %v168
  %585 = vmatprep.subr.mxu0 0.0
  %586 = vmatpush1.msra.mxu0 %v167
  %587 = vmatprep.subr.mxu0 0.0
  %588 = vmatpush1.msra.mxu0 %v166
  %589 = vmatprep.subr.mxu0 0.0
  %590 = vmatpush1.msra.mxu0 %v165
  %591 = vmatprep.subr.mxu0 0.0
  %592 = vmatpush1.msra.mxu0 %v164
  %593 = vmatprep.subr.mxu0 0.0
  %594 = vmatpush1.msra.mxu0 %v163
  %595 = vmatprep.subr.mxu0 0.0
  %596 = vmatpush1.msra.mxu0 %v162
  %597 = vmatprep.subr.mxu0 0.0
  %598 = vmatpush1.msra.mxu0 %v161
  %599 = vmatprep.subr.mxu0 0.0
  %600 = vmatpush1.msra.mxu0 %v160
  %601 = vmatprep.subr.mxu0 0.0
  %602 = vmatpush1.msra.mxu0 %v159
  %603 = vmatprep.subr.mxu0 0.0
  %604 = vmatpush1.msra.mxu0 %v158
  %605 = vmatprep.subr.mxu0 0.0
  %606 = vmatpush2.msra.mxu0 %v189
  %607 = vmatprep.subr.mxu0 0.0
  %608 = vmatpush2.msra.mxu0 %v188
  %609 = vmatprep.subr.mxu0 0.0
  %610 = vmatpush2.msra.mxu0 %v187
  %611 = vmatprep.subr.mxu0 0.0
  %612 = vmatpush2.msra.mxu0 %v186
  %613 = vmatprep.subr.mxu0 0.0
  %614 = vmatpush2.msra.mxu0 %v185
  %615 = vmatprep.subr.mxu0 0.0
  %616 = vmatpush2.msra.mxu0 %v184
  %617 = vmatprep.subr.mxu0 0.0
  %618 = vmatpush2.msra.mxu0 %v183
  %619 = vmatprep.subr.mxu0 0.0
  %620 = vmatpush2.msra.mxu0 %v182
  %621 = vmatprep.subr.mxu0 0.0
  %622 = vmatpush2.msra.mxu0 %v181
  %623 = vmatprep.subr.mxu0 0.0
  %624 = vmatpush2.msra.mxu0 %v180
  %625 = vmatprep.subr.mxu0 0.0
  %626 = vmatpush2.msra.mxu0 %v179
  %627 = vmatprep.subr.mxu0 0.0
  %628 = vmatpush2.msra.mxu0 %v178
  %629 = vmatprep.subr.mxu0 0.0
  %630 = vmatpush2.msra.mxu0 %v177
  %631 = vmatprep.subr.mxu0 0.0
  %632 = vmatpush2.msra.mxu0 %v176
  %633 = vmatprep.subr.mxu0 0.0
  %634 = vmatpush2.msra.mxu0 %v175
  %635 = vmatprep.subr.mxu0 0.0
  %636 = vmatpush2.msra.mxu0 %v174
  %637 = vmatprep.mubr.f32.mxu0 %v23
  %638 = vmatmul.mubr.f32.gmra.mxu0 %v22
  %v639 = vpop.f32.mrf.mxu0
  %v640 = vadd.f32 %v570, %v639
  %v641 = vpop.f32.mrf.mxu0
  %642 = vdwg.mxu0
  %643 = vmatprep.subr.mxu0 0.0
  %644 = vmatpush1.msra.mxu0 %v205
  %645 = vmatprep.subr.mxu0 0.0
  %646 = vmatpush1.msra.mxu0 %v204
  %647 = vmatprep.subr.mxu0 0.0
  %648 = vmatpush1.msra.mxu0 %v203
  %649 = vmatprep.subr.mxu0 0.0
  %650 = vmatpush1.msra.mxu0 %v202
  %651 = vmatprep.subr.mxu0 0.0
  %652 = vmatpush1.msra.mxu0 %v201
  %653 = vmatprep.subr.mxu0 0.0
  %654 = vmatpush1.msra.mxu0 %v200
  %655 = vmatprep.subr.mxu0 0.0
  %656 = vmatpush1.msra.mxu0 %v199
  %657 = vmatprep.subr.mxu0 0.0
  %658 = vmatpush1.msra.mxu0 %v198
  %659 = vmatprep.subr.mxu0 0.0
  %660 = vmatpush1.msra.mxu0 %v197
  %661 = vmatprep.subr.mxu0 0.0
  %662 = vmatpush1.msra.mxu0 %v196
  %663 = vmatprep.subr.mxu0 0.0
  %664 = vmatpush1.msra.mxu0 %v195
  %665 = vmatprep.subr.mxu0 0.0
  %666 = vmatpush1.msra.mxu0 %v194
  %667 = vmatprep.subr.mxu0 0.0
  %668 = vmatpush1.msra.mxu0 %v193
  %669 = vmatprep.subr.mxu0 0.0
  %670 = vmatpush1.msra.mxu0 %v192
  %671 = vmatprep.subr.mxu0 0.0
  %672 = vmatpush1.msra.mxu0 %v191
  %673 = vmatprep.subr.mxu0 0.0
  %674 = vmatpush1.msra.mxu0 %v190
  %675 = vmatprep.subr.mxu0 0.0
  %676 = vmatpush2.msra.mxu0 %v221
  %677 = vmatprep.subr.mxu0 0.0
  %678 = vmatpush2.msra.mxu0 %v220
  %679 = vmatprep.subr.mxu0 0.0
  %680 = vmatpush2.msra.mxu0 %v219
  %681 = vmatprep.subr.mxu0 0.0
  %682 = vmatpush2.msra.mxu0 %v218
  %683 = vmatprep.subr.mxu0 0.0
  %684 = vmatpush2.msra.mxu0 %v217
  %685 = vmatprep.subr.mxu0 0.0
  %686 = vmatpush2.msra.mxu0 %v216
  %687 = vmatprep.subr.mxu0 0.0
  %688 = vmatpush2.msra.mxu0 %v215
  %689 = vmatprep.subr.mxu0 0.0
  %690 = vmatpush2.msra.mxu0 %v214
  %691 = vmatprep.subr.mxu0 0.0
  %692 = vmatpush2.msra.mxu0 %v213
  %693 = vmatprep.subr.mxu0 0.0
  %694 = vmatpush2.msra.mxu0 %v212
  %695 = vmatprep.subr.mxu0 0.0
  %696 = vmatpush2.msra.mxu0 %v211
  %697 = vmatprep.subr.mxu0 0.0
  %698 = vmatpush2.msra.mxu0 %v210
  %699 = vmatprep.subr.mxu0 0.0
  %700 = vmatpush2.msra.mxu0 %v209
  %701 = vmatprep.subr.mxu0 0.0
  %702 = vmatpush2.msra.mxu0 %v208
  %703 = vmatprep.subr.mxu0 0.0
  %704 = vmatpush2.msra.mxu0 %v207
  %705 = vmatprep.subr.mxu0 0.0
  %706 = vmatpush2.msra.mxu0 %v206
  %707 = vmatprep.mubr.f32.mxu0 %v25
  %708 = vmatmul.mubr.f32.gmra.mxu0 %v24
  %v709 = vpop.f32.mrf.mxu0
  %v710 = vadd.f32 %v640, %v709
  %v711 = vpop.f32.mrf.mxu0
  %712 = vdwg.mxu0
  %713 = vmatprep.subr.mxu0 0.0
  %714 = vmatpush1.msra.mxu0 %v237
  %715 = vmatprep.subr.mxu0 0.0
  %716 = vmatpush1.msra.mxu0 %v236
  %717 = vmatprep.subr.mxu0 0.0
  %718 = vmatpush1.msra.mxu0 %v235
  %719 = vmatprep.subr.mxu0 0.0
  %720 = vmatpush1.msra.mxu0 %v234
  %721 = vmatprep.subr.mxu0 0.0
  %722 = vmatpush1.msra.mxu0 %v233
  %723 = vmatprep.subr.mxu0 0.0
  %724 = vmatpush1.msra.mxu0 %v232
  %725 = vmatprep.subr.mxu0 0.0
  %726 = vmatpush1.msra.mxu0 %v231
  %727 = vmatprep.subr.mxu0 0.0
  %728 = vmatpush1.msra.mxu0 %v230
  %729 = vmatprep.subr.mxu0 0.0
  %730 = vmatpush1.msra.mxu0 %v229
  %731 = vmatprep.subr.mxu0 0.0
  %732 = vmatpush1.msra.mxu0 %v228
  %733 = vmatprep.subr.mxu0 0.0
  %734 = vmatpush1.msra.mxu0 %v227
  %735 = vmatprep.subr.mxu0 0.0
  %736 = vmatpush1.msra.mxu0 %v226
  %737 = vmatprep.subr.mxu0 0.0
  %738 = vmatpush1.msra.mxu0 %v225
  %739 = vmatprep.subr.mxu0 0.0
  %740 = vmatpush1.msra.mxu0 %v224
  %741 = vmatprep.subr.mxu0 0.0
  %742 = vmatpush1.msra.mxu0 %v223
  %743 = vmatprep.subr.mxu0 0.0
  %744 = vmatpush1.msra.mxu0 %v222
  %745 = vmatprep.subr.mxu0 0.0
  %746 = vmatpush2.msra.mxu0 %v253
  %747 = vmatprep.subr.mxu0 0.0
  %748 = vmatpush2.msra.mxu0 %v252
  %749 = vmatprep.subr.mxu0 0.0
  %750 = vmatpush2.msra.mxu0 %v251
  %751 = vmatprep.subr.mxu0 0.0
  %752 = vmatpush2.msra.mxu0 %v250
  %753 = vmatprep.subr.mxu0 0.0
  %754 = vmatpush2.msra.mxu0 %v249
  %755 = vmatprep.subr.mxu0 0.0
  %756 = vmatpush2.msra.mxu0 %v248
  %757 = vmatprep.subr.mxu0 0.0
  %758 = vmatpush2.msra.mxu0 %v247
  %759 = vmatprep.subr.mxu0 0.0
  %760 = vmatpush2.msra.mxu0 %v246
  %761 = vmatprep.subr.mxu0 0.0
  %762 = vmatpush2.msra.mxu0 %v245
  %763 = vmatprep.subr.mxu0 0.0
  %764 = vmatpush2.msra.mxu0 %v244
  %765 = vmatprep.subr.mxu0 0.0
  %766 = vmatpush2.msra.mxu0 %v243
  %767 = vmatprep.subr.mxu0 0.0
  %768 = vmatpush2.msra.mxu0 %v242
  %769 = vmatprep.subr.mxu0 0.0
  %770 = vmatpush2.msra.mxu0 %v241
  %771 = vmatprep.subr.mxu0 0.0
  %772 = vmatpush2.msra.mxu0 %v240
  %773 = vmatprep.subr.mxu0 0.0
  %774 = vmatpush2.msra.mxu0 %v239
  %775 = vmatprep.subr.mxu0 0.0
  %776 = vmatpush2.msra.mxu0 %v238
  %777 = vmatprep.mubr.f32.mxu0 %v27
  %778 = vmatmul.mubr.f32.gmra.mxu0 %v26
  %v779 = vpop.f32.mrf.mxu0
  %v780 = vadd.f32 %v710, %v779
  %v781 = vpop.f32.mrf.mxu0
  %782 = vdwg.mxu0
  %783 = vmatprep.subr.mxu0 0.0
  %784 = vmatpush1.msra.mxu0 %v269
  %785 = vmatprep.subr.mxu0 0.0
  %786 = vmatpush1.msra.mxu0 %v268
  %787 = vmatprep.subr.mxu0 0.0
  %788 = vmatpush1.msra.mxu0 %v267
  %789 = vmatprep.subr.mxu0 0.0
  %790 = vmatpush1.msra.mxu0 %v266
  %791 = vmatprep.subr.mxu0 0.0
  %792 = vmatpush1.msra.mxu0 %v265
  %793 = vmatprep.subr.mxu0 0.0
  %794 = vmatpush1.msra.mxu0 %v264
  %795 = vmatprep.subr.mxu0 0.0
  %796 = vmatpush1.msra.mxu0 %v263
  %797 = vmatprep.subr.mxu0 0.0
  %798 = vmatpush1.msra.mxu0 %v262
  %799 = vmatprep.subr.mxu0 0.0
  %800 = vmatpush1.msra.mxu0 %v261
  %801 = vmatprep.subr.mxu0 0.0
  %802 = vmatpush1.msra.mxu0 %v260
  %803 = vmatprep.subr.mxu0 0.0
  %804 = vmatpush1.msra.mxu0 %v259
  %805 = vmatprep.subr.mxu0 0.0
  %806 = vmatpush1.msra.mxu0 %v258
  %807 = vmatprep.subr.mxu0 0.0
  %808 = vmatpush1.msra.mxu0 %v257
  %809 = vmatprep.subr.mxu0 0.0
  %810 = vmatpush1.msra.mxu0 %v256
  %811 = vmatprep.subr.mxu0 0.0
  %812 = vmatpush1.msra.mxu0 %v255
  %813 = vmatprep.subr.mxu0 0.0
  %814 = vmatpush1.msra.mxu0 %v254
  %815 = vmatprep.subr.mxu0 0.0
  %816 = vmatpush2.msra.mxu0 0.0
  %817 = vmatprep.subr.mxu0 0.0
  %818 = vmatpush2.msra.mxu0 0.0
  %819 = vmatprep.subr.mxu0 0.0
  %820 = vmatpush2.msra.mxu0 0.0
  %821 = vmatprep.subr.mxu0 0.0
  %822 = vmatpush2.msra.mxu0 0.0
  %823 = vmatprep.subr.mxu0 0.0
  %824 = vmatpush2.msra.mxu0 %v281
  %825 = vmatprep.subr.mxu0 0.0
  %826 = vmatpush2.msra.mxu0 %v280
  %827 = vmatprep.subr.mxu0 0.0
  %828 = vmatpush2.msra.mxu0 %v279
  %829 = vmatprep.subr.mxu0 0.0
  %830 = vmatpush2.msra.mxu0 %v278
  %831 = vmatprep.subr.mxu0 0.0
  %832 = vmatpush2.msra.mxu0 %v277
  %833 = vmatprep.subr.mxu0 0.0
  %834 = vmatpush2.msra.mxu0 %v276
  %835 = vmatprep.subr.mxu0 0.0
  %836 = vmatpush2.msra.mxu0 %v275
  %837 = vmatprep.subr.mxu0 0.0
  %838 = vmatpush2.msra.mxu0 %v274
  %839 = vmatprep.subr.mxu0 0.0
  %840 = vmatpush2.msra.mxu0 %v273
  %841 = vmatprep.subr.mxu0 0.0
  %842 = vmatpush2.msra.mxu0 %v272
  %843 = vmatprep.subr.mxu0 0.0
  %844 = vmatpush2.msra.mxu0 %v271
  %845 = vmatprep.subr.mxu0 0.0
  %846 = vmatpush2.msra.mxu0 %v270
  %847 = vmatprep.mubr.f32.mxu0 %v291
  %848 = vmatmul.mubr.f32.gmra.mxu0 %v28
  %v849 = vpop.f32.mrf.mxu0
  %v850 = vadd.f32 %v780, %v849
  %v851 = vpop.f32.mrf.mxu0
  %852 = vdwg.mxu0
  %v853 = vlaneseq
  %v854 = vand.u32 %v853, 127
  %vm855 = vcmp.lt.s32.totalorder %v854, 10
  %v856 = vsel %vm855, %v850, -1e+30
  %857 = vmax.xlane.f32.xlu0 %v856
  %v858 = vpop.xlane.xlu0 %857
  %v859 = vsub.f32 %v856, %v858
  %v860 = vmul.f32 %v859, 1.442695
  %v861 = vpow.pop %v860
  %862 = vadd.xlane.f32.xlu0 %v861
  %v863 = vpop.xlane.xlu0 %862
  %v864 = vlog2.pop %v863
  %v865 = vmul.f32 %v864, 0.6931472
  %v866 = vsub.f32 %v859, %v865
  %867 = vst [vmem:[%s3] sm:$0xff] %v866
  // Predicated region
  $region14: #{forward.3} parent=0 // pred_check
    _
  $region15: #{forward.3} parent=0 // pred_check_branch
    %869 = sbr.rel (0) target = $region17
  $region16: #{forward.3} parent=0 // pred_region
    _
  $region17: #{forward.3} parent=0 // pred_fallthru
    _
  // Predicated region
  $region18: #{forward.3} parent=0 // pred_check
    _
  $region19: #{forward.3} parent=0 // pred_check_branch
    %871 = sbr.rel (0) target = $region21
  $region20: #{forward.3} parent=0 // pred_region
    _
  $region21: #{forward.3} parent=0 // pred_fallthru
    _

// kernel: forward.2
$region0: #{forward.2}
  #allocation0 [shape = 'u32[]', space=smem, size = 0x4, offset = 0x4, fixed_abs, tag = 'smem constant byte address 0x4 - core index']
  #allocation1 [shape = 'u32[144,128]{1,0:T(1,128)}', space=vmem, size = 0x12000, scoped, tag = 'internal scratch']
  #allocation2 [shape = 'f32[1,4,16,90]{3,2,1,0:T(8,128)}', space=vmem, size = 0x8000, scoped, tag = 'scratch operand']
  %s0 = inlined_call_operand.vmem [shape: f32[2,4,32,196], index: 0, kind: input, shape index: {}]
  %s1 = inlined_call_operand.vmem [shape: f32[16,32], index: 1, kind: input, shape index: {}]
  %s2 = inlined_call_operand.vmem [shape: f32[16,1], index: 2, kind: input, shape index: {}]
  %s3 = inlined_call_operand.vmem [shape: f32[4,32,400], index: 3, kind: input, shape index: {}]
  %s4 = inlined_call_operand.vmem [shape: f32[32,1], index: 4, kind: input, shape index: {}]
  %s5 = inlined_call_operand.vmem [shape: f32[2,32,63], index: 5, kind: output, shape index: {}]
  %s6 = sld [smem:[#allocation0]]
  $region53: #{forward.2} parent=0
    _
  %s8 = ssub.s32 1, %s6
  %s9 = scalar_select 0, %s8, %s6
  loop: start=0, step=1, limit=4
  $region2: #{forward.2} parent=0 // loop_pre_header
    _
  $region3: #{forward.2} parent=0 // loop_header
    %s11 = sphi 0, %s15
    %p12 = scmp.ge.s32.totalorder %s11, 4
    %s21 = sphi 0, %s23
    %s24 = sphi 0, %s21
    %s25 = sphi 0, %s24
    %s41 = sphi 0, %s25
    %s45 = sphi 0, %s45
    %s47 = sphi 0, %s45
    %s48 = sphi 0, %s47
    %s62 = sphi 0, %s48
    %s66 = sphi 0, %s66
    %s68 = sphi 0, %s66
    %s69 = sphi 0, %s68
    %s83 = sphi 0, %s69
    %s87 = sphi 0, %s87
    %s89 = sphi 0, %s87
    %s90 = sphi 0, %s89
    %s104 = sphi 0, %s90
    %s108 = sphi 0, %s108
    %s110 = sphi 0, %s108
    %s111 = sphi 0, %s110
    %s125 = sphi 0, %s111
    %s131 = sphi 0, %s133
    %s134 = sphi 0, %s131
    %s135 = sphi 0, %s134
    %s151 = sphi 0, %s135
  $region4: #{forward.2} parent=0 // loop_header_branch
    %14 = sbr.rel (%p12) target = $region8
  $region5: #{forward.2} parent=0 // loop_body
    %s16 = ssub.s32 %s11, 1
    %s17 = ssub.s32 %s11, 2
    %s18 = sadd.s32 %s11, 1
    %s19 = ssub.s32 %s11, %s18
    %p20 = scmp.eq.s32.totalorder %s19, 0
    %s22 = sadd.s32 %s21, 1
    %s23 = scalar_select %p20, %s21, %s22
    %p26 = pneg %p20
    %p27 = scmp.eq.s32.totalorder %s11, 1
    %p28 = por %p26, %p27
    %p29 = scmp.ne.s32.totalorder %s21, %s24
    %p30 = scmp.eq.s32.totalorder %s11, 0
    %p31 = por %p29, %p30
    %p32 = scmp.ne.s32.totalorder %s21, %s24
    %p33 = scmp.eq.s32.totalorder %s16, 1
    %p34 = por %p32, %p33
    %p35 = scmp.ne.s32.totalorder %s24, %s25
    %p36 = scmp.eq.s32.totalorder %s16, 0
    %p37 = por %p35, %p36
    %p38 = scmp.ne.s32.totalorder %s24, %s25
    %p39 = scmp.eq.s32.totalorder %s17, 1
    %p40 = por %p38, %p39
    %p42 = scmp.ne.s32.totalorder %s25, %s41
    %p43 = scmp.eq.s32.totalorder %s17, 0
    %p44 = por %p42, %p43
    %s46 = sadd.s32 %s45, 1
    %p49 = scmp.eq.s32.totalorder %s11, 1
    %p50 = scmp.ne.s32.totalorder %s45, %s47
    %p51 = scmp.eq.s32.totalorder %s11, 0
    %p52 = por %p50, %p51
    %p53 = scmp.ne.s32.totalorder %s45, %s47
    %p54 = scmp.eq.s32.totalorder %s16, 1
    %p55 = por %p53, %p54
    %p56 = scmp.ne.s32.totalorder %s47, %s48
    %p57 = scmp.eq.s32.totalorder %s16, 0
    %p58 = por %p56, %p57
    %p59 = scmp.ne.s32.totalorder %s47, %s48
    %p60 = scmp.eq.s32.totalorder %s17, 1
    %p61 = por %p59, %p60
    %p63 = scmp.ne.s32.totalorder %s48, %s62
    %p64 = scmp.eq.s32.totalorder %s17, 0
    %p65 = por %p63, %p64
    %s67 = sadd.s32 %s66, 1
    %p70 = scmp.eq.s32.totalorder %s11, 1
    %p71 = scmp.ne.s32.totalorder %s66, %s68
    %p72 = scmp.eq.s32.totalorder %s11, 0
    %p73 = por %p71, %p72
    %p74 = scmp.ne.s32.totalorder %s66, %s68
    %p75 = scmp.eq.s32.totalorder %s16, 1
    %p76 = por %p74, %p75
    %p77 = scmp.ne.s32.totalorder %s68, %s69
    %p78 = scmp.eq.s32.totalorder %s16, 0
    %p79 = por %p77, %p78
    %p80 = scmp.ne.s32.totalorder %s68, %s69
    %p81 = scmp.eq.s32.totalorder %s17, 1
    %p82 = por %p80, %p81
    %p84 = scmp.ne.s32.totalorder %s69, %s83
    %p85 = scmp.eq.s32.totalorder %s17, 0
    %p86 = por %p84, %p85
    %s88 = sadd.s32 %s87, 1
    %p91 = scmp.eq.s32.totalorder %s11, 1
    %p92 = scmp.ne.s32.totalorder %s87, %s89
    %p93 = scmp.eq.s32.totalorder %s11, 0
    %p94 = por %p92, %p93
    %p95 = scmp.ne.s32.totalorder %s87, %s89
    %p96 = scmp.eq.s32.totalorder %s16, 1
    %p97 = por %p95, %p96
    %p98 = scmp.ne.s32.totalorder %s89, %s90
    %p99 = scmp.eq.s32.totalorder %s16, 0
    %p100 = por %p98, %p99
    %p101 = scmp.ne.s32.totalorder %s89, %s90
    %p102 = scmp.eq.s32.totalorder %s17, 1
    %p103 = por %p101, %p102
    %p105 = scmp.ne.s32.totalorder %s90, %s104
    %p106 = scmp.eq.s32.totalorder %s17, 0
    %p107 = por %p105, %p106
    %s109 = sadd.s32 %s108, 1
    %p112 = scmp.eq.s32.totalorder %s11, 1
    %p113 = scmp.ne.s32.totalorder %s108, %s110
    %p114 = scmp.eq.s32.totalorder %s11, 0
    %p115 = por %p113, %p114
    %p116 = scmp.ne.s32.totalorder %s108, %s110
    %p117 = scmp.eq.s32.totalorder %s16, 1
    %p118 = por %p116, %p117
    %p119 = scmp.ne.s32.totalorder %s110, %s111
    %p120 = scmp.eq.s32.totalorder %s16, 0
    %p121 = por %p119, %p120
    %p122 = scmp.ne.s32.totalorder %s110, %s111
    %p123 = scmp.eq.s32.totalorder %s17, 1
    %p124 = por %p122, %p123
    %p126 = scmp.ne.s32.totalorder %s111, %s125
    %p127 = scmp.eq.s32.totalorder %s17, 0
    %p128 = por %p126, %p127
    %s129 = ssub.s32 %s11, %s18
    %p130 = scmp.eq.s32.totalorder %s129, 0
    %s132 = sadd.s32 %s131, 1
    %s133 = scalar_select %p130, %s131, %s132
    %p136 = pneg %p130
    %p137 = scmp.eq.s32.totalorder %s11, 1
    %p138 = por %p136, %p137
    %p139 = scmp.ne.s32.totalorder %s131, %s134
    %p140 = scmp.eq.s32.totalorder %s11, 0
    %p141 = por %p139, %p140
    %p142 = scmp.ne.s32.totalorder %s131, %s134
    %p143 = scmp.eq.s32.totalorder %s16, 1
    %p144 = por %p142, %p143
    %p145 = scmp.ne.s32.totalorder %s134, %s135
    %p146 = scmp.eq.s32.totalorder %s16, 0
    %p147 = por %p145, %p146
    %p148 = scmp.ne.s32.totalorder %s134, %s135
    %p149 = scmp.eq.s32.totalorder %s17, 1
    %p150 = por %p148, %p149
    %p152 = scmp.ne.s32.totalorder %s135, %s151
    %p153 = scmp.eq.s32.totalorder %s17, 0
    %p154 = por %p152, %p153
    %p155 = scmp.le.s32.totalorder 1, %s11
    %p156 = scmp.lt.s32.totalorder %s11, 3
    %p157 = pnand %p155, %p156
    %p158 = pneg %p157
    // Predicated region
    $region9: #{forward.2} parent=5 // pred_check
      _
    $region10: #{forward.2} parent=5 // pred_check_branch
      %160 = sbr.rel (%p157) target = $region12
    $region11: #{forward.2} parent=5 // pred_region
      %s161 = ssub.s32 %s11, 1
      // Predicated region
      $region13: #{forward.2} parent=11 // pred_check
        %p162 = pneg %p58
      $region14: #{forward.2} parent=11 // pred_check_branch
        %164 = sbr.rel (%p162) target = $region16
      $region15: #{forward.2} parent=11 // pred_region
        _
      $region16: #{forward.2} parent=11 // pred_fallthru
        _
      // Predicated region
      $region17: #{forward.2} parent=11 // pred_check
        %p165 = pneg %p79
      $region18: #{forward.2} parent=11 // pred_check_branch
        %167 = sbr.rel (%p165) target = $region20
      $region19: #{forward.2} parent=11 // pred_region
        _
      $region20: #{forward.2} parent=11 // pred_fallthru
        _
      // Predicated region
      $region21: #{forward.2} parent=11 // pred_check
        %p168 = pneg %p100
      $region22: #{forward.2} parent=11 // pred_check_branch
        %170 = sbr.rel (%p168) target = $region24
      $region23: #{forward.2} parent=11 // pred_region
        _
      $region24: #{forward.2} parent=11 // pred_fallthru
        _
      // Predicated region
      $region25: #{forward.2} parent=11 // pred_check
        %p171 = pneg %p121
      $region26: #{forward.2} parent=11 // pred_check_branch
        %173 = sbr.rel (%p171) target = $region28
      $region27: #{forward.2} parent=11 // pred_region
        _
      $region28: #{forward.2} parent=11 // pred_fallthru
        _
    $region12: #{forward.2} parent=5 // pred_fallthru
      _
    %p174 = scmp.lt.s32.totalorder %s11, 2
    // Predicated region
    $region29: #{forward.2} parent=5 // pred_check
      %p175 = pneg %p174
    $region30: #{forward.2} parent=5 // pred_check_branch
      %177 = sbr.rel (%p175) target = $region32
    $region31: #{forward.2} parent=5 // pred_region
      // Predicated region
      $region33: #{forward.2} parent=31 // pred_check
        %p178 = pneg %p31
      $region34: #{forward.2} parent=31 // pred_check_branch
        %180 = sbr.rel (%p178) target = $region36
      $region35: #{forward.2} parent=31 // pred_region
        %p181 = scmp.lt.s32.totalorder %s11, 1
        %s182 = scalar_select %p181, %s11, 1
        %s183 = smul.addr %s182, 32
        %s184 = smul.addr %s183, 8
        %s185 = scalar_lea.vmem %s0, %s184
      $region36: #{forward.2} parent=31 // pred_fallthru
        _
    $region32: #{forward.2} parent=5 // pred_fallthru
      _
    %p186 = scmp.le.s32.totalorder 1, %s11
    %p187 = scmp.lt.s32.totalorder %s11, 3
    %p188 = pnand %p186, %p187
    %p189 = pneg %p188
    // Predicated region
    $region37: #{forward.2} parent=5 // pred_check
      _
    $region38: #{forward.2} parent=5 // pred_check_branch
      %191 = sbr.rel (%p188) target = $region40
    $region39: #{forward.2} parent=5 // pred_region
      %s192 = ssub.s32 %s11, 1
      %p193 = scmp.lt.s32.totalorder %s16, 1
      %s194 = scalar_select %p193, %s16, 1
      %s195 = smul.addr %s194, 32
      %s196 = smul.addr %s195, 8
      %s197 = scalar_lea.vmem %s0, %s196
      %p198 = pneg %p37
      %p199 = pneg %p34
      %p200 = pneg %p58
      %p201 = pneg %p55
      %p202 = pneg %p79
      %p203 = pneg %p76
      %p204 = pneg %p100
      %p205 = pneg %p97
      %p206 = pneg %p121
      %p207 = pneg %p118
      %p208 = pneg %p147
      %p209 = pneg %p144
      %p210 = scmp.lt.s32.totalorder %s16, 1
      %s211 = scalar_select %p210, %s16, 1
      %s212 = smul.addr %s211, 4
      %s213 = smul.addr %s212, 8
      %s214 = scalar_lea.vmem %s5, %s213
      %p215 = scmp.lt.s32.totalorder %s16, 1
      %s216 = scalar_select %p215, %s16, 1
      %s217 = smul.addr %s216, 32
      %s218 = smul.addr %s217, 8
      %s219 = scalar_lea.vmem %s0, %s218
      %p220 = scmp.lt.s32.totalorder %s16, 1
      %s221 = scalar_select %p220, %s16, 1
      %s222 = smul.addr %s221, 4
      %s223 = smul.addr %s222, 8
      %s224 = scalar_lea.vmem %s5, %s223
      %v225 = vld [vmem:[%s1] sm:$0xff]
      %v226 = vld [vmem:[%s1 + $0x8] sm:$0xff]
      %v227 = vld [vmem:[%s219] sm:$0xff]
      %v228 = vld [vmem:[%s219 + $0x8] sm:$0xff]
      %v229 = vld [vmem:[%s219 + $0x10] sm:$0xff]
      %v230 = vld [vmem:[%s219 + $0x18] sm:$0xff]
      %v231 = vld [vmem:[%s219 + $0x20] sm:$0xff]
      %v232 = vld [vmem:[%s219 + $0x28] sm:$0xff]
      %v233 = vld [vmem:[%s219 + $0x30] sm:$0xff]
      %v234 = vld [vmem:[%s219 + $0x38] sm:$0xff]
      %vm235 = vcmask 261120
      %v237 = vsel %vm235, %v225, 0
      %v240 = vsel %vm235, %v226, 0
      %242 = vmatprep.subr.mxu0 0.0
      %243 = vmatpush1.msra.mxu0 0.0
      %244 = vmatprep.subr.mxu0 0.0
      %245 = vmatpush1.msra.mxu0 0.0
      %246 = vmatprep.subr.mxu0 0.0
      %247 = vmatpush1.msra.mxu0 0.0
      %248 = vmatprep.subr.mxu0 0.0
      %249 = vmatpush1.msra.mxu0 0.0
      %250 = vmatprep.subr.mxu0 0.0
      %251 = vmatpush1.msra.mxu0 0.0
      %252 = vmatprep.subr.mxu0 0.0
      %253 = vmatpush1.msra.mxu0 0.0
      %254 = vmatprep.subr.mxu0 0.0
      %255 = vmatpush1.msra.mxu0 0.0
      %256 = vmatprep.subr.mxu0 0.0
      %257 = vmatpush1.msra.mxu0 0.0
      %258 = vmatprep.subr.mxu0 0.0
      %259 = vmatpush1.msra.mxu0 0.0
      %260 = vmatprep.subr.mxu0 0.0
      %261 = vmatpush1.msra.mxu0 0.0
      %262 = vmatprep.subr.mxu0 0.0
      %263 = vmatpush1.msra.mxu0 0.0
      %264 = vmatprep.subr.mxu0 0.0
      %265 = vmatpush1.msra.mxu0 0.0
      %266 = vmatprep.subr.mxu0 %v234
      %267 = vmatpush1.msra.mxu0 %v233
      %268 = vmatprep.subr.mxu0 %v232
      %269 = vmatpush1.msra.mxu0 %v231
      %270 = vmatprep.subr.mxu0 %v230
      %271 = vmatpush1.msra.mxu0 %v229
      %272 = vmatprep.subr.mxu0 %v228
      %273 = vmatpush1.msra.mxu0 %v227
      %274 = vmatprep.subr.mxu0 0.0
      %275 = vmatpush2.msra.mxu0 0.0
      %276 = vmatprep.subr.mxu0 0.0
      %277 = vmatpush2.msra.mxu0 0.0
      %278 = vmatprep.subr.mxu0 0.0
      %279 = vmatpush2.msra.mxu0 0.0
      %280 = vmatprep.subr.mxu0 0.0
      %281 = vmatpush2.msra.mxu0 0.0
      %282 = vmatprep.subr.mxu0 0.0
      %283 = vmatpush2.msra.mxu0 0.0
      %284 = vmatprep.subr.mxu0 0.0
      %285 = vmatpush2.msra.mxu0 0.0
      %286 = vmatprep.subr.mxu0 0.0
      %287 = vmatpush2.msra.mxu0 0.0
      %288 = vmatprep.subr.mxu0 0.0
      %289 = vmatpush2.msra.mxu0 0.0
      %290 = vmatprep.subr.mxu0 0.0
      %291 = vmatpush2.msra.mxu0 0.0
      %292 = vmatprep.subr.mxu0 0.0
      %293 = vmatpush2.msra.mxu0 0.0
      %294 = vmatprep.subr.mxu0 0.0
      %295 = vmatpush2.msra.mxu0 0.0
      %296 = vmatprep.subr.mxu0 0.0
      %297 = vmatpush2.msra.mxu0 0.0
      %298 = vmatprep.subr.mxu0 0.0
      %299 = vmatpush2.msra.mxu0 0.0
      %300 = vmatprep.subr.mxu0 0.0
      %301 = vmatpush2.msra.mxu0 0.0
      %302 = vmatprep.subr.mxu0 0.0
      %303 = vmatpush2.msra.mxu0 0.0
      %304 = vmatprep.subr.mxu0 0.0
      %305 = vmatpush2.msra.mxu0 0.0
      %306 = vmatprep.mubr.f32.mxu0 0.0
      %307 = vmatmul.mubr.f32.gmra.mxu0 %v237
      %v308 = vpop.f32.mrf.mxu0
      %v309 = vadd.f32 0.0, %v308
      %v310 = vpop.f32.mrf.mxu0
      %v311 = vadd.f32 0.0, %v310
      %312 = vmatprep.mubr.f32.mxu0 0.0
      %313 = vmatmul.mubr.f32.gmra.mxu0 %v240
      %v314 = vpop.f32.mrf.mxu0
      %v315 = vadd.f32 0.0, %v314
      %v316 = vpop.f32.mrf.mxu0
      %v317 = vadd.f32 0.0, %v316
      %318 = vdwg.mxu0
      %s319 = scalar_lea.vmem %s219, 64
      %v320 = vld [vmem:[%s319] sm:$0xff]
      %v321 = vld [vmem:[%s319 + $0x8] sm:$0xff]
      %v322 = vld [vmem:[%s319 + $0x10] sm:$0xff]
      %v323 = vld [vmem:[%s319 + $0x18] sm:$0xff]
      %v324 = vld [vmem:[%s319 + $0x20] sm:$0xff]
      %v325 = vld [vmem:[%s319 + $0x28] sm:$0xff]
      %v326 = vld [vmem:[%s319 + $0x30] sm:$0xff]
      %v327 = vld [vmem:[%s319 + $0x38] sm:$0xff]
      %328 = vmatprep.subr.mxu0 0.0
      %329 = vmatpush1.msra.mxu0 0.0
      %330 = vmatprep.subr.mxu0 0.0
      %331 = vmatpush1.msra.mxu0 0.0
      %332 = vmatprep.subr.mxu0 0.0
      %333 = vmatpush1.msra.mxu0 0.0
      %334 = vmatprep.subr.mxu0 0.0
      %335 = vmatpush1.msra.mxu0 0.0
      %336 = vmatprep.subr.mxu0 0.0
      %337 = vmatpush1.msra.mxu0 0.0
      %338 = vmatprep.subr.mxu0 0.0
      %339 = vmatpush1.msra.mxu0 0.0
      %340 = vmatprep.subr.mxu0 0.0
      %341 = vmatpush1.msra.mxu0 0.0
      %342 = vmatprep.subr.mxu0 0.0
      %343 = vmatpush1.msra.mxu0 0.0
      %344 = vmatprep.subr.mxu0 0.0
      %345 = vmatpush1.msra.mxu0 0.0
      %346 = vmatprep.subr.mxu0 0.0
      %347 = vmatpush1.msra.mxu0 0.0
      %348 = vmatprep.subr.mxu0 0.0
      %349 = vmatpush1.msra.mxu0 0.0
      %350 = vmatprep.subr.mxu0 0.0
      %351 = vmatpush1.msra.mxu0 0.0
      %352 = vmatprep.subr.mxu0 %v327
      %353 = vmatpush1.msra.mxu0 %v326
      %354 = vmatprep.subr.mxu0 %v325
      %355 = vmatpush1.msra.mxu0 %v324
      %356 = vmatprep.subr.mxu0 %v323
      %357 = vmatpush1.msra.mxu0 %v322
      %358 = vmatprep.subr.mxu0 %v321
      %359 = vmatpush1.msra.mxu0 %v320
      %360 = vmatprep.subr.mxu0 0.0
      %361 = vmatpush2.msra.mxu0 0.0
      %362 = vmatprep.subr.mxu0 0.0
      %363 = vmatpush2.msra.mxu0 0.0
      %364 = vmatprep.subr.mxu0 0.0
      %365 = vmatpush2.msra.mxu0 0.0
      %366 = vmatprep.subr.mxu0 0.0
      %367 = vmatpush2.msra.mxu0 0.0
      %368 = vmatprep.subr.mxu0 0.0
      %369 = vmatpush2.msra.mxu0 0.0
      %370 = vmatprep.subr.mxu0 0.0
      %371 = vmatpush2.msra.mxu0 0.0
      %372 = vmatprep.subr.mxu0 0.0
      %373 = vmatpush2.msra.mxu0 0.0
      %374 = vmatprep.subr.mxu0 0.0
      %375 = vmatpush2.msra.mxu0 0.0
      %376 = vmatprep.subr.mxu0 0.0
      %377 = vmatpush2.msra.mxu0 0.0
      %378 = vmatprep.subr.mxu0 0.0
      %379 = vmatpush2.msra.mxu0 0.0
      %380 = vmatprep.subr.mxu0 0.0
      %381 = vmatpush2.msra.mxu0 0.0
      %382 = vmatprep.subr.mxu0 0.0
      %383 = vmatpush2.msra.mxu0 0.0
      %384 = vmatprep.subr.mxu0 0.0
      %385 = vmatpush2.msra.mxu0 0.0
      %386 = vmatprep.subr.mxu0 0.0
      %387 = vmatpush2.msra.mxu0 0.0
      %388 = vmatprep.subr.mxu0 0.0
      %389 = vmatpush2.msra.mxu0 0.0
      %390 = vmatprep.subr.mxu0 0.0
      %391 = vmatpush2.msra.mxu0 0.0
      %392 = vmatprep.mubr.f32.mxu0 0.0
      %393 = vmatmul.mubr.f32.gmra.mxu0 %v237
      %v394 = vpop.f32.mrf.mxu0
      %v395 = vadd.f32 0.0, %v394
      %v396 = vpop.f32.mrf.mxu0
      %v397 = vadd.f32 0.0, %v396
      %398 = vmatprep.mubr.f32.mxu0 0.0
      %399 = vmatmul.mubr.f32.gmra.mxu0 %v240
      %v400 = vpop.f32.mrf.mxu0
      %v401 = vadd.f32 0.0, %v400
      %v402 = vpop.f32.mrf.mxu0
      %v403 = vadd.f32 0.0, %v402
      %404 = vdwg.mxu0
      %v405 = vmax.f32 %v309, %v395
      %v406 = vmax.f32 %v311, %v397
      %v407 = vmax.f32 %v315, %v401
      %v408 = vmax.f32 %v317, %v403
      %s409 = scalar_lea.vmem %s219, 128
      %v410 = vld [vmem:[%s409] sm:$0xff]
      %v411 = vld [vmem:[%s409 + $0x8] sm:$0xff]
      %v412 = vld [vmem:[%s409 + $0x10] sm:$0xff]
      %v413 = vld [vmem:[%s409 + $0x18] sm:$0xff]
      %v414 = vld [vmem:[%s409 + $0x20] sm:$0xff]
      %v415 = vld [vmem:[%s409 + $0x28] sm:$0xff]
      %v416 = vld [vmem:[%s409 + $0x30] sm:$0xff]
      %v417 = vld [vmem:[%s409 + $0x38] sm:$0xff]
      %418 = vmatprep.subr.mxu0 0.0
      %419 = vmatpush1.msra.mxu0 0.0
      %420 = vmatprep.subr.mxu0 0.0
      %421 = vmatpush1.msra.mxu0 0.0
      %422 = vmatprep.subr.mxu0 0.0
      %423 = vmatpush1.msra.mxu0 0.0
      %424 = vmatprep.subr.mxu0 0.0
      %425 = vmatpush1.msra.mxu0 0.0
      %426 = vmatprep.subr.mxu0 0.0
      %427 = vmatpush1.msra.mxu0 0.0
      %428 = vmatprep.subr.mxu0 0.0
      %429 = vmatpush1.msra.mxu0 0.0
      %430 = vmatprep.subr.mxu0 0.0
      %431 = vmatpush1.msra.mxu0 0.0
      %432 = vmatprep.subr.mxu0 0.0
      %433 = vmatpush1.msra.mxu0 0.0
      %434 = vmatprep.subr.mxu0 0.0
      %435 = vmatpush1.msra.mxu0 0.0
      %436 = vmatprep.subr.mxu0 0.0
      %437 = vmatpush1.msra.mxu0 0.0
      %438 = vmatprep.subr.mxu0 0.0
      %439 = vmatpush1.msra.mxu0 0.0
      %440 = vmatprep.subr.mxu0 0.0
      %441 = vmatpush1.msra.mxu0 0.0
      %442 = vmatprep.subr.mxu0 %v417
      %443 = vmatpush1.msra.mxu0 %v416
      %444 = vmatprep.subr.mxu0 %v415
      %445 = vmatpush1.msra.mxu0 %v414
      %446 = vmatprep.subr.mxu0 %v413
      %447 = vmatpush1.msra.mxu0 %v412
      %448 = vmatprep.subr.mxu0 %v411
      %449 = vmatpush1.msra.mxu0 %v410
      %450 = vmatprep.subr.mxu0 0.0
      %451 = vmatpush2.msra.mxu0 0.0
      %452 = vmatprep.subr.mxu0 0.0
      %453 = vmatpush2.msra.mxu0 0.0
      %454 = vmatprep.subr.mxu0 0.0
      %455 = vmatpush2.msra.mxu0 0.0
      %456 = vmatprep.subr.mxu0 0.0
      %457 = vmatpush2.msra.mxu0 0.0
      %458 = vmatprep.subr.mxu0 0.0
      %459 = vmatpush2.msra.mxu0 0.0
      %460 = vmatprep.subr.mxu0 0.0
      %461 = vmatpush2.msra.mxu0 0.0
      %462 = vmatprep.subr.mxu0 0.0
      %463 = vmatpush2.msra.mxu0 0.0
      %464 = vmatprep.subr.mxu0 0.0
      %465 = vmatpush2.msra.mxu0 0.0
      %466 = vmatprep.subr.mxu0 0.0
      %467 = vmatpush2.msra.mxu0 0.0
      %468 = vmatprep.subr.mxu0 0.0
      %469 = vmatpush2.msra.mxu0 0.0
      %470 = vmatprep.subr.mxu0 0.0
      %471 = vmatpush2.msra.mxu0 0.0
      %472 = vmatprep.subr.mxu0 0.0
      %473 = vmatpush2.msra.mxu0 0.0
      %474 = vmatprep.subr.mxu0 0.0
      %475 = vmatpush2.msra.mxu0 0.0
      %476 = vmatprep.subr.mxu0 0.0
      %477 = vmatpush2.msra.mxu0 0.0
      %478 = vmatprep.subr.mxu0 0.0
      %479 = vmatpush2.msra.mxu0 0.0
      %480 = vmatprep.subr.mxu0 0.0
      %481 = vmatpush2.msra.mxu0 0.0
      %482 = vmatprep.mubr.f32.mxu0 0.0
      %483 = vmatmul.mubr.f32.gmra.mxu0 %v237
      %v484 = vpop.f32.mrf.mxu0
      %v485 = vadd.f32 0.0, %v484
      %v486 = vpop.f32.mrf.mxu0
      %v487 = vadd.f32 0.0, %v486
      %488 = vmatprep.mubr.f32.mxu0 0.0
      %489 = vmatmul.mubr.f32.gmra.mxu0 %v240
      %v490 = vpop.f32.mrf.mxu0
      %v491 = vadd.f32 0.0, %v490
      %v492 = vpop.f32.mrf.mxu0
      %v493 = vadd.f32 0.0, %v492
      %494 = vdwg.mxu0
      %v495 = vmax.f32 %v405, %v485
      %v496 = vmax.f32 %v406, %v487
      %v497 = vmax.f32 %v407, %v491
      %v498 = vmax.f32 %v408, %v493
      %s499 = scalar_lea.vmem %s219, 192
      %v500 = vld [vmem:[%s499] sm:$0xff]
      %v501 = vld [vmem:[%s499 + $0x8] sm:$0xff]
      %v502 = vld [vmem:[%s499 + $0x10] sm:$0xff]
      %v503 = vld [vmem:[%s499 + $0x18] sm:$0xff]
      %v504 = vld [vmem:[%s499 + $0x20] sm:$0xff]
      %v505 = vld [vmem:[%s499 + $0x28] sm:$0xff]
      %v506 = vld [vmem:[%s499 + $0x30] sm:$0xff]
      %v507 = vld [vmem:[%s499 + $0x38] sm:$0xff]
      %508 = vmatprep.subr.mxu0 0.0
      %509 = vmatpush1.msra.mxu0 0.0
      %510 = vmatprep.subr.mxu0 0.0
      %511 = vmatpush1.msra.mxu0 0.0
      %512 = vmatprep.subr.mxu0 0.0
      %513 = vmatpush1.msra.mxu0 0.0
      %514 = vmatprep.subr.mxu0 0.0
      %515 = vmatpush1.msra.mxu0 0.0
      %516 = vmatprep.subr.mxu0 0.0
      %517 = vmatpush1.msra.mxu0 0.0
      %518 = vmatprep.subr.mxu0 0.0
      %519 = vmatpush1.msra.mxu0 0.0
      %520 = vmatprep.subr.mxu0 0.0
      %521 = vmatpush1.msra.mxu0 0.0
      %522 = vmatprep.subr.mxu0 0.0
      %523 = vmatpush1.msra.mxu0 0.0
      %524 = vmatprep.subr.mxu0 0.0
      %525 = vmatpush1.msra.mxu0 0.0
      %526 = vmatprep.subr.mxu0 0.0
      %527 = vmatpush1.msra.mxu0 0.0
      %528 = vmatprep.subr.mxu0 0.0
      %529 = vmatpush1.msra.mxu0 0.0
      %530 = vmatprep.subr.mxu0 0.0
      %531 = vmatpush1.msra.mxu0 0.0
      %532 = vmatprep.subr.mxu0 %v507
      %533 = vmatpush1.msra.mxu0 %v506
      %534 = vmatprep.subr.mxu0 %v505
      %535 = vmatpush1.msra.mxu0 %v504
      %536 = vmatprep.subr.mxu0 %v503
      %537 = vmatpush1.msra.mxu0 %v502
      %538 = vmatprep.subr.mxu0 %v501
      %539 = vmatpush1.msra.mxu0 %v500
      %540 = vmatprep.subr.mxu0 0.0
      %541 = vmatpush2.msra.mxu0 0.0
      %542 = vmatprep.subr.mxu0 0.0
      %543 = vmatpush2.msra.mxu0 0.0
      %544 = vmatprep.subr.mxu0 0.0
      %545 = vmatpush2.msra.mxu0 0.0
      %546 = vmatprep.subr.mxu0 0.0
      %547 = vmatpush2.msra.mxu0 0.0
      %548 = vmatprep.subr.mxu0 0.0
      %549 = vmatpush2.msra.mxu0 0.0
      %550 = vmatprep.subr.mxu0 0.0
      %551 = vmatpush2.msra.mxu0 0.0
      %552 = vmatprep.subr.mxu0 0.0
      %553 = vmatpush2.msra.mxu0 0.0
      %554 = vmatprep.subr.mxu0 0.0
      %555 = vmatpush2.msra.mxu0 0.0
      %556 = vmatprep.subr.mxu0 0.0
      %557 = vmatpush2.msra.mxu0 0.0
      %558 = vmatprep.subr.mxu0 0.0
      %559 = vmatpush2.msra.mxu0 0.0
      %560 = vmatprep.subr.mxu0 0.0
      %561 = vmatpush2.msra.mxu0 0.0
      %562 = vmatprep.subr.mxu0 0.0
      %563 = vmatpush2.msra.mxu0 0.0
      %564 = vmatprep.subr.mxu0 0.0
      %565 = vmatpush2.msra.mxu0 0.0
      %566 = vmatprep.subr.mxu0 0.0
      %567 = vmatpush2.msra.mxu0 0.0
      %568 = vmatprep.subr.mxu0 0.0
      %569 = vmatpush2.msra.mxu0 0.0
      %570 = vmatprep.subr.mxu0 0.0
      %571 = vmatpush2.msra.mxu0 0.0
      %572 = vmatprep.mubr.f32.mxu0 0.0
      %573 = vmatmul.mubr.f32.gmra.mxu0 %v237
      %v574 = vpop.f32.mrf.mxu0
      %v575 = vadd.f32 0.0, %v574
      %v576 = vpop.f32.mrf.mxu0
      %v577 = vadd.f32 0.0, %v576
      %578 = vmatprep.mubr.f32.mxu0 0.0
      %579 = vmatmul.mubr.f32.gmra.mxu0 %v240
      %v580 = vpop.f32.mrf.mxu0
      %v581 = vadd.f32 0.0, %v580
      %v582 = vpop.f32.mrf.mxu0
      %v583 = vadd.f32 0.0, %v582
      %584 = vdwg.mxu0
      %v585 = vmax.f32 %v495, %v575
      %v586 = vmax.f32 %v496, %v577
      %v587 = vmax.f32 %v497, %v581
      %v588 = vmax.f32 %v498, %v583
      %v589 = vld [vmem:[%s2] sm:$0xff]
      %v590 = vld [vmem:[%s2 + $0x8] sm:$0xff]
      %592 = vset.pattern.permute.xlu0 0
      %593 = vperm.xlu0 %592, %v589
      %v594 = vpop.permute.xlu0 %593
      %597 = vset.pattern.permute.xlu0 0
      %598 = vperm.xlu0 %597, %v590
      %v599 = vpop.permute.xlu0 %598
      %v601 = vadd.f32 %v585, %v594
      %v602 = vadd.f32 %v586, %v594
      %v603 = vadd.f32 %v587, %v599
      %v604 = vadd.f32 %v588, %v599
      %v605 = vmax.f32 %v601, 0.0
      %v606 = vmax.f32 %v602, 0.0
      %v607 = vmax.f32 %v603, 0.0
      %v608 = vmax.f32 %v604, 0.0
      %vm609 = vcmask 736256
      %610 = vst.msk [vmem:[#allocation2] sm:$0xff] %vm609, 0.0
      %611 = vst.msk [vmem:[#allocation2 + $0x8] sm:$0xff] %vm609, 0.0
      %612 = vst.msk [vmem:[#allocation2 + $0x10] sm:$0xff] %vm609, 0.0
      %613 = vst.msk [vmem:[#allocation2 + $0x18] sm:$0xff] %vm609, 0.0
      %614 = vst.msk [vmem:[#allocation2 + $0x20] sm:$0xff] %vm609, 0.0
      %615 = vst.msk [vmem:[#allocation2 + $0x28] sm:$0xff] %vm609, 0.0
      %616 = vst.msk [vmem:[#allocation2 + $0x30] sm:$0xff] %vm609, 0.0
      %617 = vst.msk [vmem:[#allocation2 + $0x38] sm:$0xff] %vm609, 0.0
      %620 = vrot.lane.b32.xlu0 %v605, 10
      %v621 = vpop.permute.xlu0 %620
      %622 = vrot.lane.b32.xlu0 %v607, 10
      %v623 = vpop.permute.xlu0 %622
      %vm626 = vcmask 138320
      %627 = vst.msk [vmem:[#allocation2] sm:$0xff] %vm626, %v621
      %628 = vst.msk [vmem:[#allocation2 + $0x8] sm:$0xff] %vm626, %v623
      %629 = vrot.lane.b32.xlu0 %v605, 12
      %v630 = vpop.permute.xlu0 %629
      %631 = vrot.lane.b32.xlu0 %v607, 12
      %v632 = vpop.permute.xlu0 %631
      %vm635 = vcmask 212120
      %636 = vst.msk [vmem:[#allocation2] sm:$0xff] %vm635, %v630
      %637 = vst.msk [vmem:[#allocation2 + $0x8] sm:$0xff] %vm635, %v632
      %638 = vrot.lane.b32.xlu0 %v605, 14
      %v639 = vpop.permute.xlu0 %638
      %640 = vrot.lane.b32.xlu0 %v607, 14
      %v641 = vpop.permute.xlu0 %640
      %vm644 = vcmask 285920
      %645 = vst.msk [vmem:[#allocation2] sm:$0xff] %vm644, %v639
      %646 = vst.msk [vmem:[#allocation2 + $0x8] sm:$0xff] %vm644, %v641
      %647 = vrot.lane.b32.xlu0 %v605, 16
      %v648 = vpop.permute.xlu0 %647
      %649 = vrot.lane.b32.xlu0 %v607, 16
      %v650 = vpop.permute.xlu0 %649
      %vm653 = vcmask 359720
      %654 = vst.msk [vmem:[#allocation2] sm:$0xff] %vm653, %v648
      %655 = vst.msk [vmem:[#allocation2 + $0x8] sm:$0xff] %vm653, %v650
      %656 = vrot.lane.b32.xlu0 %v605, 18
      %v657 = vpop.permute.xlu0 %656
      %658 = vrot.lane.b32.xlu0 %v607, 18
      %v659 = vpop.permute.xlu0 %658
      %vm662 = vcmask 433520
      %663 = vst.msk [vmem:[#allocation2] sm:$0xff] %vm662, %v657
      %664 = vst.msk [vmem:[#allocation2 + $0x8] sm:$0xff] %vm662, %v659
      %665 = vrot.lane.b32.xlu0 %v605, 20
      %v666 = vpop.permute.xlu0 %665
      %667 = vrot.lane.b32.xlu0 %v607, 20
      %v668 = vpop.permute.xlu0 %667
      %vm671 = vcmask 507320
      %672 = vst.msk [vmem:[#allocation2] sm:$0xff] %vm671, %v666
      %673 = vst.msk [vmem:[#allocation2 + $0x8] sm:$0xff] %vm671, %v668
      %674 = vrot.lane.b32.xlu0 %v605, 22
      %v675 = vpop.permute.xlu0 %674
      %676 = vrot.lane.b32.xlu0 %v607, 22
      %v677 = vpop.permute.xlu0 %676
      %vm680 = vcmask 581120
      %681 = vst.msk [vmem:[#allocation2] sm:$0xff] %vm680, %v675
      %682 = vst.msk [vmem:[#allocation2 + $0x8] sm:$0xff] %vm680, %v677
      %683 = vrot.lane.b32.xlu0 %v605, 89
      %v684 = vpop.permute.xlu0 %683
      %685 = vrot.lane.b32.xlu0 %v607, 89
      %v686 = vpop.permute.xlu0 %685
      %s689 = scalar_lea.vmem [#allocation2], 16
      %690 = vst.msk [vmem:[%s689] sm:$0xff] %vm626, %v684
      %691 = vst.msk [vmem:[%s689 + $0x8] sm:$0xff] %vm626, %v686
      %692 = vrot.lane.b32.xlu0 %v605, 91
      %v693 = vpop.permute.xlu0 %692
      %694 = vrot.lane.b32.xlu0 %v607, 91
      %v695 = vpop.permute.xlu0 %694
      %698 = vst.msk [vmem:[%s689] sm:$0xff] %vm635, %v693
      %699 = vst.msk [vmem:[%s689 + $0x8] sm:$0xff] %vm635, %v695
      %700 = vrot.lane.b32.xlu0 %v605, 93
      %v701 = vpop.permute.xlu0 %700
      %702 = vrot.lane.b32.xlu0 %v607, 93
      %v703 = vpop.permute.xlu0 %702
      %706 = vst.msk [vmem:[%s689] sm:$0xff] %vm644, %v701
      %707 = vst.msk [vmem:[%s689 + $0x8] sm:$0xff] %vm644, %v703
      %708 = vrot.lane.b32.xlu0 %v605, 95
      %v709 = vpop.permute.xlu0 %708
      %710 = vrot.lane.b32.xlu0 %v607, 95
      %v711 = vpop.permute.xlu0 %710
      %714 = vst.msk [vmem:[%s689] sm:$0xff] %vm653, %v709
      %715 = vst.msk [vmem:[%s689 + $0x8] sm:$0xff] %vm653, %v711
      %716 = vrot.lane.b32.xlu0 %v605, 97
      %v717 = vpop.permute.xlu0 %716
      %718 = vrot.lane.b32.xlu0 %v607, 97
      %v719 = vpop.permute.xlu0 %718
      %722 = vst.msk [vmem:[%s689] sm:$0xff] %vm662, %v717
      %723 = vst.msk [vmem:[%s689 + $0x8] sm:$0xff] %vm662, %v719
      %724 = vrot.lane.b32.xlu0 %v605, 99
      %v725 = vpop.permute.xlu0 %724
      %726 = vrot.lane.b32.xlu0 %v607, 99
      %v727 = vpop.permute.xlu0 %726
      %730 = vst.msk [vmem:[%s689] sm:$0xff] %vm671, %v725
      %731 = vst.msk [vmem:[%s689 + $0x8] sm:$0xff] %vm671, %v727
      %732 = vrot.lane.b32.xlu0 %v605, 101
      %v733 = vpop.permute.xlu0 %732
      %734 = vrot.lane.b32.xlu0 %v607, 101
      %v735 = vpop.permute.xlu0 %734
      %738 = vst.msk [vmem:[%s689] sm:$0xff] %vm680, %v733
      %739 = vst.msk [vmem:[%s689 + $0x8] sm:$0xff] %vm680, %v735
      %740 = vrot.lane.b32.xlu0 %v605, 40
      %v741 = vpop.permute.xlu0 %740
      %742 = vrot.lane.b32.xlu0 %v607, 40
      %v743 = vpop.permute.xlu0 %742
      %s746 = scalar_lea.vmem [#allocation2], 32
      %747 = vst.msk [vmem:[%s746] sm:$0xff] %vm626, %v741
      %748 = vst.msk [vmem:[%s746 + $0x8] sm:$0xff] %vm626, %v743
      %749 = vrot.lane.b32.xlu0 %v605, 42
      %v750 = vpop.permute.xlu0 %749
      %751 = vrot.lane.b32.xlu0 %v607, 42
      %v752 = vpop.permute.xlu0 %751
      %755 = vst.msk [vmem:[%s746] sm:$0xff] %vm635, %v750
      %756 = vst.msk [vmem:[%s746 + $0x8] sm:$0xff] %vm635, %v752
      %757 = vrot.lane.b32.xlu0 %v605, 44
      %v758 = vpop.permute.xlu0 %757
      %759 = vrot.lane.b32.xlu0 %v607, 44
      %v760 = vpop.permute.xlu0 %759
      %763 = vst.msk [vmem:[%s746] sm:$0xff] %vm644, %v758
      %764 = vst.msk [vmem:[%s746 + $0x8] sm:$0xff] %vm644, %v760
      %765 = vrot.lane.b32.xlu0 %v605, 46
      %v766 = vpop.permute.xlu0 %765
      %767 = vrot.lane.b32.xlu0 %v607, 46
      %v768 = vpop.permute.xlu0 %767
      %771 = vst.msk [vmem:[%s746] sm:$0xff] %vm653, %v766
      %772 = vst.msk [vmem:[%s746 + $0x8] sm:$0xff] %vm653, %v768
      %775 = vrot.lane.b32.xlu0 %v605, 48
      %v776 = vpop.permute.xlu0 %775
      %777 = vrot.lane.b32.xlu0 %v606, 48
      %v778 = vpop.permute.xlu0 %777
      %779 = vrot.lane.b32.xlu0 %v607, 48
      %v780 = vpop.permute.xlu0 %779
      %781 = vrot.lane.b32.xlu0 %v608, 48
      %v782 = vpop.permute.xlu0 %781
      %vm783 = vcmask 392192
      %v784 = vsel %vm783, %v776, %v778
      %v785 = vsel %vm783, %v780, %v782
      %788 = vst.msk [vmem:[%s746] sm:$0xff] %vm662, %v784
      %789 = vst.msk [vmem:[%s746 + $0x8] sm:$0xff] %vm662, %v785
      %790 = vrot.lane.b32.xlu0 %v606, 50
      %v791 = vpop.permute.xlu0 %790
      %792 = vrot.lane.b32.xlu0 %v608, 50
      %v793 = vpop.permute.xlu0 %792
      %796 = vst.msk [vmem:[%s746] sm:$0xff] %vm671, %v791
      %797 = vst.msk [vmem:[%s746 + $0x8] sm:$0xff] %vm671, %v793
      %798 = vrot.lane.b32.xlu0 %v606, 52
      %v799 = vpop.permute.xlu0 %798
      %800 = vrot.lane.b32.xlu0 %v608, 52
      %v801 = vpop.permute.xlu0 %800
      %804 = vst.msk [vmem:[%s746] sm:$0xff] %vm680, %v799
      %805 = vst.msk [vmem:[%s746 + $0x8] sm:$0xff] %vm680, %v801
      %806 = vrot.lane.b32.xlu0 %v606, 119
      %v807 = vpop.permute.xlu0 %806
      %808 = vrot.lane.b32.xlu0 %v608, 119
      %v809 = vpop.permute.xlu0 %808
      %s812 = scalar_lea.vmem [#allocation2], 48
      %813 = vst.msk [vmem:[%s812] sm:$0xff] %vm626, %v807
      %814 = vst.msk [vmem:[%s812 + $0x8] sm:$0xff] %vm626, %v809
      %815 = vrot.lane.b32.xlu0 %v606, 121
      %v816 = vpop.permute.xlu0 %815
      %817 = vrot.lane.b32.xlu0 %v608, 121
      %v818 = vpop.permute.xlu0 %817
      %821 = vst.msk [vmem:[%s812] sm:$0xff] %vm635, %v816
      %822 = vst.msk [vmem:[%s812 + $0x8] sm:$0xff] %vm635, %v818
      %823 = vrot.lane.b32.xlu0 %v606, 123
      %v824 = vpop.permute.xlu0 %823
      %825 = vrot.lane.b32.xlu0 %v608, 123
      %v826 = vpop.permute.xlu0 %825
      %829 = vst.msk [vmem:[%s812] sm:$0xff] %vm644, %v824
      %830 = vst.msk [vmem:[%s812 + $0x8] sm:$0xff] %vm644, %v826
      %831 = vrot.lane.b32.xlu0 %v606, 125
      %v832 = vpop.permute.xlu0 %831
      %833 = vrot.lane.b32.xlu0 %v608, 125
      %v834 = vpop.permute.xlu0 %833
      %837 = vst.msk [vmem:[%s812] sm:$0xff] %vm653, %v832
      %838 = vst.msk [vmem:[%s812 + $0x8] sm:$0xff] %vm653, %v834
      %839 = vrot.lane.b32.xlu0 %v606, 127
      %v840 = vpop.permute.xlu0 %839
      %841 = vrot.lane.b32.xlu0 %v608, 127
      %v842 = vpop.permute.xlu0 %841
      %845 = vst.msk [vmem:[%s812] sm:$0xff] %vm662, %v840
      %846 = vst.msk [vmem:[%s812 + $0x8] sm:$0xff] %vm662, %v842
      %847 = vrot.lane.b32.xlu0 %v606, 1
      %v848 = vpop.permute.xlu0 %847
      %849 = vrot.lane.b32.xlu0 %v608, 1
      %v850 = vpop.permute.xlu0 %849
      %853 = vst.msk [vmem:[%s812] sm:$0xff] %vm671, %v848
      %854 = vst.msk [vmem:[%s812 + $0x8] sm:$0xff] %vm671, %v850
      %855 = vrot.lane.b32.xlu0 %v606, 3
      %v856 = vpop.permute.xlu0 %855
      %857 = vrot.lane.b32.xlu0 %v608, 3
      %v858 = vpop.permute.xlu0 %857
      %861 = vst.msk [vmem:[%s812] sm:$0xff] %vm680, %v856
      %862 = vst.msk [vmem:[%s812 + $0x8] sm:$0xff] %vm680, %v858
      %v863 = vld [vmem:[%s3] sm:$0xff]
      %v864 = vld [vmem:[%s3 + $0x8] sm:$0xff]
      %v865 = vld [vmem:[%s3 + $0x20] sm:$0xff]
      %v866 = vld [vmem:[%s3 + $0x28] sm:$0xff]
      %v867 = vld [vmem:[%s3 + $0x40] sm:$0xff]
      %v868 = vld [vmem:[%s3 + $0x48] sm:$0xff]
      %v869 = vld [vmem:[%s3 + $0x60] sm:$0xff]
      %v870 = vld [vmem:[%s3 + $0x68] sm:$0xff]
      %v871 = vld [vmem:[%s3 + $0x10] sm:$0xff]
      %v872 = vld [vmem:[%s3 + $0x30] sm:$0xff]
      %v873 = vld [vmem:[%s3 + $0x50] sm:$0xff]
      %v874 = vld [vmem:[%s3 + $0x70] sm:$0xff]
      %v875 = vld [vmem:[%s3 + $0x18] sm:$0xff]
      %v876 = vld [vmem:[%s3 + $0x38] sm:$0xff]
      %v877 = vld [vmem:[%s3 + $0x58] sm:$0xff]
      %v878 = vld [vmem:[%s3 + $0x78] sm:$0xff]
      %s879 = scalar_lea.vmem %s3, 128
      %v880 = vld [vmem:[%s879] sm:$0xff]
      %v881 = vld [vmem:[%s879 + $0x20] sm:$0xff]
      %v882 = vld [vmem:[%s879 + $0x40] sm:$0xff]
      %v883 = vld [vmem:[%s879 + $0x60] sm:$0xff]
      %v884 = vld [vmem:[%s879 + $0x8] sm:$0xff]
      %v885 = vld [vmem:[%s879 + $0x28] sm:$0xff]
      %v886 = vld [vmem:[%s879 + $0x48] sm:$0xff]
      %v887 = vld [vmem:[%s879 + $0x68] sm:$0xff]
      %v888 = vld [vmem:[%s879 + $0x10] sm:$0xff]
      %v889 = vld [vmem:[%s879 + $0x30] sm:$0xff]
      %v890 = vld [vmem:[%s879 + $0x50] sm:$0xff]
      %v891 = vld [vmem:[%s879 + $0x70] sm:$0xff]
      %v892 = vld [vmem:[%s879 + $0x18] sm:$0xff]
      %v893 = vld [vmem:[%s879 + $0x38] sm:$0xff]
      %v894 = vld [vmem:[%s879 + $0x58] sm:$0xff]
      %v895 = vld [vmem:[%s879 + $0x78] sm:$0xff]
      %s896 = scalar_lea.vmem %s3, 256
      %v897 = vld [vmem:[%s896] sm:$0xff]
      %v898 = vld [vmem:[%s896 + $0x20] sm:$0xff]
      %v899 = vld [vmem:[%s896 + $0x40] sm:$0xff]
      %v900 = vld [vmem:[%s896 + $0x60] sm:$0xff]
      %v901 = vld [vmem:[%s896 + $0x8] sm:$0xff]
      %v902 = vld [vmem:[%s896 + $0x28] sm:$0xff]
      %v903 = vld [vmem:[%s896 + $0x48] sm:$0xff]
      %v904 = vld [vmem:[%s896 + $0x68] sm:$0xff]
      %v905 = vld [vmem:[%s896 + $0x10] sm:$0xff]
      %v906 = vld [vmem:[%s896 + $0x30] sm:$0xff]
      %v907 = vld [vmem:[%s896 + $0x50] sm:$0xff]
      %v908 = vld [vmem:[%s896 + $0x70] sm:$0xff]
      %v909 = vld [vmem:[%s896 + $0x18] sm:$0xff]
      %v910 = vld [vmem:[%s896 + $0x38] sm:$0xff]
      %v911 = vld [vmem:[%s896 + $0x58] sm:$0xff]
      %v912 = vld [vmem:[%s896 + $0x78] sm:$0xff]
      %s913 = scalar_lea.vmem %s3, 384
      %v914 = vld [vmem:[%s913] sm:$0xff]
      %v915 = vld [vmem:[%s913 + $0x20] sm:$0xff]
      %v916 = vld [vmem:[%s913 + $0x40] sm:$0xff]
      %v917 = vld [vmem:[%s913 + $0x60] sm:$0xff]
      %v918 = vld [vmem:[%s913 + $0x8] sm:$0xff]
      %v919 = vld [vmem:[%s913 + $0x28] sm:$0xff]
      %v920 = vld [vmem:[%s913 + $0x48] sm:$0xff]
      %v921 = vld [vmem:[%s913 + $0x68] sm:$0xff]
      %v922 = vld [vmem:[%s913 + $0x10] sm:$0xff]
      %v923 = vld [vmem:[%s913 + $0x18] sm:$0xff]
      %v924 = vld [vmem:[%s913 + $0x30] sm:$0xff]
      %v925 = vld [vmem:[%s913 + $0x38] sm:$0xff]
      %v926 = vld [vmem:[%s913 + $0x50] sm:$0xff]
      %v927 = vld [vmem:[%s913 + $0x58] sm:$0xff]
      %v928 = vld [vmem:[%s913 + $0x70] sm:$0xff]
      %v929 = vld [vmem:[%s913 + $0x78] sm:$0xff]
      %v930 = vld [vmem:[#allocation2] sm:$0xff]
      %v931 = vld [vmem:[#allocation2 + $0x8] sm:$0xff]
      %934 = vrot.lane.b32.xlu0 %v930, 127
      %v935 = vpop.permute.xlu0 %934
      %936 = vrot.lane.b32.xlu0 %v931, 127
      %v937 = vpop.permute.xlu0 %936
      %940 = vrot.lane.b32.xlu0 %v930, 126
      %v941 = vpop.permute.xlu0 %940
      %942 = vrot.lane.b32.xlu0 %v931, 126
      %v943 = vpop.permute.xlu0 %942
      %946 = vrot.lane.b32.xlu0 %v930, 119
      %v947 = vpop.permute.xlu0 %946
      %948 = vrot.lane.b32.xlu0 %v931, 119
      %v949 = vpop.permute.xlu0 %948
      %952 = vrot.lane.b32.xlu0 %v930, 118
      %v953 = vpop.permute.xlu0 %952
      %954 = vrot.lane.b32.xlu0 %v931, 118
      %v955 = vpop.permute.xlu0 %954
      %958 = vrot.lane.b32.xlu0 %v930, 117
      %v959 = vpop.permute.xlu0 %958
      %960 = vrot.lane.b32.xlu0 %v931, 117
      %v961 = vpop.permute.xlu0 %960
      %964 = vrot.lane.b32.xlu0 %v930, 110
      %v965 = vpop.permute.xlu0 %964
      %966 = vrot.lane.b32.xlu0 %v931, 110
      %v967 = vpop.permute.xlu0 %966
      %970 = vrot.lane.b32.xlu0 %v930, 109
      %v971 = vpop.permute.xlu0 %970
      %972 = vrot.lane.b32.xlu0 %v931, 109
      %v973 = vpop.permute.xlu0 %972
      %976 = vrot.lane.b32.xlu0 %v930, 108
      %v977 = vpop.permute.xlu0 %976
      %978 = vrot.lane.b32.xlu0 %v931, 108
      %v979 = vpop.permute.xlu0 %978
      %v982 = vld [vmem:[%s689] sm:$0xff]
      %v983 = vld [vmem:[%s689 + $0x8] sm:$0xff]
      %986 = vrot.lane.b32.xlu0 %v982, 127
      %v987 = vpop.permute.xlu0 %986
      %988 = vrot.lane.b32.xlu0 %v983, 127
      %v989 = vpop.permute.xlu0 %988
      %992 = vrot.lane.b32.xlu0 %v982, 119
      %v993 = vpop.permute.xlu0 %992
      %994 = vrot.lane.b32.xlu0 %v983, 119
      %v995 = vpop.permute.xlu0 %994
      %998 = vrot.lane.b32.xlu0 %v982, 118
      %v999 = vpop.permute.xlu0 %998
      %1000 = vrot.lane.b32.xlu0 %v983, 118
      %v1001 = vpop.permute.xlu0 %1000
      %1004 = vrot.lane.b32.xlu0 %v982, 110
      %v1005 = vpop.permute.xlu0 %1004
      %1006 = vrot.lane.b32.xlu0 %v983, 110
      %v1007 = vpop.permute.xlu0 %1006
      %1010 = vrot.lane.b32.xlu0 %v982, 109
      %v1011 = vpop.permute.xlu0 %1010
      %1012 = vrot.lane.b32.xlu0 %v983, 109
      %v1013 = vpop.permute.xlu0 %1012
      %1020 = vrot.lane.b32.xlu0 %v864, 112
      %v1021 = vpop.permute.xlu0 %1020
      %1022 = vrot.lane.b32.xlu0 %v866, 112
      %v1023 = vpop.permute.xlu0 %1022
      %1024 = vrot.lane.b32.xlu0 %v868, 112
      %v1025 = vpop.permute.xlu0 %1024
      %1026 = vrot.lane.b32.xlu0 %v870, 112
      %v1027 = vpop.permute.xlu0 %1026
      %vm1028 = vcmask 785408
      %v1029 = vsel %vm1028, %v1021, 0
      %v1031 = vsel %vm1028, %v1023, 0
      %v1033 = vsel %vm1028, %v1025, 0
      %v1035 = vsel %vm1028, %v1027, 0
      %1037 = vmatprep.subr.mxu0 0.0
      %1038 = vmatpush1.msra.mxu0 0.0
      %1039 = vmatprep.subr.mxu0 0.0
      %1040 = vmatpush1.msra.mxu0 0.0
      %1041 = vmatprep.subr.mxu0 0.0
      %1042 = vmatpush1.msra.mxu0 0.0
      %1043 = vmatprep.subr.mxu0 0.0
      %1044 = vmatpush1.msra.mxu0 0.0
      %1045 = vmatprep.subr.mxu0 0.0
      %1046 = vmatpush1.msra.mxu0 %v1013
      %1047 = vmatprep.subr.mxu0 0.0
      %1048 = vmatpush1.msra.mxu0 %v1011
      %1049 = vmatprep.subr.mxu0 0.0
      %1050 = vmatpush1.msra.mxu0 %v1007
      %1051 = vmatprep.subr.mxu0 0.0
      %1052 = vmatpush1.msra.mxu0 %v1005
      %1053 = vmatprep.subr.mxu0 0.0
      %1054 = vmatpush1.msra.mxu0 %v1001
      %1055 = vmatprep.subr.mxu0 0.0
      %1056 = vmatpush1.msra.mxu0 %v999
      %1057 = vmatprep.subr.mxu0 0.0
      %1058 = vmatpush1.msra.mxu0 %v995
      %1059 = vmatprep.subr.mxu0 0.0
      %1060 = vmatpush1.msra.mxu0 %v993
      %1061 = vmatprep.subr.mxu0 0.0
      %1062 = vmatpush1.msra.mxu0 %v989
      %1063 = vmatprep.subr.mxu0 0.0
      %1064 = vmatpush1.msra.mxu0 %v987
      %1065 = vmatprep.subr.mxu0 0.0
      %1066 = vmatpush1.msra.mxu0 %v983
      %1067 = vmatprep.subr.mxu0 0.0
      %1068 = vmatpush1.msra.mxu0 %v982
      %1069 = vmatprep.subr.mxu0 0.0
      %1070 = vmatpush2.msra.mxu0 0.0
      %1071 = vmatprep.subr.mxu0 0.0
      %1072 = vmatpush2.msra.mxu0 0.0
      %1073 = vmatprep.subr.mxu0 0.0
      %1074 = vmatpush2.msra.mxu0 0.0
      %1075 = vmatprep.subr.mxu0 0.0
      %1076 = vmatpush2.msra.mxu0 0.0
      %1077 = vmatprep.subr.mxu0 0.0
      %1078 = vmatpush2.msra.mxu0 0.0
      %1079 = vmatprep.subr.mxu0 0.0
      %1080 = vmatpush2.msra.mxu0 0.0
      %1081 = vmatprep.subr.mxu0 0.0
      %1082 = vmatpush2.msra.mxu0 0.0
      %1083 = vmatprep.subr.mxu0 0.0
      %1084 = vmatpush2.msra.mxu0 0.0
      %1085 = vmatprep.subr.mxu0 0.0
      %1086 = vmatpush2.msra.mxu0 0.0
      %1087 = vmatprep.subr.mxu0 0.0
      %1088 = vmatpush2.msra.mxu0 0.0
      %1089 = vmatprep.subr.mxu0 0.0
      %1090 = vmatpush2.msra.mxu0 0.0
      %1091 = vmatprep.subr.mxu0 0.0
      %1092 = vmatpush2.msra.mxu0 0.0
      %1093 = vmatprep.subr.mxu0 0.0
      %1094 = vmatpush2.msra.mxu0 0.0
      %1095 = vmatprep.subr.mxu0 0.0
      %1096 = vmatpush2.msra.mxu0 0.0
      %1097 = vmatprep.subr.mxu0 0.0
      %1098 = vmatpush2.msra.mxu0 0.0
      %1099 = vmatprep.subr.mxu0 0.0
      %1100 = vmatpush2.msra.mxu0 0.0
      %1101 = vmatprep.mubr.f32.mxu0 0.0
      %1102 = vmatmul.mubr.f32.gmra.mxu0 %v1029
      %v1103 = vpop.f32.mrf.mxu0
      %v1104 = vadd.f32 0.0, %v1103
      %v1105 = vpop.f32.mrf.mxu0
      %1106 = vmatprep.mubr.f32.mxu0 0.0
      %1107 = vmatmul.mubr.f32.gmra.mxu0 %v1031
      %v1108 = vpop.f32.mrf.mxu0
      %v1109 = vadd.f32 0.0, %v1108
      %v1110 = vpop.f32.mrf.mxu0
      %1111 = vmatprep.mubr.f32.mxu0 0.0
      %1112 = vmatmul.mubr.f32.gmra.mxu0 %v1033
      %v1113 = vpop.f32.mrf.mxu0
      %v1114 = vadd.f32 0.0, %v1113
      %v1115 = vpop.f32.mrf.mxu0
      %1116 = vmatprep.mubr.f32.mxu0 0.0
      %1117 = vmatmul.mubr.f32.gmra.mxu0 %v1035
      %v1118 = vpop.f32.mrf.mxu0
      %v1119 = vadd.f32 0.0, %v1118
      %v1120 = vpop.f32.mrf.mxu0
      %1121 = vdwg.mxu0
      %vm1122 = vcmask 130048
      %v1123 = vsel %vm1122, %v864, 0
      %v1125 = vsel %vm1122, %v866, 0
      %v1127 = vsel %vm1122, %v868, 0
      %v1129 = vsel %vm1122, %v870, 0
      %1131 = vmatprep.subr.mxu0 0.0
      %1132 = vmatpush1.msra.mxu0 %v973
      %1133 = vmatprep.subr.mxu0 0.0
      %1134 = vmatpush1.msra.mxu0 %v971
      %1135 = vmatprep.subr.mxu0 0.0
      %1136 = vmatpush1.msra.mxu0 %v967
      %1137 = vmatprep.subr.mxu0 0.0
      %1138 = vmatpush1.msra.mxu0 %v965
      %1139 = vmatprep.subr.mxu0 0.0
      %1140 = vmatpush1.msra.mxu0 %v961
      %1141 = vmatprep.subr.mxu0 0.0
      %1142 = vmatpush1.msra.mxu0 %v959
      %1143 = vmatprep.subr.mxu0 0.0
      %1144 = vmatpush1.msra.mxu0 %v955
      %1145 = vmatprep.subr.mxu0 0.0
      %1146 = vmatpush1.msra.mxu0 %v953
      %1147 = vmatprep.subr.mxu0 0.0
      %1148 = vmatpush1.msra.mxu0 %v949
      %1149 = vmatprep.subr.mxu0 0.0
      %1150 = vmatpush1.msra.mxu0 %v947
      %1151 = vmatprep.subr.mxu0 0.0
      %1152 = vmatpush1.msra.mxu0 %v943
      %1153 = vmatprep.subr.mxu0 0.0
      %1154 = vmatpush1.msra.mxu0 %v941
      %1155 = vmatprep.subr.mxu0 0.0
      %1156 = vmatpush1.msra.mxu0 %v937
      %1157 = vmatprep.subr.mxu0 0.0
      %1158 = vmatpush1.msra.mxu0 %v935
      %1159 = vmatprep.subr.mxu0 0.0
      %1160 = vmatpush1.msra.mxu0 %v931
      %1161 = vmatprep.subr.mxu0 0.0
      %1162 = vmatpush1.msra.mxu0 %v930
      %1163 = vmatprep.subr.mxu0 0.0
      %1164 = vmatpush2.msra.mxu0 0.0
      %1165 = vmatprep.subr.mxu0 0.0
      %1166 = vmatpush2.msra.mxu0 0.0
      %1167 = vmatprep.subr.mxu0 0.0
      %1168 = vmatpush2.msra.mxu0 0.0
      %1169 = vmatprep.subr.mxu0 0.0
      %1170 = vmatpush2.msra.mxu0 0.0
      %1171 = vmatprep.subr.mxu0 0.0
      %1172 = vmatpush2.msra.mxu0 0.0
      %1173 = vmatprep.subr.mxu0 0.0
      %1174 = vmatpush2.msra.mxu0 0.0
      %1175 = vmatprep.subr.mxu0 0.0
      %1176 = vmatpush2.msra.mxu0 0.0
      %1177 = vmatprep.subr.mxu0 0.0
      %1178 = vmatpush2.msra.mxu0 0.0
      %1179 = vmatprep.subr.mxu0 0.0
      %1180 = vmatpush2.msra.mxu0 0.0
      %1181 = vmatprep.subr.mxu0 0.0
      %1182 = vmatpush2.msra.mxu0 0.0
      %1183 = vmatprep.subr.mxu0 0.0
      %1184 = vmatpush2.msra.mxu0 0.0
      %1185 = vmatprep.subr.mxu0 0.0
      %1186 = vmatpush2.msra.mxu0 0.0
      %1187 = vmatprep.subr.mxu0 0.0
      %1188 = vmatpush2.msra.mxu0 0.0
      %1189 = vmatprep.subr.mxu0 0.0
      %1190 = vmatpush2.msra.mxu0 0.0
      %1191 = vmatprep.subr.mxu0 0.0
      %1192 = vmatpush2.msra.mxu0 %v979
      %1193 = vmatprep.subr.mxu0 0.0
      %1194 = vmatpush2.msra.mxu0 %v977
      %1195 = vmatprep.mubr.f32.mxu0 %v1123
      %1196 = vmatmul.mubr.f32.gmra.mxu0 %v863
      %v1197 = vpop.f32.mrf.mxu0
      %v1198 = vadd.f32 %v1104, %v1197
      %v1199 = vpop.f32.mrf.mxu0
      %1200 = vmatprep.mubr.f32.mxu0 %v1125
      %1201 = vmatmul.mubr.f32.gmra.mxu0 %v865
      %v1202 = vpop.f32.mrf.mxu0
      %v1203 = vadd.f32 %v1109, %v1202
      %v1204 = vpop.f32.mrf.mxu0
      %1205 = vmatprep.mubr.f32.mxu0 %v1127
      %1206 = vmatmul.mubr.f32.gmra.mxu0 %v867
      %v1207 = vpop.f32.mrf.mxu0
      %v1208 = vadd.f32 %v1114, %v1207
      %v1209 = vpop.f32.mrf.mxu0
      %1210 = vmatprep.mubr.f32.mxu0 %v1129
      %1211 = vmatmul.mubr.f32.gmra.mxu0 %v869
      %v1212 = vpop.f32.mrf.mxu0
      %v1213 = vadd.f32 %v1119, %v1212
      %v1214 = vpop.f32.mrf.mxu0
      %1215 = vdwg.mxu0
      %v1216 = vld [vmem:[%s746] sm:$0xff]
      %v1217 = vld [vmem:[%s746 + $0x8] sm:$0xff]
      %1220 = vrot.lane.b32.xlu0 %v1216, 127
      %v1221 = vpop.permute.xlu0 %1220
      %1222 = vrot.lane.b32.xlu0 %v1217, 127
      %v1223 = vpop.permute.xlu0 %1222
      %1226 = vrot.lane.b32.xlu0 %v1216, 126
      %v1227 = vpop.permute.xlu0 %1226
      %1228 = vrot.lane.b32.xlu0 %v1217, 126
      %v1229 = vpop.permute.xlu0 %1228
      %1232 = vrot.lane.b32.xlu0 %v1216, 119
      %v1233 = vpop.permute.xlu0 %1232
      %1234 = vrot.lane.b32.xlu0 %v1217, 119
      %v1235 = vpop.permute.xlu0 %1234
      %1238 = vrot.lane.b32.xlu0 %v1216, 118
      %v1239 = vpop.permute.xlu0 %1238
      %1240 = vrot.lane.b32.xlu0 %v1217, 118
      %v1241 = vpop.permute.xlu0 %1240
      %1244 = vrot.lane.b32.xlu0 %v1216, 117
      %v1245 = vpop.permute.xlu0 %1244
      %1246 = vrot.lane.b32.xlu0 %v1217, 117
      %v1247 = vpop.permute.xlu0 %1246
      %1254 = vrot.lane.b32.xlu0 %v864, 16
      %v1255 = vpop.permute.xlu0 %1254
      %1256 = vrot.lane.b32.xlu0 %v871, 16
      %v1257 = vpop.permute.xlu0 %1256
      %1258 = vrot.lane.b32.xlu0 %v866, 16
      %v1259 = vpop.permute.xlu0 %1258
      %1260 = vrot.lane.b32.xlu0 %v872, 16
      %v1261 = vpop.permute.xlu0 %1260
      %1262 = vrot.lane.b32.xlu0 %v868, 16
      %v1263 = vpop.permute.xlu0 %1262
      %1264 = vrot.lane.b32.xlu0 %v873, 16
      %v1265 = vpop.permute.xlu0 %1264
      %1266 = vrot.lane.b32.xlu0 %v870, 16
      %v1267 = vpop.permute.xlu0 %1266
      %1268 = vrot.lane.b32.xlu0 %v874, 16
      %v1269 = vpop.permute.xlu0 %1268
      %v1270 = vsel %vm1122, %v1255, %v1257
      %v1271 = vsel %vm1122, %v1259, %v1261
      %v1272 = vsel %vm1122, %v1263, %v1265
      %v1273 = vsel %vm1122, %v1267, %v1269
      %v1274 = vsel %vm1028, %v1270, 0
      %v1276 = vsel %vm1028, %v1271, 0
      %v1278 = vsel %vm1028, %v1272, 0
      %v1280 = vsel %vm1028, %v1273, 0
      %1282 = vmatprep.subr.mxu0 0.0
      %1283 = vmatpush1.msra.mxu0 0.0
      %1284 = vmatprep.subr.mxu0 0.0
      %1285 = vmatpush1.msra.mxu0 0.0
      %1286 = vmatprep.subr.mxu0 0.0
      %1287 = vmatpush1.msra.mxu0 0.0
      %1288 = vmatprep.subr.mxu0 0.0
      %1289 = vmatpush1.msra.mxu0 0.0
      %1290 = vmatprep.subr.mxu0 0.0
      %1291 = vmatpush1.msra.mxu0 %v1247
      %1292 = vmatprep.subr.mxu0 0.0
      %1293 = vmatpush1.msra.mxu0 %v1245
      %1294 = vmatprep.subr.mxu0 0.0
      %1295 = vmatpush1.msra.mxu0 %v1241
      %1296 = vmatprep.subr.mxu0 0.0
      %1297 = vmatpush1.msra.mxu0 %v1239
      %1298 = vmatprep.subr.mxu0 0.0
      %1299 = vmatpush1.msra.mxu0 %v1235
      %1300 = vmatprep.subr.mxu0 0.0
      %1301 = vmatpush1.msra.mxu0 %v1233
      %1302 = vmatprep.subr.mxu0 0.0
      %1303 = vmatpush1.msra.mxu0 %v1229
      %1304 = vmatprep.subr.mxu0 0.0
      %1305 = vmatpush1.msra.mxu0 %v1227
      %1306 = vmatprep.subr.mxu0 0.0
      %1307 = vmatpush1.msra.mxu0 %v1223
      %1308 = vmatprep.subr.mxu0 0.0
      %1309 = vmatpush1.msra.mxu0 %v1221
      %1310 = vmatprep.subr.mxu0 0.0
      %1311 = vmatpush1.msra.mxu0 %v1217
      %1312 = vmatprep.subr.mxu0 0.0
      %1313 = vmatpush1.msra.mxu0 %v1216
      %1314 = vmatprep.subr.mxu0 0.0
      %1315 = vmatpush2.msra.mxu0 0.0
      %1316 = vmatprep.subr.mxu0 0.0
      %1317 = vmatpush2.msra.mxu0 0.0
      %1318 = vmatprep.subr.mxu0 0.0
      %1319 = vmatpush2.msra.mxu0 0.0
      %1320 = vmatprep.subr.mxu0 0.0
      %1321 = vmatpush2.msra.mxu0 0.0
      %1322 = vmatprep.subr.mxu0 0.0
      %1323 = vmatpush2.msra.mxu0 0.0
      %1324 = vmatprep.subr.mxu0 0.0
      %1325 = vmatpush2.msra.mxu0 0.0
      %1326 = vmatprep.subr.mxu0 0.0
      %1327 = vmatpush2.msra.mxu0 0.0
      %1328 = vmatprep.subr.mxu0 0.0
      %1329 = vmatpush2.msra.mxu0 0.0
      %1330 = vmatprep.subr.mxu0 0.0
      %1331 = vmatpush2.msra.mxu0 0.0
      %1332 = vmatprep.subr.mxu0 0.0
      %1333 = vmatpush2.msra.mxu0 0.0
      %1334 = vmatprep.subr.mxu0 0.0
      %1335 = vmatpush2.msra.mxu0 0.0
      %1336 = vmatprep.subr.mxu0 0.0
      %1337 = vmatpush2.msra.mxu0 0.0
      %1338 = vmatprep.subr.mxu0 0.0
      %1339 = vmatpush2.msra.mxu0 0.0
      %1340 = vmatprep.subr.mxu0 0.0
      %1341 = vmatpush2.msra.mxu0 0.0
      %1342 = vmatprep.subr.mxu0 0.0
      %1343 = vmatpush2.msra.mxu0 0.0
      %1344 = vmatprep.subr.mxu0 0.0
      %1345 = vmatpush2.msra.mxu0 0.0
      %1346 = vmatprep.mubr.f32.mxu0 0.0
      %1347 = vmatmul.mubr.f32.gmra.mxu0 %v1274
      %v1348 = vpop.f32.mrf.mxu0
      %v1349 = vadd.f32 0.0, %v1348
      %v1350 = vpop.f32.mrf.mxu0
      %1351 = vmatprep.mubr.f32.mxu0 0.0
      %1352 = vmatmul.mubr.f32.gmra.mxu0 %v1276
      %v1353 = vpop.f32.mrf.mxu0
      %v1354 = vadd.f32 0.0, %v1353
      %v1355 = vpop.f32.mrf.mxu0
      %1356 = vmatprep.mubr.f32.mxu0 0.0
      %1357 = vmatmul.mubr.f32.gmra.mxu0 %v1278
      %v1358 = vpop.f32.mrf.mxu0
      %v1359 = vadd.f32 0.0, %v1358
      %v1360 = vpop.f32.mrf.mxu0
      %1361 = vmatprep.mubr.f32.mxu0 0.0
      %1362 = vmatmul.mubr.f32.gmra.mxu0 %v1280
      %v1363 = vpop.f32.mrf.mxu0
      %v1364 = vadd.f32 0.0, %v1363
      %v1365 = vpop.f32.mrf.mxu0
      %1366 = vdwg.mxu0
      %v1367 = vadd.f32 %v1198, %v1349
      %v1368 = vadd.f32 %v1203, %v1354
      %v1369 = vadd.f32 %v1208, %v1359
      %v1370 = vadd.f32 %v1213, %v1364
      %v1371 = vld [vmem:[%s812] sm:$0xff]
      %v1372 = vld [vmem:[%s812 + $0x8] sm:$0xff]
      %1375 = vrot.lane.b32.xlu0 %v1371, 127
      %v1376 = vpop.permute.xlu0 %1375
      %1377 = vrot.lane.b32.xlu0 %v1372, 127
      %v1378 = vpop.permute.xlu0 %1377
      %1381 = vrot.lane.b32.xlu0 %v1371, 119
      %v1382 = vpop.permute.xlu0 %1381
      %1383 = vrot.lane.b32.xlu0 %v1372, 119
      %v1384 = vpop.permute.xlu0 %1383
      %1387 = vrot.lane.b32.xlu0 %v1371, 118
      %v1388 = vpop.permute.xlu0 %1387
      %1389 = vrot.lane.b32.xlu0 %v1372, 118
      %v1390 = vpop.permute.xlu0 %1389
      %1397 = vrot.lane.b32.xlu0 %v871, 48
      %v1398 = vpop.permute.xlu0 %1397
      %1399 = vrot.lane.b32.xlu0 %v875, 48
      %v1400 = vpop.permute.xlu0 %1399
      %1401 = vrot.lane.b32.xlu0 %v872, 48
      %v1402 = vpop.permute.xlu0 %1401
      %1403 = vrot.lane.b32.xlu0 %v876, 48
      %v1404 = vpop.permute.xlu0 %1403
      %1405 = vrot.lane.b32.xlu0 %v873, 48
      %v1406 = vpop.permute.xlu0 %1405
      %1407 = vrot.lane.b32.xlu0 %v877, 48
      %v1408 = vpop.permute.xlu0 %1407
      %1409 = vrot.lane.b32.xlu0 %v874, 48
      %v1410 = vpop.permute.xlu0 %1409
      %1411 = vrot.lane.b32.xlu0 %v878, 48
      %v1412 = vpop.permute.xlu0 %1411
      %v1413 = vsel %vm783, %v1398, %v1400
      %v1414 = vsel %vm783, %v1402, %v1404
      %v1415 = vsel %vm783, %v1406, %v1408
      %v1416 = vsel %vm783, %v1410, %v1412
      %vm1417 = vcmask 523264
      %v1418 = vsel %vm1417, %v1413, 0
      %v1420 = vsel %vm1417, %v1414, 0
      %v1422 = vsel %vm1417, %v1415, 0
      %v1424 = vsel %vm1417, %v1416, 0
      %1426 = vmatprep.subr.mxu0 0.0
      %1427 = vmatpush1.msra.mxu0 0.0
      %1428 = vmatprep.subr.mxu0 0.0
      %1429 = vmatpush1.msra.mxu0 0.0
      %1430 = vmatprep.subr.mxu0 0.0
      %1431 = vmatpush1.msra.mxu0 0.0
      %1432 = vmatprep.subr.mxu0 0.0
      %1433 = vmatpush1.msra.mxu0 0.0
      %1434 = vmatprep.subr.mxu0 0.0
      %1435 = vmatpush1.msra.mxu0 0.0
      %1436 = vmatprep.subr.mxu0 0.0
      %1437 = vmatpush1.msra.mxu0 0.0
      %1438 = vmatprep.subr.mxu0 0.0
      %1439 = vmatpush1.msra.mxu0 0.0
      %1440 = vmatprep.subr.mxu0 0.0
      %1441 = vmatpush1.msra.mxu0 0.0
      %1442 = vmatprep.subr.mxu0 0.0
      %1443 = vmatpush1.msra.mxu0 %v1390
      %1444 = vmatprep.subr.mxu0 0.0
      %1445 = vmatpush1.msra.mxu0 %v1388
      %1446 = vmatprep.subr.mxu0 0.0
      %1447 = vmatpush1.msra.mxu0 %v1384
      %1448 = vmatprep.subr.mxu0 0.0
      %1449 = vmatpush1.msra.mxu0 %v1382
      %1450 = vmatprep.subr.mxu0 0.0
      %1451 = vmatpush1.msra.mxu0 %v1378
      %1452 = vmatprep.subr.mxu0 0.0
      %1453 = vmatpush1.msra.mxu0 %v1376
      %1454 = vmatprep.subr.mxu0 0.0
      %1455 = vmatpush1.msra.mxu0 %v1372
      %1456 = vmatprep.subr.mxu0 0.0
      %1457 = vmatpush1.msra.mxu0 %v1371
      %1458 = vmatprep.subr.mxu0 0.0
      %1459 = vmatpush2.msra.mxu0 0.0
      %1460 = vmatprep.subr.mxu0 0.0
      %1461 = vmatpush2.msra.mxu0 0.0
      %1462 = vmatprep.subr.mxu0 0.0
      %1463 = vmatpush2.msra.mxu0 0.0
      %1464 = vmatprep.subr.mxu0 0.0
      %1465 = vmatpush2.msra.mxu0 0.0
      %1466 = vmatprep.subr.mxu0 0.0
      %1467 = vmatpush2.msra.mxu0 0.0
      %1468 = vmatprep.subr.mxu0 0.0
      %1469 = vmatpush2.msra.mxu0 0.0
      %1470 = vmatprep.subr.mxu0 0.0
      %1471 = vmatpush2.msra.mxu0 0.0
      %1472 = vmatprep.subr.mxu0 0.0
      %1473 = vmatpush2.msra.mxu0 0.0
      %1474 = vmatprep.subr.mxu0 0.0
      %1475 = vmatpush2.msra.mxu0 0.0
      %1476 = vmatprep.subr.mxu0 0.0
      %1477 = vmatpush2.msra.mxu0 0.0
      %1478 = vmatprep.subr.mxu0 0.0
      %1479 = vmatpush2.msra.mxu0 0.0
      %1480 = vmatprep.subr.mxu0 0.0
      %1481 = vmatpush2.msra.mxu0 0.0
      %1482 = vmatprep.subr.mxu0 0.0
      %1483 = vmatpush2.msra.mxu0 0.0
      %1484 = vmatprep.subr.mxu0 0.0
      %1485 = vmatpush2.msra.mxu0 0.0
      %1486 = vmatprep.subr.mxu0 0.0
      %1487 = vmatpush2.msra.mxu0 0.0
      %1488 = vmatprep.subr.mxu0 0.0
      %1489 = vmatpush2.msra.mxu0 0.0
      %1490 = vmatprep.mubr.f32.mxu0 0.0
      %1491 = vmatmul.mubr.f32.gmra.mxu0 %v1418
      %v1492 = vpop.f32.mrf.mxu0
      %v1493 = vadd.f32 0.0, %v1492
      %v1494 = vpop.f32.mrf.mxu0
      %1495 = vmatprep.mubr.f32.mxu0 0.0
      %1496 = vmatmul.mubr.f32.gmra.mxu0 %v1420
      %v1497 = vpop.f32.mrf.mxu0
      %v1498 = vadd.f32 0.0, %v1497
      %v1499 = vpop.f32.mrf.mxu0
      %1500 = vmatprep.mubr.f32.mxu0 0.0
      %1501 = vmatmul.mubr.f32.gmra.mxu0 %v1422
      %v1502 = vpop.f32.mrf.mxu0
      %v1503 = vadd.f32 0.0, %v1502
      %v1504 = vpop.f32.mrf.mxu0
      %1505 = vmatprep.mubr.f32.mxu0 0.0
      %1506 = vmatmul.mubr.f32.gmra.mxu0 %v1424
      %v1507 = vpop.f32.mrf.mxu0
      %v1508 = vadd.f32 0.0, %v1507
      %v1509 = vpop.f32.mrf.mxu0
      %1510 = vdwg.mxu0
      %v1511 = vadd.f32 %v1367, %v1493
      %v1512 = vadd.f32 %v1368, %v1498
      %v1513 = vadd.f32 %v1369, %v1503
      %v1514 = vadd.f32 %v1370, %v1508
      %1515 = vrot.lane.b32.xlu0 %v982, 126
      %v1516 = vpop.permute.xlu0 %1515
      %1517 = vrot.lane.b32.xlu0 %v983, 126
      %v1518 = vpop.permute.xlu0 %1517
      %1521 = vrot.lane.b32.xlu0 %v982, 117
      %v1522 = vpop.permute.xlu0 %1521
      %1523 = vrot.lane.b32.xlu0 %v983, 117
      %v1524 = vpop.permute.xlu0 %1523
      %1527 = vrot.lane.b32.xlu0 %v982, 108
      %v1528 = vpop.permute.xlu0 %1527
      %1529 = vrot.lane.b32.xlu0 %v983, 108
      %v1530 = vpop.permute.xlu0 %1529
      %1541 = vrot.lane.b32.xlu0 %v880, 32
      %v1542 = vpop.permute.xlu0 %1541
      %1543 = vrot.lane.b32.xlu0 %v884, 32
      %v1544 = vpop.permute.xlu0 %1543
      %1545 = vrot.lane.b32.xlu0 %v881, 32
      %v1546 = vpop.permute.xlu0 %1545
      %1547 = vrot.lane.b32.xlu0 %v885, 32
      %v1548 = vpop.permute.xlu0 %1547
      %1549 = vrot.lane.b32.xlu0 %v882, 32
      %v1550 = vpop.permute.xlu0 %1549
      %1551 = vrot.lane.b32.xlu0 %v886, 32
      %v1552 = vpop.permute.xlu0 %1551
      %1553 = vrot.lane.b32.xlu0 %v883, 32
      %v1554 = vpop.permute.xlu0 %1553
      %1555 = vrot.lane.b32.xlu0 %v887, 32
      %v1556 = vpop.permute.xlu0 %1555
      %v1557 = vsel %vm235, %v1542, %v1544
      %v1558 = vsel %vm235, %v1546, %v1548
      %v1559 = vsel %vm235, %v1550, %v1552
      %v1560 = vsel %vm235, %v1554, %v1556
      %v1565 = vsel %vm1122, %v1544, 0
      %v1567 = vsel %vm1122, %v1548, 0
      %v1569 = vsel %vm1122, %v1552, 0
      %v1571 = vsel %vm1122, %v1556, 0
      %1573 = vmatprep.subr.mxu0 0.0
      %1574 = vmatpush1.msra.mxu0 %v1013
      %1575 = vmatprep.subr.mxu0 0.0
      %1576 = vmatpush1.msra.mxu0 %v1011
      %1577 = vmatprep.subr.mxu0 0.0
      %1578 = vmatpush1.msra.mxu0 %v1007
      %1579 = vmatprep.subr.mxu0 0.0
      %1580 = vmatpush1.msra.mxu0 %v1005
      %1581 = vmatprep.subr.mxu0 0.0
      %1582 = vmatpush1.msra.mxu0 %v1524
      %1583 = vmatprep.subr.mxu0 0.0
      %1584 = vmatpush1.msra.mxu0 %v1522
      %1585 = vmatprep.subr.mxu0 0.0
      %1586 = vmatpush1.msra.mxu0 %v1001
      %1587 = vmatprep.subr.mxu0 0.0
      %1588 = vmatpush1.msra.mxu0 %v999
      %1589 = vmatprep.subr.mxu0 0.0
      %1590 = vmatpush1.msra.mxu0 %v995
      %1591 = vmatprep.subr.mxu0 0.0
      %1592 = vmatpush1.msra.mxu0 %v993
      %1593 = vmatprep.subr.mxu0 0.0
      %1594 = vmatpush1.msra.mxu0 %v1518
      %1595 = vmatprep.subr.mxu0 0.0
      %1596 = vmatpush1.msra.mxu0 %v1516
      %1597 = vmatprep.subr.mxu0 0.0
      %1598 = vmatpush1.msra.mxu0 %v989
      %1599 = vmatprep.subr.mxu0 0.0
      %1600 = vmatpush1.msra.mxu0 %v987
      %1601 = vmatprep.subr.mxu0 0.0
      %1602 = vmatpush1.msra.mxu0 %v983
      %1603 = vmatprep.subr.mxu0 0.0
      %1604 = vmatpush1.msra.mxu0 %v982
      %1605 = vmatprep.subr.mxu0 0.0
      %1606 = vmatpush2.msra.mxu0 0.0
      %1607 = vmatprep.subr.mxu0 0.0
      %1608 = vmatpush2.msra.mxu0 0.0
      %1609 = vmatprep.subr.mxu0 0.0
      %1610 = vmatpush2.msra.mxu0 0.0
      %1611 = vmatprep.subr.mxu0 0.0
      %1612 = vmatpush2.msra.mxu0 0.0
      %1613 = vmatprep.subr.mxu0 0.0
      %1614 = vmatpush2.msra.mxu0 0.0
      %1615 = vmatprep.subr.mxu0 0.0
      %1616 = vmatpush2.msra.mxu0 0.0
      %1617 = vmatprep.subr.mxu0 0.0
      %1618 = vmatpush2.msra.mxu0 0.0
      %1619 = vmatprep.subr.mxu0 0.0
      %1620 = vmatpush2.msra.mxu0 0.0
      %1621 = vmatprep.subr.mxu0 0.0
      %1622 = vmatpush2.msra.mxu0 0.0
      %1623 = vmatprep.subr.mxu0 0.0
      %1624 = vmatpush2.msra.mxu0 0.0
      %1625 = vmatprep.subr.mxu0 0.0
      %1626 = vmatpush2.msra.mxu0 0.0
      %1627 = vmatprep.subr.mxu0 0.0
      %1628 = vmatpush2.msra.mxu0 0.0
      %1629 = vmatprep.subr.mxu0 0.0
      %1630 = vmatpush2.msra.mxu0 0.0
      %1631 = vmatprep.subr.mxu0 0.0
      %1632 = vmatpush2.msra.mxu0 0.0
      %1633 = vmatprep.subr.mxu0 0.0
      %1634 = vmatpush2.msra.mxu0 %v1530
      %1635 = vmatprep.subr.mxu0 0.0
      %1636 = vmatpush2.msra.mxu0 %v1528
      %1637 = vmatprep.mubr.f32.mxu0 %v1565
      %1638 = vmatmul.mubr.f32.gmra.mxu0 %v1557
      %v1639 = vpop.f32.mrf.mxu0
      %v1640 = vadd.f32 0.0, %v1639
      %v1641 = vpop.f32.mrf.mxu0
      %1642 = vmatprep.mubr.f32.mxu0 %v1567
      %1643 = vmatmul.mubr.f32.gmra.mxu0 %v1558
      %v1644 = vpop.f32.mrf.mxu0
      %v1645 = vadd.f32 0.0, %v1644
      %v1646 = vpop.f32.mrf.mxu0
      %1647 = vmatprep.mubr.f32.mxu0 %v1569
      %1648 = vmatmul.mubr.f32.gmra.mxu0 %v1559
      %v1649 = vpop.f32.mrf.mxu0
      %v1650 = vadd.f32 0.0, %v1649
      %v1651 = vpop.f32.mrf.mxu0
      %1652 = vmatprep.mubr.f32.mxu0 %v1571
      %1653 = vmatmul.mubr.f32.gmra.mxu0 %v1560
      %v1654 = vpop.f32.mrf.mxu0
      %v1655 = vadd.f32 0.0, %v1654
      %v1656 = vpop.f32.mrf.mxu0
      %1657 = vdwg.mxu0
      %1658 = vrot.lane.b32.xlu0 %v935, 127
      %v1659 = vpop.permute.xlu0 %1658
      %1660 = vrot.lane.b32.xlu0 %v937, 127
      %v1661 = vpop.permute.xlu0 %1660
      %1662 = vrot.lane.b32.xlu0 %v947, 127
      %v1663 = vpop.permute.xlu0 %1662
      %1664 = vrot.lane.b32.xlu0 %v949, 127
      %v1665 = vpop.permute.xlu0 %1664
      %1666 = vrot.lane.b32.xlu0 %v953, 127
      %v1667 = vpop.permute.xlu0 %1666
      %1668 = vrot.lane.b32.xlu0 %v955, 127
      %v1669 = vpop.permute.xlu0 %1668
      %1670 = vrot.lane.b32.xlu0 %v965, 127
      %v1671 = vpop.permute.xlu0 %1670
      %1672 = vrot.lane.b32.xlu0 %v967, 127
      %v1673 = vpop.permute.xlu0 %1672
      %1674 = vrot.lane.b32.xlu0 %v971, 127
      %v1675 = vpop.permute.xlu0 %1674
      %1676 = vrot.lane.b32.xlu0 %v973, 127
      %v1677 = vpop.permute.xlu0 %1676
      %v1688 = vsel %vm1028, %v880, 0
      %v1690 = vsel %vm1028, %v881, 0
      %v1692 = vsel %vm1028, %v882, 0
      %v1694 = vsel %vm1028, %v883, 0
      %1696 = vmatprep.subr.mxu0 0.0
      %1697 = vmatpush1.msra.mxu0 0.0
      %1698 = vmatprep.subr.mxu0 0.0
      %1699 = vmatpush1.msra.mxu0 0.0
      %1700 = vmatprep.subr.mxu0 0.0
      %1701 = vmatpush1.msra.mxu0 0.0
      %1702 = vmatprep.subr.mxu0 0.0
      %1703 = vmatpush1.msra.mxu0 0.0
      %1704 = vmatprep.subr.mxu0 0.0
      %1705 = vmatpush1.msra.mxu0 %v1677
      %1706 = vmatprep.subr.mxu0 0.0
      %1707 = vmatpush1.msra.mxu0 %v1675
      %1708 = vmatprep.subr.mxu0 0.0
      %1709 = vmatpush1.msra.mxu0 %v1673
      %1710 = vmatprep.subr.mxu0 0.0
      %1711 = vmatpush1.msra.mxu0 %v1671
      %1712 = vmatprep.subr.mxu0 0.0
      %1713 = vmatpush1.msra.mxu0 %v1669
      %1714 = vmatprep.subr.mxu0 0.0
      %1715 = vmatpush1.msra.mxu0 %v1667
      %1716 = vmatprep.subr.mxu0 0.0
      %1717 = vmatpush1.msra.mxu0 %v1665
      %1718 = vmatprep.subr.mxu0 0.0
      %1719 = vmatpush1.msra.mxu0 %v1663
      %1720 = vmatprep.subr.mxu0 0.0
      %1721 = vmatpush1.msra.mxu0 %v1661
      %1722 = vmatprep.subr.mxu0 0.0
      %1723 = vmatpush1.msra.mxu0 %v1659
      %1724 = vmatprep.subr.mxu0 0.0
      %1725 = vmatpush1.msra.mxu0 %v937
      %1726 = vmatprep.subr.mxu0 0.0
      %1727 = vmatpush1.msra.mxu0 %v935
      %1728 = vmatprep.subr.mxu0 0.0
      %1729 = vmatpush2.msra.mxu0 0.0
      %1730 = vmatprep.subr.mxu0 0.0
      %1731 = vmatpush2.msra.mxu0 0.0
      %1732 = vmatprep.subr.mxu0 0.0
      %1733 = vmatpush2.msra.mxu0 0.0
      %1734 = vmatprep.subr.mxu0 0.0
      %1735 = vmatpush2.msra.mxu0 0.0
      %1736 = vmatprep.subr.mxu0 0.0
      %1737 = vmatpush2.msra.mxu0 0.0
      %1738 = vmatprep.subr.mxu0 0.0
      %1739 = vmatpush2.msra.mxu0 0.0
      %1740 = vmatprep.subr.mxu0 0.0
      %1741 = vmatpush2.msra.mxu0 0.0
      %1742 = vmatprep.subr.mxu0 0.0
      %1743 = vmatpush2.msra.mxu0 0.0
      %1744 = vmatprep.subr.mxu0 0.0
      %1745 = vmatpush2.msra.mxu0 0.0
      %1746 = vmatprep.subr.mxu0 0.0
      %1747 = vmatpush2.msra.mxu0 0.0
      %1748 = vmatprep.subr.mxu0 0.0
      %1749 = vmatpush2.msra.mxu0 0.0
      %1750 = vmatprep.subr.mxu0 0.0
      %1751 = vmatpush2.msra.mxu0 0.0
      %1752 = vmatprep.subr.mxu0 0.0
      %1753 = vmatpush2.msra.mxu0 0.0
      %1754 = vmatprep.subr.mxu0 0.0
      %1755 = vmatpush2.msra.mxu0 0.0
      %1756 = vmatprep.subr.mxu0 0.0
      %1757 = vmatpush2.msra.mxu0 0.0
      %1758 = vmatprep.subr.mxu0 0.0
      %1759 = vmatpush2.msra.mxu0 0.0
      %1760 = vmatprep.mubr.f32.mxu0 0.0
      %1761 = vmatmul.mubr.f32.gmra.mxu0 %v1688
      %v1762 = vpop.f32.mrf.mxu0
      %v1763 = vadd.f32 %v1640, %v1762
      %v1764 = vpop.f32.mrf.mxu0
      %1765 = vmatprep.mubr.f32.mxu0 0.0
      %1766 = vmatmul.mubr.f32.gmra.mxu0 %v1690
      %v1767 = vpop.f32.mrf.mxu0
      %v1768 = vadd.f32 %v1645, %v1767
      %v1769 = vpop.f32.mrf.mxu0
      %1770 = vmatprep.mubr.f32.mxu0 0.0
      %1771 = vmatmul.mubr.f32.gmra.mxu0 %v1692
      %v1772 = vpop.f32.mrf.mxu0
      %v1773 = vadd.f32 %v1650, %v1772
      %v1774 = vpop.f32.mrf.mxu0
      %1775 = vmatprep.mubr.f32.mxu0 0.0
      %1776 = vmatmul.mubr.f32.gmra.mxu0 %v1694
      %v1777 = vpop.f32.mrf.mxu0
      %v1778 = vadd.f32 %v1655, %v1777
      %v1779 = vpop.f32.mrf.mxu0
      %1780 = vdwg.mxu0
      %1785 = vrot.lane.b32.xlu0 %v884, 16
      %v1786 = vpop.permute.xlu0 %1785
      %1787 = vrot.lane.b32.xlu0 %v888, 16
      %v1788 = vpop.permute.xlu0 %1787
      %1789 = vrot.lane.b32.xlu0 %v885, 16
      %v1790 = vpop.permute.xlu0 %1789
      %1791 = vrot.lane.b32.xlu0 %v889, 16
      %v1792 = vpop.permute.xlu0 %1791
      %1793 = vrot.lane.b32.xlu0 %v886, 16
      %v1794 = vpop.permute.xlu0 %1793
      %1795 = vrot.lane.b32.xlu0 %v890, 16
      %v1796 = vpop.permute.xlu0 %1795
      %1797 = vrot.lane.b32.xlu0 %v887, 16
      %v1798 = vpop.permute.xlu0 %1797
      %1799 = vrot.lane.b32.xlu0 %v891, 16
      %v1800 = vpop.permute.xlu0 %1799
      %v1801 = vsel %vm1122, %v1786, %v1788
      %v1802 = vsel %vm1122, %v1790, %v1792
      %v1803 = vsel %vm1122, %v1794, %v1796
      %v1804 = vsel %vm1122, %v1798, %v1800
      %1805 = vrot.lane.b32.xlu0 %v1221, 127
      %v1806 = vpop.permute.xlu0 %1805
      %1807 = vrot.lane.b32.xlu0 %v1223, 127
      %v1808 = vpop.permute.xlu0 %1807
      %1809 = vrot.lane.b32.xlu0 %v1233, 127
      %v1810 = vpop.permute.xlu0 %1809
      %1811 = vrot.lane.b32.xlu0 %v1235, 127
      %v1812 = vpop.permute.xlu0 %1811
      %1813 = vrot.lane.b32.xlu0 %v1239, 127
      %v1814 = vpop.permute.xlu0 %1813
      %1815 = vrot.lane.b32.xlu0 %v1241, 127
      %v1816 = vpop.permute.xlu0 %1815
      %v1823 = vsel %vm1417, %v1801, 0
      %v1825 = vsel %vm1417, %v1802, 0
      %v1827 = vsel %vm1417, %v1803, 0
      %v1829 = vsel %vm1417, %v1804, 0
      %1831 = vmatprep.subr.mxu0 0.0
      %1832 = vmatpush1.msra.mxu0 0.0
      %1833 = vmatprep.subr.mxu0 0.0
      %1834 = vmatpush1.msra.mxu0 0.0
      %1835 = vmatprep.subr.mxu0 0.0
      %1836 = vmatpush1.msra.mxu0 0.0
      %1837 = vmatprep.subr.mxu0 0.0
      %1838 = vmatpush1.msra.mxu0 0.0
      %1839 = vmatprep.subr.mxu0 0.0
      %1840 = vmatpush1.msra.mxu0 0.0
      %1841 = vmatprep.subr.mxu0 0.0
      %1842 = vmatpush1.msra.mxu0 0.0
      %1843 = vmatprep.subr.mxu0 0.0
      %1844 = vmatpush1.msra.mxu0 0.0
      %1845 = vmatprep.subr.mxu0 0.0
      %1846 = vmatpush1.msra.mxu0 0.0
      %1847 = vmatprep.subr.mxu0 0.0
      %1848 = vmatpush1.msra.mxu0 %v1816
      %1849 = vmatprep.subr.mxu0 0.0
      %1850 = vmatpush1.msra.mxu0 %v1814
      %1851 = vmatprep.subr.mxu0 0.0
      %1852 = vmatpush1.msra.mxu0 %v1812
      %1853 = vmatprep.subr.mxu0 0.0
      %1854 = vmatpush1.msra.mxu0 %v1810
      %1855 = vmatprep.subr.mxu0 0.0
      %1856 = vmatpush1.msra.mxu0 %v1808
      %1857 = vmatprep.subr.mxu0 0.0
      %1858 = vmatpush1.msra.mxu0 %v1806
      %1859 = vmatprep.subr.mxu0 0.0
      %1860 = vmatpush1.msra.mxu0 %v1223
      %1861 = vmatprep.subr.mxu0 0.0
      %1862 = vmatpush1.msra.mxu0 %v1221
      %1863 = vmatprep.subr.mxu0 0.0
      %1864 = vmatpush2.msra.mxu0 0.0
      %1865 = vmatprep.subr.mxu0 0.0
      %1866 = vmatpush2.msra.mxu0 0.0
      %1867 = vmatprep.subr.mxu0 0.0
      %1868 = vmatpush2.msra.mxu0 0.0
      %1869 = vmatprep.subr.mxu0 0.0
      %1870 = vmatpush2.msra.mxu0 0.0
      %1871 = vmatprep.subr.mxu0 0.0
      %1872 = vmatpush2.msra.mxu0 0.0
      %1873 = vmatprep.subr.mxu0 0.0
      %1874 = vmatpush2.msra.mxu0 0.0
      %1875 = vmatprep.subr.mxu0 0.0
      %1876 = vmatpush2.msra.mxu0 0.0
      %1877 = vmatprep.subr.mxu0 0.0
      %1878 = vmatpush2.msra.mxu0 0.0
      %1879 = vmatprep.subr.mxu0 0.0
      %1880 = vmatpush2.msra.mxu0 0.0
      %1881 = vmatprep.subr.mxu0 0.0
      %1882 = vmatpush2.msra.mxu0 0.0
      %1883 = vmatprep.subr.mxu0 0.0
      %1884 = vmatpush2.msra.mxu0 0.0
      %1885 = vmatprep.subr.mxu0 0.0
      %1886 = vmatpush2.msra.mxu0 0.0
      %1887 = vmatprep.subr.mxu0 0.0
      %1888 = vmatpush2.msra.mxu0 0.0
      %1889 = vmatprep.subr.mxu0 0.0
      %1890 = vmatpush2.msra.mxu0 0.0
      %1891 = vmatprep.subr.mxu0 0.0
      %1892 = vmatpush2.msra.mxu0 0.0
      %1893 = vmatprep.subr.mxu0 0.0
      %1894 = vmatpush2.msra.mxu0 0.0
      %1895 = vmatprep.mubr.f32.mxu0 0.0
      %1896 = vmatmul.mubr.f32.gmra.mxu0 %v1823
      %v1897 = vpop.f32.mrf.mxu0
      %v1898 = vadd.f32 0.0, %v1897
      %v1899 = vpop.f32.mrf.mxu0
      %1900 = vmatprep.mubr.f32.mxu0 0.0
      %1901 = vmatmul.mubr.f32.gmra.mxu0 %v1825
      %v1902 = vpop.f32.mrf.mxu0
      %v1903 = vadd.f32 0.0, %v1902
      %v1904 = vpop.f32.mrf.mxu0
      %1905 = vmatprep.mubr.f32.mxu0 0.0
      %1906 = vmatmul.mubr.f32.gmra.mxu0 %v1827
      %v1907 = vpop.f32.mrf.mxu0
      %v1908 = vadd.f32 0.0, %v1907
      %v1909 = vpop.f32.mrf.mxu0
      %1910 = vmatprep.mubr.f32.mxu0 0.0
      %1911 = vmatmul.mubr.f32.gmra.mxu0 %v1829
      %v1912 = vpop.f32.mrf.mxu0
      %v1913 = vadd.f32 0.0, %v1912
      %v1914 = vpop.f32.mrf.mxu0
      %1915 = vdwg.mxu0
      %v1916 = vadd.f32 %v1763, %v1898
      %v1917 = vadd.f32 %v1768, %v1903
      %v1918 = vadd.f32 %v1773, %v1908
      %v1919 = vadd.f32 %v1778, %v1913
      %1920 = vrot.lane.b32.xlu0 %v1371, 126
      %v1921 = vpop.permute.xlu0 %1920
      %1922 = vrot.lane.b32.xlu0 %v1372, 126
      %v1923 = vpop.permute.xlu0 %1922
      %1926 = vrot.lane.b32.xlu0 %v1371, 117
      %v1927 = vpop.permute.xlu0 %1926
      %1928 = vrot.lane.b32.xlu0 %v1372, 117
      %v1929 = vpop.permute.xlu0 %1928
      %1936 = vrot.lane.b32.xlu0 %v888, 80
      %v1937 = vpop.permute.xlu0 %1936
      %1938 = vrot.lane.b32.xlu0 %v892, 80
      %v1939 = vpop.permute.xlu0 %1938
      %1940 = vrot.lane.b32.xlu0 %v889, 80
      %v1941 = vpop.permute.xlu0 %1940
      %1942 = vrot.lane.b32.xlu0 %v893, 80
      %v1943 = vpop.permute.xlu0 %1942
      %1944 = vrot.lane.b32.xlu0 %v890, 80
      %v1945 = vpop.permute.xlu0 %1944
      %1946 = vrot.lane.b32.xlu0 %v894, 80
      %v1947 = vpop.permute.xlu0 %1946
      %1948 = vrot.lane.b32.xlu0 %v891, 80
      %v1949 = vpop.permute.xlu0 %1948
      %1950 = vrot.lane.b32.xlu0 %v895, 80
      %v1951 = vpop.permute.xlu0 %1950
      %vm1952 = vcmask 654336
      %v1953 = vsel %vm1952, %v1937, %v1939
      %v1954 = vsel %vm1952, %v1941, %v1943
      %v1955 = vsel %vm1952, %v1945, %v1947
      %v1956 = vsel %vm1952, %v1949, %v1951
      %v1957 = vsel %vm1028, %v1953, 0
      %v1959 = vsel %vm1028, %v1954, 0
      %v1961 = vsel %vm1028, %v1955, 0
      %v1963 = vsel %vm1028, %v1956, 0
      %1965 = vmatprep.subr.mxu0 0.0
      %1966 = vmatpush1.msra.mxu0 0.0
      %1967 = vmatprep.subr.mxu0 0.0
      %1968 = vmatpush1.msra.mxu0 0.0
      %1969 = vmatprep.subr.mxu0 0.0
      %1970 = vmatpush1.msra.mxu0 0.0
      %1971 = vmatprep.subr.mxu0 0.0
      %1972 = vmatpush1.msra.mxu0 0.0
      %1973 = vmatprep.subr.mxu0 0.0
      %1974 = vmatpush1.msra.mxu0 %v1929
      %1975 = vmatprep.subr.mxu0 0.0
      %1976 = vmatpush1.msra.mxu0 %v1927
      %1977 = vmatprep.subr.mxu0 0.0
      %1978 = vmatpush1.msra.mxu0 %v1390
      %1979 = vmatprep.subr.mxu0 0.0
      %1980 = vmatpush1.msra.mxu0 %v1388
      %1981 = vmatprep.subr.mxu0 0.0
      %1982 = vmatpush1.msra.mxu0 %v1384
      %1983 = vmatprep.subr.mxu0 0.0
      %1984 = vmatpush1.msra.mxu0 %v1382
      %1985 = vmatprep.subr.mxu0 0.0
      %1986 = vmatpush1.msra.mxu0 %v1923
      %1987 = vmatprep.subr.mxu0 0.0
      %1988 = vmatpush1.msra.mxu0 %v1921
      %1989 = vmatprep.subr.mxu0 0.0
      %1990 = vmatpush1.msra.mxu0 %v1378
      %1991 = vmatprep.subr.mxu0 0.0
      %1992 = vmatpush1.msra.mxu0 %v1376
      %1993 = vmatprep.subr.mxu0 0.0
      %1994 = vmatpush1.msra.mxu0 %v1372
      %1995 = vmatprep.subr.mxu0 0.0
      %1996 = vmatpush1.msra.mxu0 %v1371
      %1997 = vmatprep.subr.mxu0 0.0
      %1998 = vmatpush2.msra.mxu0 0.0
      %1999 = vmatprep.subr.mxu0 0.0
      %2000 = vmatpush2.msra.mxu0 0.0
      %2001 = vmatprep.subr.mxu0 0.0
      %2002 = vmatpush2.msra.mxu0 0.0
      %2003 = vmatprep.subr.mxu0 0.0
      %2004 = vmatpush2.msra.mxu0 0.0
      %2005 = vmatprep.subr.mxu0 0.0
      %2006 = vmatpush2.msra.mxu0 0.0
      %2007 = vmatprep.subr.mxu0 0.0
      %2008 = vmatpush2.msra.mxu0 0.0
      %2009 = vmatprep.subr.mxu0 0.0
      %2010 = vmatpush2.msra.mxu0 0.0
      %2011 = vmatprep.subr.mxu0 0.0
      %2012 = vmatpush2.msra.mxu0 0.0
      %2013 = vmatprep.subr.mxu0 0.0
      %2014 = vmatpush2.msra.mxu0 0.0
      %2015 = vmatprep.subr.mxu0 0.0
      %2016 = vmatpush2.msra.mxu0 0.0
      %2017 = vmatprep.subr.mxu0 0.0
      %2018 = vmatpush2.msra.mxu0 0.0
      %2019 = vmatprep.subr.mxu0 0.0
      %2020 = vmatpush2.msra.mxu0 0.0
      %2021 = vmatprep.subr.mxu0 0.0
      %2022 = vmatpush2.msra.mxu0 0.0
      %2023 = vmatprep.subr.mxu0 0.0
      %2024 = vmatpush2.msra.mxu0 0.0
      %2025 = vmatprep.subr.mxu0 0.0
      %2026 = vmatpush2.msra.mxu0 0.0
      %2027 = vmatprep.subr.mxu0 0.0
      %2028 = vmatpush2.msra.mxu0 0.0
      %2029 = vmatprep.mubr.f32.mxu0 0.0
      %2030 = vmatmul.mubr.f32.gmra.mxu0 %v1957
      %v2031 = vpop.f32.mrf.mxu0
      %v2032 = vadd.f32 0.0, %v2031
      %v2033 = vpop.f32.mrf.mxu0
      %2034 = vmatprep.mubr.f32.mxu0 0.0
      %2035 = vmatmul.mubr.f32.gmra.mxu0 %v1959
      %v2036 = vpop.f32.mrf.mxu0
      %v2037 = vadd.f32 0.0, %v2036
      %v2038 = vpop.f32.mrf.mxu0
      %2039 = vmatprep.mubr.f32.mxu0 0.0
      %2040 = vmatmul.mubr.f32.gmra.mxu0 %v1961
      %v2041 = vpop.f32.mrf.mxu0
      %v2042 = vadd.f32 0.0, %v2041
      %v2043 = vpop.f32.mrf.mxu0
      %2044 = vmatprep.mubr.f32.mxu0 0.0
      %2045 = vmatmul.mubr.f32.gmra.mxu0 %v1963
      %v2046 = vpop.f32.mrf.mxu0
      %v2047 = vadd.f32 0.0, %v2046
      %v2048 = vpop.f32.mrf.mxu0
      %2049 = vdwg.mxu0
      %v2050 = vadd.f32 %v1916, %v2032
      %v2051 = vadd.f32 %v1917, %v2037
      %v2052 = vadd.f32 %v1918, %v2042
      %v2053 = vadd.f32 %v1919, %v2047
      %v2054 = vmax.f32 %v1511, %v2050
      %v2055 = vmax.f32 %v1512, %v2051
      %v2056 = vmax.f32 %v1513, %v2052
      %v2057 = vmax.f32 %v1514, %v2053
      %2066 = vrot.lane.b32.xlu0 %v897, 32
      %v2067 = vpop.permute.xlu0 %2066
      %2068 = vrot.lane.b32.xlu0 %v901, 32
      %v2069 = vpop.permute.xlu0 %2068
      %2070 = vrot.lane.b32.xlu0 %v898, 32
      %v2071 = vpop.permute.xlu0 %2070
      %2072 = vrot.lane.b32.xlu0 %v902, 32
      %v2073 = vpop.permute.xlu0 %2072
      %2074 = vrot.lane.b32.xlu0 %v899, 32
      %v2075 = vpop.permute.xlu0 %2074
      %2076 = vrot.lane.b32.xlu0 %v903, 32
      %v2077 = vpop.permute.xlu0 %2076
      %2078 = vrot.lane.b32.xlu0 %v900, 32
      %v2079 = vpop.permute.xlu0 %2078
      %2080 = vrot.lane.b32.xlu0 %v904, 32
      %v2081 = vpop.permute.xlu0 %2080
      %v2082 = vsel %vm235, %v2067, %v2069
      %v2083 = vsel %vm235, %v2071, %v2073
      %v2084 = vsel %vm235, %v2075, %v2077
      %v2085 = vsel %vm235, %v2079, %v2081
      %2086 = vrot.lane.b32.xlu0 %v987, 119
      %v2087 = vpop.permute.xlu0 %2086
      %2088 = vrot.lane.b32.xlu0 %v989, 119
      %v2089 = vpop.permute.xlu0 %2088
      %2090 = vrot.lane.b32.xlu0 %v993, 119
      %v2091 = vpop.permute.xlu0 %2090
      %2092 = vrot.lane.b32.xlu0 %v995, 119
      %v2093 = vpop.permute.xlu0 %2092
      %2094 = vrot.lane.b32.xlu0 %v999, 119
      %v2095 = vpop.permute.xlu0 %2094
      %2096 = vrot.lane.b32.xlu0 %v1001, 119
      %v2097 = vpop.permute.xlu0 %2096
      %v2104 = vsel %vm1417, %v2082, 0
      %v2106 = vsel %vm1417, %v2083, 0
      %v2108 = vsel %vm1417, %v2084, 0
      %v2110 = vsel %vm1417, %v2085, 0
      %2112 = vmatprep.subr.mxu0 0.0
      %2113 = vmatpush1.msra.mxu0 0.0
      %2114 = vmatprep.subr.mxu0 0.0
      %2115 = vmatpush1.msra.mxu0 0.0
      %2116 = vmatprep.subr.mxu0 0.0
      %2117 = vmatpush1.msra.mxu0 0.0
      %2118 = vmatprep.subr.mxu0 0.0
      %2119 = vmatpush1.msra.mxu0 0.0
      %2120 = vmatprep.subr.mxu0 0.0
      %2121 = vmatpush1.msra.mxu0 0.0
      %2122 = vmatprep.subr.mxu0 0.0
      %2123 = vmatpush1.msra.mxu0 0.0
      %2124 = vmatprep.subr.mxu0 0.0
      %2125 = vmatpush1.msra.mxu0 0.0
      %2126 = vmatprep.subr.mxu0 0.0
      %2127 = vmatpush1.msra.mxu0 0.0
      %2128 = vmatprep.subr.mxu0 0.0
      %2129 = vmatpush1.msra.mxu0 %v2097
      %2130 = vmatprep.subr.mxu0 0.0
      %2131 = vmatpush1.msra.mxu0 %v2095
      %2132 = vmatprep.subr.mxu0 0.0
      %2133 = vmatpush1.msra.mxu0 %v2093
      %2134 = vmatprep.subr.mxu0 0.0
      %2135 = vmatpush1.msra.mxu0 %v2091
      %2136 = vmatprep.subr.mxu0 0.0
      %2137 = vmatpush1.msra.mxu0 %v2089
      %2138 = vmatprep.subr.mxu0 0.0
      %2139 = vmatpush1.msra.mxu0 %v2087
      %2140 = vmatprep.subr.mxu0 0.0
      %2141 = vmatpush1.msra.mxu0 %v995
      %2142 = vmatprep.subr.mxu0 0.0
      %2143 = vmatpush1.msra.mxu0 %v993
      %2144 = vmatprep.subr.mxu0 0.0
      %2145 = vmatpush2.msra.mxu0 0.0
      %2146 = vmatprep.subr.mxu0 0.0
      %2147 = vmatpush2.msra.mxu0 0.0
      %2148 = vmatprep.subr.mxu0 0.0
      %2149 = vmatpush2.msra.mxu0 0.0
      %2150 = vmatprep.subr.mxu0 0.0
      %2151 = vmatpush2.msra.mxu0 0.0
      %2152 = vmatprep.subr.mxu0 0.0
      %2153 = vmatpush2.msra.mxu0 0.0
      %2154 = vmatprep.subr.mxu0 0.0
      %2155 = vmatpush2.msra.mxu0 0.0
      %2156 = vmatprep.subr.mxu0 0.0
      %2157 = vmatpush2.msra.mxu0 0.0
      %2158 = vmatprep.subr.mxu0 0.0
      %2159 = vmatpush2.msra.mxu0 0.0
      %2160 = vmatprep.subr.mxu0 0.0
      %2161 = vmatpush2.msra.mxu0 0.0
      %2162 = vmatprep.subr.mxu0 0.0
      %2163 = vmatpush2.msra.mxu0 0.0
      %2164 = vmatprep.subr.mxu0 0.0
      %2165 = vmatpush2.msra.mxu0 0.0
      %2166 = vmatprep.subr.mxu0 0.0
      %2167 = vmatpush2.msra.mxu0 0.0
      %2168 = vmatprep.subr.mxu0 0.0
      %2169 = vmatpush2.msra.mxu0 0.0
      %2170 = vmatprep.subr.mxu0 0.0
      %2171 = vmatpush2.msra.mxu0 0.0
      %2172 = vmatprep.subr.mxu0 0.0
      %2173 = vmatpush2.msra.mxu0 0.0
      %2174 = vmatprep.subr.mxu0 0.0
      %2175 = vmatpush2.msra.mxu0 0.0
      %2176 = vmatprep.mubr.f32.mxu0 0.0
      %2177 = vmatmul.mubr.f32.gmra.mxu0 %v2104
      %v2178 = vpop.f32.mrf.mxu0
      %v2179 = vadd.f32 0.0, %v2178
      %v2180 = vpop.f32.mrf.mxu0
      %2181 = vmatprep.mubr.f32.mxu0 0.0
      %2182 = vmatmul.mubr.f32.gmra.mxu0 %v2106
      %v2183 = vpop.f32.mrf.mxu0
      %v2184 = vadd.f32 0.0, %v2183
      %v2185 = vpop.f32.mrf.mxu0
      %2186 = vmatprep.mubr.f32.mxu0 0.0
      %2187 = vmatmul.mubr.f32.gmra.mxu0 %v2108
      %v2188 = vpop.f32.mrf.mxu0
      %v2189 = vadd.f32 0.0, %v2188
      %v2190 = vpop.f32.mrf.mxu0
      %2191 = vmatprep.mubr.f32.mxu0 0.0
      %2192 = vmatmul.mubr.f32.gmra.mxu0 %v2110
      %v2193 = vpop.f32.mrf.mxu0
      %v2194 = vadd.f32 0.0, %v2193
      %v2195 = vpop.f32.mrf.mxu0
      %2196 = vdwg.mxu0
      %2197 = vrot.lane.b32.xlu0 %v935, 119
      %v2198 = vpop.permute.xlu0 %2197
      %2199 = vrot.lane.b32.xlu0 %v937, 119
      %v2200 = vpop.permute.xlu0 %2199
      %2201 = vrot.lane.b32.xlu0 %v941, 119
      %v2202 = vpop.permute.xlu0 %2201
      %2203 = vrot.lane.b32.xlu0 %v943, 119
      %v2204 = vpop.permute.xlu0 %2203
      %2205 = vrot.lane.b32.xlu0 %v947, 119
      %v2206 = vpop.permute.xlu0 %2205
      %2207 = vrot.lane.b32.xlu0 %v949, 119
      %v2208 = vpop.permute.xlu0 %2207
      %2209 = vrot.lane.b32.xlu0 %v953, 119
      %v2210 = vpop.permute.xlu0 %2209
      %2211 = vrot.lane.b32.xlu0 %v955, 119
      %v2212 = vpop.permute.xlu0 %2211
      %2213 = vrot.lane.b32.xlu0 %v959, 119
      %v2214 = vpop.permute.xlu0 %2213
      %2215 = vrot.lane.b32.xlu0 %v961, 119
      %v2216 = vpop.permute.xlu0 %2215
      %v2227 = vsel %vm1028, %v897, 0
      %v2229 = vsel %vm1028, %v898, 0
      %v2231 = vsel %vm1028, %v899, 0
      %v2233 = vsel %vm1028, %v900, 0
      %2235 = vmatprep.subr.mxu0 0.0
      %2236 = vmatpush1.msra.mxu0 0.0
      %2237 = vmatprep.subr.mxu0 0.0
      %2238 = vmatpush1.msra.mxu0 0.0
      %2239 = vmatprep.subr.mxu0 0.0
      %2240 = vmatpush1.msra.mxu0 0.0
      %2241 = vmatprep.subr.mxu0 0.0
      %2242 = vmatpush1.msra.mxu0 0.0
      %2243 = vmatprep.subr.mxu0 0.0
      %2244 = vmatpush1.msra.mxu0 %v2216
      %2245 = vmatprep.subr.mxu0 0.0
      %2246 = vmatpush1.msra.mxu0 %v2214
      %2247 = vmatprep.subr.mxu0 0.0
      %2248 = vmatpush1.msra.mxu0 %v2212
      %2249 = vmatprep.subr.mxu0 0.0
      %2250 = vmatpush1.msra.mxu0 %v2210
      %2251 = vmatprep.subr.mxu0 0.0
      %2252 = vmatpush1.msra.mxu0 %v2208
      %2253 = vmatprep.subr.mxu0 0.0
      %2254 = vmatpush1.msra.mxu0 %v2206
      %2255 = vmatprep.subr.mxu0 0.0
      %2256 = vmatpush1.msra.mxu0 %v2204
      %2257 = vmatprep.subr.mxu0 0.0
      %2258 = vmatpush1.msra.mxu0 %v2202
      %2259 = vmatprep.subr.mxu0 0.0
      %2260 = vmatpush1.msra.mxu0 %v2200
      %2261 = vmatprep.subr.mxu0 0.0
      %2262 = vmatpush1.msra.mxu0 %v2198
      %2263 = vmatprep.subr.mxu0 0.0
      %2264 = vmatpush1.msra.mxu0 %v949
      %2265 = vmatprep.subr.mxu0 0.0
      %2266 = vmatpush1.msra.mxu0 %v947
      %2267 = vmatprep.subr.mxu0 0.0
      %2268 = vmatpush2.msra.mxu0 0.0
      %2269 = vmatprep.subr.mxu0 0.0
      %2270 = vmatpush2.msra.mxu0 0.0
      %2271 = vmatprep.subr.mxu0 0.0
      %2272 = vmatpush2.msra.mxu0 0.0
      %2273 = vmatprep.subr.mxu0 0.0
      %2274 = vmatpush2.msra.mxu0 0.0
      %2275 = vmatprep.subr.mxu0 0.0
      %2276 = vmatpush2.msra.mxu0 0.0
      %2277 = vmatprep.subr.mxu0 0.0
      %2278 = vmatpush2.msra.mxu0 0.0
      %2279 = vmatprep.subr.mxu0 0.0
      %2280 = vmatpush2.msra.mxu0 0.0
      %2281 = vmatprep.subr.mxu0 0.0
      %2282 = vmatpush2.msra.mxu0 0.0
      %2283 = vmatprep.subr.mxu0 0.0
      %2284 = vmatpush2.msra.mxu0 0.0
      %2285 = vmatprep.subr.mxu0 0.0
      %2286 = vmatpush2.msra.mxu0 0.0
      %2287 = vmatprep.subr.mxu0 0.0
      %2288 = vmatpush2.msra.mxu0 0.0
      %2289 = vmatprep.subr.mxu0 0.0
      %2290 = vmatpush2.msra.mxu0 0.0
      %2291 = vmatprep.subr.mxu0 0.0
      %2292 = vmatpush2.msra.mxu0 0.0
      %2293 = vmatprep.subr.mxu0 0.0
      %2294 = vmatpush2.msra.mxu0 0.0
      %2295 = vmatprep.subr.mxu0 0.0
      %2296 = vmatpush2.msra.mxu0 0.0
      %2297 = vmatprep.subr.mxu0 0.0
      %2298 = vmatpush2.msra.mxu0 0.0
      %2299 = vmatprep.mubr.f32.mxu0 0.0
      %2300 = vmatmul.mubr.f32.gmra.mxu0 %v2227
      %v2301 = vpop.f32.mrf.mxu0
      %v2302 = vadd.f32 %v2179, %v2301
      %v2303 = vpop.f32.mrf.mxu0
      %2304 = vmatprep.mubr.f32.mxu0 0.0
      %2305 = vmatmul.mubr.f32.gmra.mxu0 %v2229
      %v2306 = vpop.f32.mrf.mxu0
      %v2307 = vadd.f32 %v2184, %v2306
      %v2308 = vpop.f32.mrf.mxu0
      %2309 = vmatprep.mubr.f32.mxu0 0.0
      %2310 = vmatmul.mubr.f32.gmra.mxu0 %v2231
      %v2311 = vpop.f32.mrf.mxu0
      %v2312 = vadd.f32 %v2189, %v2311
      %v2313 = vpop.f32.mrf.mxu0
      %2314 = vmatprep.mubr.f32.mxu0 0.0
      %2315 = vmatmul.mubr.f32.gmra.mxu0 %v2233
      %v2316 = vpop.f32.mrf.mxu0
      %v2317 = vadd.f32 %v2194, %v2316
      %v2318 = vpop.f32.mrf.mxu0
      %2319 = vdwg.mxu0
      %2320 = vrot.lane.b32.xlu0 %v1216, 110
      %v2321 = vpop.permute.xlu0 %2320
      %2322 = vrot.lane.b32.xlu0 %v1217, 110
      %v2323 = vpop.permute.xlu0 %2322
      %2326 = vrot.lane.b32.xlu0 %v1216, 109
      %v2327 = vpop.permute.xlu0 %2326
      %2328 = vrot.lane.b32.xlu0 %v1217, 109
      %v2329 = vpop.permute.xlu0 %2328
      %2332 = vrot.lane.b32.xlu0 %v1216, 108
      %v2333 = vpop.permute.xlu0 %2332
      %2334 = vrot.lane.b32.xlu0 %v1217, 108
      %v2335 = vpop.permute.xlu0 %2334
      %2342 = vrot.lane.b32.xlu0 %v901, 96
      %v2343 = vpop.permute.xlu0 %2342
      %2344 = vrot.lane.b32.xlu0 %v905, 96
      %v2345 = vpop.permute.xlu0 %2344
      %2346 = vrot.lane.b32.xlu0 %v902, 96
      %v2347 = vpop.permute.xlu0 %2346
      %2348 = vrot.lane.b32.xlu0 %v906, 96
      %v2349 = vpop.permute.xlu0 %2348
      %2350 = vrot.lane.b32.xlu0 %v903, 96
      %v2351 = vpop.permute.xlu0 %2350
      %2352 = vrot.lane.b32.xlu0 %v907, 96
      %v2353 = vpop.permute.xlu0 %2352
      %2354 = vrot.lane.b32.xlu0 %v904, 96
      %v2355 = vpop.permute.xlu0 %2354
      %2356 = vrot.lane.b32.xlu0 %v908, 96
      %v2357 = vpop.permute.xlu0 %2356
      %v2358 = vsel %vm1028, %v2343, %v2345
      %v2359 = vsel %vm1028, %v2347, %v2349
      %v2360 = vsel %vm1028, %v2351, %v2353
      %v2361 = vsel %vm1028, %v2355, %v2357
      %v2366 = vsel %vm1122, %v2345, 0
      %v2368 = vsel %vm1122, %v2349, 0
      %v2370 = vsel %vm1122, %v2353, 0
      %v2372 = vsel %vm1122, %v2357, 0
      %2374 = vmatprep.subr.mxu0 0.0
      %2375 = vmatpush1.msra.mxu0 %v2329
      %2376 = vmatprep.subr.mxu0 0.0
      %2377 = vmatpush1.msra.mxu0 %v2327
      %2378 = vmatprep.subr.mxu0 0.0
      %2379 = vmatpush1.msra.mxu0 %v2323
      %2380 = vmatprep.subr.mxu0 0.0
      %2381 = vmatpush1.msra.mxu0 %v2321
      %2382 = vmatprep.subr.mxu0 0.0
      %2383 = vmatpush1.msra.mxu0 %v1247
      %2384 = vmatprep.subr.mxu0 0.0
      %2385 = vmatpush1.msra.mxu0 %v1245
      %2386 = vmatprep.subr.mxu0 0.0
      %2387 = vmatpush1.msra.mxu0 %v1241
      %2388 = vmatprep.subr.mxu0 0.0
      %2389 = vmatpush1.msra.mxu0 %v1239
      %2390 = vmatprep.subr.mxu0 0.0
      %2391 = vmatpush1.msra.mxu0 %v1235
      %2392 = vmatprep.subr.mxu0 0.0
      %2393 = vmatpush1.msra.mxu0 %v1233
      %2394 = vmatprep.subr.mxu0 0.0
      %2395 = vmatpush1.msra.mxu0 %v1229
      %2396 = vmatprep.subr.mxu0 0.0
      %2397 = vmatpush1.msra.mxu0 %v1227
      %2398 = vmatprep.subr.mxu0 0.0
      %2399 = vmatpush1.msra.mxu0 %v1223
      %2400 = vmatprep.subr.mxu0 0.0
      %2401 = vmatpush1.msra.mxu0 %v1221
      %2402 = vmatprep.subr.mxu0 0.0
      %2403 = vmatpush1.msra.mxu0 %v1217
      %2404 = vmatprep.subr.mxu0 0.0
      %2405 = vmatpush1.msra.mxu0 %v1216
      %2406 = vmatprep.subr.mxu0 0.0
      %2407 = vmatpush2.msra.mxu0 0.0
      %2408 = vmatprep.subr.mxu0 0.0
      %2409 = vmatpush2.msra.mxu0 0.0
      %2410 = vmatprep.subr.mxu0 0.0
      %2411 = vmatpush2.msra.mxu0 0.0
      %2412 = vmatprep.subr.mxu0 0.0
      %2413 = vmatpush2.msra.mxu0 0.0
      %2414 = vmatprep.subr.mxu0 0.0
      %2415 = vmatpush2.msra.mxu0 0.0
      %2416 = vmatprep.subr.mxu0 0.0
      %2417 = vmatpush2.msra.mxu0 0.0
      %2418 = vmatprep.subr.mxu0 0.0
      %2419 = vmatpush2.msra.mxu0 0.0
      %2420 = vmatprep.subr.mxu0 0.0
      %2421 = vmatpush2.msra.mxu0 0.0
      %2422 = vmatprep.subr.mxu0 0.0
      %2423 = vmatpush2.msra.mxu0 0.0
      %2424 = vmatprep.subr.mxu0 0.0
      %2425 = vmatpush2.msra.mxu0 0.0
      %2426 = vmatprep.subr.mxu0 0.0
      %2427 = vmatpush2.msra.mxu0 0.0
      %2428 = vmatprep.subr.mxu0 0.0
      %2429 = vmatpush2.msra.mxu0 0.0
      %2430 = vmatprep.subr.mxu0 0.0
      %2431 = vmatpush2.msra.mxu0 0.0
      %2432 = vmatprep.subr.mxu0 0.0
      %2433 = vmatpush2.msra.mxu0 0.0
      %2434 = vmatprep.subr.mxu0 0.0
      %2435 = vmatpush2.msra.mxu0 %v2335
      %2436 = vmatprep.subr.mxu0 0.0
      %2437 = vmatpush2.msra.mxu0 %v2333
      %2438 = vmatprep.mubr.f32.mxu0 %v2366
      %2439 = vmatmul.mubr.f32.gmra.mxu0 %v2358
      %v2440 = vpop.f32.mrf.mxu0
      %v2441 = vadd.f32 0.0, %v2440
      %v2442 = vpop.f32.mrf.mxu0
      %2443 = vmatprep.mubr.f32.mxu0 %v2368
      %2444 = vmatmul.mubr.f32.gmra.mxu0 %v2359
      %v2445 = vpop.f32.mrf.mxu0
      %v2446 = vadd.f32 0.0, %v2445
      %v2447 = vpop.f32.mrf.mxu0
      %2448 = vmatprep.mubr.f32.mxu0 %v2370
      %2449 = vmatmul.mubr.f32.gmra.mxu0 %v2360
      %v2450 = vpop.f32.mrf.mxu0
      %v2451 = vadd.f32 0.0, %v2450
      %v2452 = vpop.f32.mrf.mxu0
      %2453 = vmatprep.mubr.f32.mxu0 %v2372
      %2454 = vmatmul.mubr.f32.gmra.mxu0 %v2361
      %v2455 = vpop.f32.mrf.mxu0
      %v2456 = vadd.f32 0.0, %v2455
      %v2457 = vpop.f32.mrf.mxu0
      %2458 = vdwg.mxu0
      %v2459 = vadd.f32 %v2302, %v2441
      %v2460 = vadd.f32 %v2307, %v2446
      %v2461 = vadd.f32 %v2312, %v2451
      %v2462 = vadd.f32 %v2317, %v2456
      %2463 = vrot.lane.b32.xlu0 %v1371, 110
      %v2464 = vpop.permute.xlu0 %2463
      %2465 = vrot.lane.b32.xlu0 %v1372, 110
      %v2466 = vpop.permute.xlu0 %2465
      %2469 = vrot.lane.b32.xlu0 %v1371, 109
      %v2470 = vpop.permute.xlu0 %2469
      %2471 = vrot.lane.b32.xlu0 %v1372, 109
      %v2472 = vpop.permute.xlu0 %2471
      %2479 = vrot.lane.b32.xlu0 %v905, 80
      %v2480 = vpop.permute.xlu0 %2479
      %2481 = vrot.lane.b32.xlu0 %v909, 80
      %v2482 = vpop.permute.xlu0 %2481
      %2483 = vrot.lane.b32.xlu0 %v906, 80
      %v2484 = vpop.permute.xlu0 %2483
      %2485 = vrot.lane.b32.xlu0 %v910, 80
      %v2486 = vpop.permute.xlu0 %2485
      %2487 = vrot.lane.b32.xlu0 %v907, 80
      %v2488 = vpop.permute.xlu0 %2487
      %2489 = vrot.lane.b32.xlu0 %v911, 80
      %v2490 = vpop.permute.xlu0 %2489
      %2491 = vrot.lane.b32.xlu0 %v908, 80
      %v2492 = vpop.permute.xlu0 %2491
      %2493 = vrot.lane.b32.xlu0 %v912, 80
      %v2494 = vpop.permute.xlu0 %2493
      %v2495 = vsel %vm1952, %v2480, %v2482
      %v2496 = vsel %vm1952, %v2484, %v2486
      %v2497 = vsel %vm1952, %v2488, %v2490
      %v2498 = vsel %vm1952, %v2492, %v2494
      %v2499 = vsel %vm1028, %v2495, 0
      %v2501 = vsel %vm1028, %v2496, 0
      %v2503 = vsel %vm1028, %v2497, 0
      %v2505 = vsel %vm1028, %v2498, 0
      %2507 = vmatprep.subr.mxu0 0.0
      %2508 = vmatpush1.msra.mxu0 0.0
      %2509 = vmatprep.subr.mxu0 0.0
      %2510 = vmatpush1.msra.mxu0 0.0
      %2511 = vmatprep.subr.mxu0 0.0
      %2512 = vmatpush1.msra.mxu0 0.0
      %2513 = vmatprep.subr.mxu0 0.0
      %2514 = vmatpush1.msra.mxu0 0.0
      %2515 = vmatprep.subr.mxu0 0.0
      %2516 = vmatpush1.msra.mxu0 %v2472
      %2517 = vmatprep.subr.mxu0 0.0
      %2518 = vmatpush1.msra.mxu0 %v2470
      %2519 = vmatprep.subr.mxu0 0.0
      %2520 = vmatpush1.msra.mxu0 %v2466
      %2521 = vmatprep.subr.mxu0 0.0
      %2522 = vmatpush1.msra.mxu0 %v2464
      %2523 = vmatprep.subr.mxu0 0.0
      %2524 = vmatpush1.msra.mxu0 %v1390
      %2525 = vmatprep.subr.mxu0 0.0
      %2526 = vmatpush1.msra.mxu0 %v1388
      %2527 = vmatprep.subr.mxu0 0.0
      %2528 = vmatpush1.msra.mxu0 %v1384
      %2529 = vmatprep.subr.mxu0 0.0
      %2530 = vmatpush1.msra.mxu0 %v1382
      %2531 = vmatprep.subr.mxu0 0.0
      %2532 = vmatpush1.msra.mxu0 %v1378
      %2533 = vmatprep.subr.mxu0 0.0
      %2534 = vmatpush1.msra.mxu0 %v1376
      %2535 = vmatprep.subr.mxu0 0.0
      %2536 = vmatpush1.msra.mxu0 %v1372
      %2537 = vmatprep.subr.mxu0 0.0
      %2538 = vmatpush1.msra.mxu0 %v1371
      %2539 = vmatprep.subr.mxu0 0.0
      %2540 = vmatpush2.msra.mxu0 0.0
      %2541 = vmatprep.subr.mxu0 0.0
      %2542 = vmatpush2.msra.mxu0 0.0
      %2543 = vmatprep.subr.mxu0 0.0
      %2544 = vmatpush2.msra.mxu0 0.0
      %2545 = vmatprep.subr.mxu0 0.0
      %2546 = vmatpush2.msra.mxu0 0.0
      %2547 = vmatprep.subr.mxu0 0.0
      %2548 = vmatpush2.msra.mxu0 0.0
      %2549 = vmatprep.subr.mxu0 0.0
      %2550 = vmatpush2.msra.mxu0 0.0
      %2551 = vmatprep.subr.mxu0 0.0
      %2552 = vmatpush2.msra.mxu0 0.0
      %2553 = vmatprep.subr.mxu0 0.0
      %2554 = vmatpush2.msra.mxu0 0.0
      %2555 = vmatprep.subr.mxu0 0.0
      %2556 = vmatpush2.msra.mxu0 0.0
      %2557 = vmatprep.subr.mxu0 0.0
      %2558 = vmatpush2.msra.mxu0 0.0
      %2559 = vmatprep.subr.mxu0 0.0
      %2560 = vmatpush2.msra.mxu0 0.0
      %2561 = vmatprep.subr.mxu0 0.0
      %2562 = vmatpush2.msra.mxu0 0.0
      %2563 = vmatprep.subr.mxu0 0.0
      %2564 = vmatpush2.msra.mxu0 0.0
      %2565 = vmatprep.subr.mxu0 0.0
      %2566 = vmatpush2.msra.mxu0 0.0
      %2567 = vmatprep.subr.mxu0 0.0
      %2568 = vmatpush2.msra.mxu0 0.0
      %2569 = vmatprep.subr.mxu0 0.0
      %2570 = vmatpush2.msra.mxu0 0.0
      %2571 = vmatprep.mubr.f32.mxu0 0.0
      %2572 = vmatmul.mubr.f32.gmra.mxu0 %v2499
      %v2573 = vpop.f32.mrf.mxu0
      %v2574 = vadd.f32 0.0, %v2573
      %v2575 = vpop.f32.mrf.mxu0
      %2576 = vmatprep.mubr.f32.mxu0 0.0
      %2577 = vmatmul.mubr.f32.gmra.mxu0 %v2501
      %v2578 = vpop.f32.mrf.mxu0
      %v2579 = vadd.f32 0.0, %v2578
      %v2580 = vpop.f32.mrf.mxu0
      %2581 = vmatprep.mubr.f32.mxu0 0.0
      %2582 = vmatmul.mubr.f32.gmra.mxu0 %v2503
      %v2583 = vpop.f32.mrf.mxu0
      %v2584 = vadd.f32 0.0, %v2583
      %v2585 = vpop.f32.mrf.mxu0
      %2586 = vmatprep.mubr.f32.mxu0 0.0
      %2587 = vmatmul.mubr.f32.gmra.mxu0 %v2505
      %v2588 = vpop.f32.mrf.mxu0
      %v2589 = vadd.f32 0.0, %v2588
      %v2590 = vpop.f32.mrf.mxu0
      %2591 = vdwg.mxu0
      %v2592 = vadd.f32 %v2459, %v2574
      %v2593 = vadd.f32 %v2460, %v2579
      %v2594 = vadd.f32 %v2461, %v2584
      %v2595 = vadd.f32 %v2462, %v2589
      %v2596 = vmax.f32 %v2054, %v2592
      %v2597 = vmax.f32 %v2055, %v2593
      %v2598 = vmax.f32 %v2056, %v2594
      %v2599 = vmax.f32 %v2057, %v2595
      %2608 = vrot.lane.b32.xlu0 %v914, 64
      %v2609 = vpop.permute.xlu0 %2608
      %2610 = vrot.lane.b32.xlu0 %v918, 64
      %v2611 = vpop.permute.xlu0 %2610
      %2612 = vrot.lane.b32.xlu0 %v915, 64
      %v2613 = vpop.permute.xlu0 %2612
      %2614 = vrot.lane.b32.xlu0 %v919, 64
      %v2615 = vpop.permute.xlu0 %2614
      %2616 = vrot.lane.b32.xlu0 %v916, 64
      %v2617 = vpop.permute.xlu0 %2616
      %2618 = vrot.lane.b32.xlu0 %v920, 64
      %v2619 = vpop.permute.xlu0 %2618
      %2620 = vrot.lane.b32.xlu0 %v917, 64
      %v2621 = vpop.permute.xlu0 %2620
      %2622 = vrot.lane.b32.xlu0 %v921, 64
      %v2623 = vpop.permute.xlu0 %2622
      %v2624 = vsel %vm1417, %v2609, %v2611
      %v2625 = vsel %vm1417, %v2613, %v2615
      %v2626 = vsel %vm1417, %v2617, %v2619
      %v2627 = vsel %vm1417, %v2621, %v2623
      %2628 = vrot.lane.b32.xlu0 %v1516, 119
      %v2629 = vpop.permute.xlu0 %2628
      %2630 = vrot.lane.b32.xlu0 %v1518, 119
      %v2631 = vpop.permute.xlu0 %2630
      %2632 = vrot.lane.b32.xlu0 %v1522, 119
      %v2633 = vpop.permute.xlu0 %2632
      %2634 = vrot.lane.b32.xlu0 %v1524, 119
      %v2635 = vpop.permute.xlu0 %2634
      %v2640 = vsel %vm1028, %v2624, 0
      %v2642 = vsel %vm1028, %v2625, 0
      %v2644 = vsel %vm1028, %v2626, 0
      %v2646 = vsel %vm1028, %v2627, 0
      %2648 = vmatprep.subr.mxu0 0.0
      %2649 = vmatpush1.msra.mxu0 0.0
      %2650 = vmatprep.subr.mxu0 0.0
      %2651 = vmatpush1.msra.mxu0 0.0
      %2652 = vmatprep.subr.mxu0 0.0
      %2653 = vmatpush1.msra.mxu0 0.0
      %2654 = vmatprep.subr.mxu0 0.0
      %2655 = vmatpush1.msra.mxu0 0.0
      %2656 = vmatprep.subr.mxu0 0.0
      %2657 = vmatpush1.msra.mxu0 %v2635
      %2658 = vmatprep.subr.mxu0 0.0
      %2659 = vmatpush1.msra.mxu0 %v2633
      %2660 = vmatprep.subr.mxu0 0.0
      %2661 = vmatpush1.msra.mxu0 %v2097
      %2662 = vmatprep.subr.mxu0 0.0
      %2663 = vmatpush1.msra.mxu0 %v2095
      %2664 = vmatprep.subr.mxu0 0.0
      %2665 = vmatpush1.msra.mxu0 %v2093
      %2666 = vmatprep.subr.mxu0 0.0
      %2667 = vmatpush1.msra.mxu0 %v2091
      %2668 = vmatprep.subr.mxu0 0.0
      %2669 = vmatpush1.msra.mxu0 %v2631
      %2670 = vmatprep.subr.mxu0 0.0
      %2671 = vmatpush1.msra.mxu0 %v2629
      %2672 = vmatprep.subr.mxu0 0.0
      %2673 = vmatpush1.msra.mxu0 %v2089
      %2674 = vmatprep.subr.mxu0 0.0
      %2675 = vmatpush1.msra.mxu0 %v2087
      %2676 = vmatprep.subr.mxu0 0.0
      %2677 = vmatpush1.msra.mxu0 %v995
      %2678 = vmatprep.subr.mxu0 0.0
      %2679 = vmatpush1.msra.mxu0 %v993
      %2680 = vmatprep.subr.mxu0 0.0
      %2681 = vmatpush2.msra.mxu0 0.0
      %2682 = vmatprep.subr.mxu0 0.0
      %2683 = vmatpush2.msra.mxu0 0.0
      %2684 = vmatprep.subr.mxu0 0.0
      %2685 = vmatpush2.msra.mxu0 0.0
      %2686 = vmatprep.subr.mxu0 0.0
      %2687 = vmatpush2.msra.mxu0 0.0
      %2688 = vmatprep.subr.mxu0 0.0
      %2689 = vmatpush2.msra.mxu0 0.0
      %2690 = vmatprep.subr.mxu0 0.0
      %2691 = vmatpush2.msra.mxu0 0.0
      %2692 = vmatprep.subr.mxu0 0.0
      %2693 = vmatpush2.msra.mxu0 0.0
      %2694 = vmatprep.subr.mxu0 0.0
      %2695 = vmatpush2.msra.mxu0 0.0
      %2696 = vmatprep.subr.mxu0 0.0
      %2697 = vmatpush2.msra.mxu0 0.0
      %2698 = vmatprep.subr.mxu0 0.0
      %2699 = vmatpush2.msra.mxu0 0.0
      %2700 = vmatprep.subr.mxu0 0.0
      %2701 = vmatpush2.msra.mxu0 0.0
      %2702 = vmatprep.subr.mxu0 0.0
      %2703 = vmatpush2.msra.mxu0 0.0
      %2704 = vmatprep.subr.mxu0 0.0
      %2705 = vmatpush2.msra.mxu0 0.0
      %2706 = vmatprep.subr.mxu0 0.0
      %2707 = vmatpush2.msra.mxu0 0.0
      %2708 = vmatprep.subr.mxu0 0.0
      %2709 = vmatpush2.msra.mxu0 0.0
      %2710 = vmatprep.subr.mxu0 0.0
      %2711 = vmatpush2.msra.mxu0 0.0
      %2712 = vmatprep.mubr.f32.mxu0 0.0
      %2713 = vmatmul.mubr.f32.gmra.mxu0 %v2640
      %v2714 = vpop.f32.mrf.mxu0
      %v2715 = vadd.f32 0.0, %v2714
      %v2716 = vpop.f32.mrf.mxu0
      %2717 = vmatprep.mubr.f32.mxu0 0.0
      %2718 = vmatmul.mubr.f32.gmra.mxu0 %v2642
      %v2719 = vpop.f32.mrf.mxu0
      %v2720 = vadd.f32 0.0, %v2719
      %v2721 = vpop.f32.mrf.mxu0
      %2722 = vmatprep.mubr.f32.mxu0 0.0
      %2723 = vmatmul.mubr.f32.gmra.mxu0 %v2644
      %v2724 = vpop.f32.mrf.mxu0
      %v2725 = vadd.f32 0.0, %v2724
      %v2726 = vpop.f32.mrf.mxu0
      %2727 = vmatprep.mubr.f32.mxu0 0.0
      %2728 = vmatmul.mubr.f32.gmra.mxu0 %v2646
      %v2729 = vpop.f32.mrf.mxu0
      %v2730 = vadd.f32 0.0, %v2729
      %v2731 = vpop.f32.mrf.mxu0
      %2732 = vdwg.mxu0
      %2733 = vrot.lane.b32.xlu0 %v935, 118
      %v2734 = vpop.permute.xlu0 %2733
      %2735 = vrot.lane.b32.xlu0 %v937, 118
      %v2736 = vpop.permute.xlu0 %2735
      %2737 = vrot.lane.b32.xlu0 %v947, 118
      %v2738 = vpop.permute.xlu0 %2737
      %2739 = vrot.lane.b32.xlu0 %v949, 118
      %v2740 = vpop.permute.xlu0 %2739
      %2741 = vrot.lane.b32.xlu0 %v953, 118
      %v2742 = vpop.permute.xlu0 %2741
      %2743 = vrot.lane.b32.xlu0 %v955, 118
      %v2744 = vpop.permute.xlu0 %2743
      %v2751 = vsel %vm1417, %v914, 0
      %v2753 = vsel %vm1417, %v915, 0
      %v2755 = vsel %vm1417, %v916, 0
      %v2757 = vsel %vm1417, %v917, 0
      %2759 = vmatprep.subr.mxu0 0.0
      %2760 = vmatpush1.msra.mxu0 0.0
      %2761 = vmatprep.subr.mxu0 0.0
      %2762 = vmatpush1.msra.mxu0 0.0
      %2763 = vmatprep.subr.mxu0 0.0
      %2764 = vmatpush1.msra.mxu0 0.0
      %2765 = vmatprep.subr.mxu0 0.0
      %2766 = vmatpush1.msra.mxu0 0.0
      %2767 = vmatprep.subr.mxu0 0.0
      %2768 = vmatpush1.msra.mxu0 0.0
      %2769 = vmatprep.subr.mxu0 0.0
      %2770 = vmatpush1.msra.mxu0 0.0
      %2771 = vmatprep.subr.mxu0 0.0
      %2772 = vmatpush1.msra.mxu0 0.0
      %2773 = vmatprep.subr.mxu0 0.0
      %2774 = vmatpush1.msra.mxu0 0.0
      %2775 = vmatprep.subr.mxu0 0.0
      %2776 = vmatpush1.msra.mxu0 %v2744
      %2777 = vmatprep.subr.mxu0 0.0
      %2778 = vmatpush1.msra.mxu0 %v2742
      %2779 = vmatprep.subr.mxu0 0.0
      %2780 = vmatpush1.msra.mxu0 %v2740
      %2781 = vmatprep.subr.mxu0 0.0
      %2782 = vmatpush1.msra.mxu0 %v2738
      %2783 = vmatprep.subr.mxu0 0.0
      %2784 = vmatpush1.msra.mxu0 %v2736
      %2785 = vmatprep.subr.mxu0 0.0
      %2786 = vmatpush1.msra.mxu0 %v2734
      %2787 = vmatprep.subr.mxu0 0.0
      %2788 = vmatpush1.msra.mxu0 %v955
      %2789 = vmatprep.subr.mxu0 0.0
      %2790 = vmatpush1.msra.mxu0 %v953
      %2791 = vmatprep.subr.mxu0 0.0
      %2792 = vmatpush2.msra.mxu0 0.0
      %2793 = vmatprep.subr.mxu0 0.0
      %2794 = vmatpush2.msra.mxu0 0.0
      %2795 = vmatprep.subr.mxu0 0.0
      %2796 = vmatpush2.msra.mxu0 0.0
      %2797 = vmatprep.subr.mxu0 0.0
      %2798 = vmatpush2.msra.mxu0 0.0
      %2799 = vmatprep.subr.mxu0 0.0
      %2800 = vmatpush2.msra.mxu0 0.0
      %2801 = vmatprep.subr.mxu0 0.0
      %2802 = vmatpush2.msra.mxu0 0.0
      %2803 = vmatprep.subr.mxu0 0.0
      %2804 = vmatpush2.msra.mxu0 0.0
      %2805 = vmatprep.subr.mxu0 0.0
      %2806 = vmatpush2.msra.mxu0 0.0
      %2807 = vmatprep.subr.mxu0 0.0
      %2808 = vmatpush2.msra.mxu0 0.0
      %2809 = vmatprep.subr.mxu0 0.0
      %2810 = vmatpush2.msra.mxu0 0.0
      %2811 = vmatprep.subr.mxu0 0.0
      %2812 = vmatpush2.msra.mxu0 0.0
      %2813 = vmatprep.subr.mxu0 0.0
      %2814 = vmatpush2.msra.mxu0 0.0
      %2815 = vmatprep.subr.mxu0 0.0
      %2816 = vmatpush2.msra.mxu0 0.0
      %2817 = vmatprep.subr.mxu0 0.0
      %2818 = vmatpush2.msra.mxu0 0.0
      %2819 = vmatprep.subr.mxu0 0.0
      %2820 = vmatpush2.msra.mxu0 0.0
      %2821 = vmatprep.subr.mxu0 0.0
      %2822 = vmatpush2.msra.mxu0 0.0
      %2823 = vmatprep.mubr.f32.mxu0 0.0
      %2824 = vmatmul.mubr.f32.gmra.mxu0 %v2751
      %v2825 = vpop.f32.mrf.mxu0
      %v2826 = vadd.f32 %v2715, %v2825
      %v2827 = vpop.f32.mrf.mxu0
      %2828 = vmatprep.mubr.f32.mxu0 0.0
      %2829 = vmatmul.mubr.f32.gmra.mxu0 %v2753
      %v2830 = vpop.f32.mrf.mxu0
      %v2831 = vadd.f32 %v2720, %v2830
      %v2832 = vpop.f32.mrf.mxu0
      %2833 = vmatprep.mubr.f32.mxu0 0.0
      %2834 = vmatmul.mubr.f32.gmra.mxu0 %v2755
      %v2835 = vpop.f32.mrf.mxu0
      %v2836 = vadd.f32 %v2725, %v2835
      %v2837 = vpop.f32.mrf.mxu0
      %2838 = vmatprep.mubr.f32.mxu0 0.0
      %2839 = vmatmul.mubr.f32.gmra.mxu0 %v2757
      %v2840 = vpop.f32.mrf.mxu0
      %v2841 = vadd.f32 %v2730, %v2840
      %v2842 = vpop.f32.mrf.mxu0
      %2843 = vdwg.mxu0
      %2844 = vrot.lane.b32.xlu0 %v918, 96
      %v2845 = vpop.permute.xlu0 %2844
      %2846 = vrot.lane.b32.xlu0 %v919, 96
      %v2847 = vpop.permute.xlu0 %2846
      %2848 = vrot.lane.b32.xlu0 %v920, 96
      %v2849 = vpop.permute.xlu0 %2848
      %2850 = vrot.lane.b32.xlu0 %v921, 96
      %v2851 = vpop.permute.xlu0 %2850
      %2852 = vrot.lane.b32.xlu0 %v2321, 127
      %v2853 = vpop.permute.xlu0 %2852
      %2854 = vrot.lane.b32.xlu0 %v2323, 127
      %v2855 = vpop.permute.xlu0 %2854
      %2856 = vrot.lane.b32.xlu0 %v2327, 127
      %v2857 = vpop.permute.xlu0 %2856
      %2858 = vrot.lane.b32.xlu0 %v2329, 127
      %v2859 = vpop.permute.xlu0 %2858
      %v2864 = vsel %vm1028, %v2845, 0
      %v2866 = vsel %vm1028, %v2847, 0
      %v2868 = vsel %vm1028, %v2849, 0
      %v2870 = vsel %vm1028, %v2851, 0
      %2872 = vmatprep.subr.mxu0 0.0
      %2873 = vmatpush1.msra.mxu0 0.0
      %2874 = vmatprep.subr.mxu0 0.0
      %2875 = vmatpush1.msra.mxu0 0.0
      %2876 = vmatprep.subr.mxu0 0.0
      %2877 = vmatpush1.msra.mxu0 0.0
      %2878 = vmatprep.subr.mxu0 0.0
      %2879 = vmatpush1.msra.mxu0 0.0
      %2880 = vmatprep.subr.mxu0 0.0
      %2881 = vmatpush1.msra.mxu0 %v2859
      %2882 = vmatprep.subr.mxu0 0.0
      %2883 = vmatpush1.msra.mxu0 %v2857
      %2884 = vmatprep.subr.mxu0 0.0
      %2885 = vmatpush1.msra.mxu0 %v2855
      %2886 = vmatprep.subr.mxu0 0.0
      %2887 = vmatpush1.msra.mxu0 %v2853
      %2888 = vmatprep.subr.mxu0 0.0
      %2889 = vmatpush1.msra.mxu0 %v1816
      %2890 = vmatprep.subr.mxu0 0.0
      %2891 = vmatpush1.msra.mxu0 %v1814
      %2892 = vmatprep.subr.mxu0 0.0
      %2893 = vmatpush1.msra.mxu0 %v1812
      %2894 = vmatprep.subr.mxu0 0.0
      %2895 = vmatpush1.msra.mxu0 %v1810
      %2896 = vmatprep.subr.mxu0 0.0
      %2897 = vmatpush1.msra.mxu0 %v1808
      %2898 = vmatprep.subr.mxu0 0.0
      %2899 = vmatpush1.msra.mxu0 %v1806
      %2900 = vmatprep.subr.mxu0 0.0
      %2901 = vmatpush1.msra.mxu0 %v1223
      %2902 = vmatprep.subr.mxu0 0.0
      %2903 = vmatpush1.msra.mxu0 %v1221
      %2904 = vmatprep.subr.mxu0 0.0
      %2905 = vmatpush2.msra.mxu0 0.0
      %2906 = vmatprep.subr.mxu0 0.0
      %2907 = vmatpush2.msra.mxu0 0.0
      %2908 = vmatprep.subr.mxu0 0.0
      %2909 = vmatpush2.msra.mxu0 0.0
      %2910 = vmatprep.subr.mxu0 0.0
      %2911 = vmatpush2.msra.mxu0 0.0
      %2912 = vmatprep.subr.mxu0 0.0
      %2913 = vmatpush2.msra.mxu0 0.0
      %2914 = vmatprep.subr.mxu0 0.0
      %2915 = vmatpush2.msra.mxu0 0.0
      %2916 = vmatprep.subr.mxu0 0.0
      %2917 = vmatpush2.msra.mxu0 0.0
      %2918 = vmatprep.subr.mxu0 0.0
      %2919 = vmatpush2.msra.mxu0 0.0
      %2920 = vmatprep.subr.mxu0 0.0
      %2921 = vmatpush2.msra.mxu0 0.0
      %2922 = vmatprep.subr.mxu0 0.0
      %2923 = vmatpush2.msra.mxu0 0.0
      %2924 = vmatprep.subr.mxu0 0.0
      %2925 = vmatpush2.msra.mxu0 0.0
      %2926 = vmatprep.subr.mxu0 0.0
      %2927 = vmatpush2.msra.mxu0 0.0
      %2928 = vmatprep.subr.mxu0 0.0
      %2929 = vmatpush2.msra.mxu0 0.0
      %2930 = vmatprep.subr.mxu0 0.0
      %2931 = vmatpush2.msra.mxu0 0.0
      %2932 = vmatprep.subr.mxu0 0.0
      %2933 = vmatpush2.msra.mxu0 0.0
      %2934 = vmatprep.subr.mxu0 0.0
      %2935 = vmatpush2.msra.mxu0 0.0
      %2936 = vmatprep.mubr.f32.mxu0 0.0
      %2937 = vmatmul.mubr.f32.gmra.mxu0 %v2864
      %v2938 = vpop.f32.mrf.mxu0
      %v2939 = vadd.f32 0.0, %v2938
      %v2940 = vpop.f32.mrf.mxu0
      %2941 = vmatprep.mubr.f32.mxu0 0.0
      %2942 = vmatmul.mubr.f32.gmra.mxu0 %v2866
      %v2943 = vpop.f32.mrf.mxu0
      %v2944 = vadd.f32 0.0, %v2943
      %v2945 = vpop.f32.mrf.mxu0
      %2946 = vmatprep.mubr.f32.mxu0 0.0
      %2947 = vmatmul.mubr.f32.gmra.mxu0 %v2868
      %v2948 = vpop.f32.mrf.mxu0
      %v2949 = vadd.f32 0.0, %v2948
      %v2950 = vpop.f32.mrf.mxu0
      %2951 = vmatprep.mubr.f32.mxu0 0.0
      %2952 = vmatmul.mubr.f32.gmra.mxu0 %v2870
      %v2953 = vpop.f32.mrf.mxu0
      %v2954 = vadd.f32 0.0, %v2953
      %v2955 = vpop.f32.mrf.mxu0
      %2956 = vdwg.mxu0
      %v2957 = vadd.f32 %v2826, %v2939
      %v2958 = vadd.f32 %v2831, %v2944
      %v2959 = vadd.f32 %v2836, %v2949
      %v2960 = vadd.f32 %v2841, %v2954
      %2961 = vrot.lane.b32.xlu0 %v1371, 108
      %v2962 = vpop.permute.xlu0 %2961
      %2963 = vrot.lane.b32.xlu0 %v1372, 108
      %v2964 = vpop.permute.xlu0 %2963
      %v2968 = vsel %vm1122, %v923, 0
      %v2971 = vsel %vm1122, %v925, 0
      %v2974 = vsel %vm1122, %v927, 0
      %v2977 = vsel %vm1122, %v929, 0
      %2979 = vmatprep.subr.mxu0 0.0
      %2980 = vmatpush1.msra.mxu0 %v2472
      %2981 = vmatprep.subr.mxu0 0.0
      %2982 = vmatpush1.msra.mxu0 %v2470
      %2983 = vmatprep.subr.mxu0 0.0
      %2984 = vmatpush1.msra.mxu0 %v2466
      %2985 = vmatprep.subr.mxu0 0.0
      %2986 = vmatpush1.msra.mxu0 %v2464
      %2987 = vmatprep.subr.mxu0 0.0
      %2988 = vmatpush1.msra.mxu0 %v1929
      %2989 = vmatprep.subr.mxu0 0.0
      %2990 = vmatpush1.msra.mxu0 %v1927
      %2991 = vmatprep.subr.mxu0 0.0
      %2992 = vmatpush1.msra.mxu0 %v1390
      %2993 = vmatprep.subr.mxu0 0.0
      %2994 = vmatpush1.msra.mxu0 %v1388
      %2995 = vmatprep.subr.mxu0 0.0
      %2996 = vmatpush1.msra.mxu0 %v1384
      %2997 = vmatprep.subr.mxu0 0.0
      %2998 = vmatpush1.msra.mxu0 %v1382
      %2999 = vmatprep.subr.mxu0 0.0
      %3000 = vmatpush1.msra.mxu0 %v1923
      %3001 = vmatprep.subr.mxu0 0.0
      %3002 = vmatpush1.msra.mxu0 %v1921
      %3003 = vmatprep.subr.mxu0 0.0
      %3004 = vmatpush1.msra.mxu0 %v1378
      %3005 = vmatprep.subr.mxu0 0.0
      %3006 = vmatpush1.msra.mxu0 %v1376
      %3007 = vmatprep.subr.mxu0 0.0
      %3008 = vmatpush1.msra.mxu0 %v1372
      %3009 = vmatprep.subr.mxu0 0.0
      %3010 = vmatpush1.msra.mxu0 %v1371
      %3011 = vmatprep.subr.mxu0 0.0
      %3012 = vmatpush2.msra.mxu0 0.0
      %3013 = vmatprep.subr.mxu0 0.0
      %3014 = vmatpush2.msra.mxu0 0.0
      %3015 = vmatprep.subr.mxu0 0.0
      %3016 = vmatpush2.msra.mxu0 0.0
      %3017 = vmatprep.subr.mxu0 0.0
      %3018 = vmatpush2.msra.mxu0 0.0
      %3019 = vmatprep.subr.mxu0 0.0
      %3020 = vmatpush2.msra.mxu0 0.0
      %3021 = vmatprep.subr.mxu0 0.0
      %3022 = vmatpush2.msra.mxu0 0.0
      %3023 = vmatprep.subr.mxu0 0.0
      %3024 = vmatpush2.msra.mxu0 0.0
      %3025 = vmatprep.subr.mxu0 0.0
      %3026 = vmatpush2.msra.mxu0 0.0
      %3027 = vmatprep.subr.mxu0 0.0
      %3028 = vmatpush2.msra.mxu0 0.0
      %3029 = vmatprep.subr.mxu0 0.0
      %3030 = vmatpush2.msra.mxu0 0.0
      %3031 = vmatprep.subr.mxu0 0.0
      %3032 = vmatpush2.msra.mxu0 0.0
      %3033 = vmatprep.subr.mxu0 0.0
      %3034 = vmatpush2.msra.mxu0 0.0
      %3035 = vmatprep.subr.mxu0 0.0
      %3036 = vmatpush2.msra.mxu0 0.0
      %3037 = vmatprep.subr.mxu0 0.0
      %3038 = vmatpush2.msra.mxu0 0.0
      %3039 = vmatprep.subr.mxu0 0.0
      %3040 = vmatpush2.msra.mxu0 %v2964
      %3041 = vmatprep.subr.mxu0 0.0
      %3042 = vmatpush2.msra.mxu0 %v2962
      %3043 = vmatprep.mubr.f32.mxu0 %v2968
      %3044 = vmatmul.mubr.f32.gmra.mxu0 %v922
      %v3045 = vpop.f32.mrf.mxu0
      %v3046 = vadd.f32 0.0, %v3045
      %v3047 = vpop.f32.mrf.mxu0
      %3048 = vmatprep.mubr.f32.mxu0 %v2971
      %3049 = vmatmul.mubr.f32.gmra.mxu0 %v924
      %v3050 = vpop.f32.mrf.mxu0
      %v3051 = vadd.f32 0.0, %v3050
      %v3052 = vpop.f32.mrf.mxu0
      %3053 = vmatprep.mubr.f32.mxu0 %v2974
      %3054 = vmatmul.mubr.f32.gmra.mxu0 %v926
      %v3055 = vpop.f32.mrf.mxu0
      %v3056 = vadd.f32 0.0, %v3055
      %v3057 = vpop.f32.mrf.mxu0
      %3058 = vmatprep.mubr.f32.mxu0 %v2977
      %3059 = vmatmul.mubr.f32.gmra.mxu0 %v928
      %v3060 = vpop.f32.mrf.mxu0
      %v3061 = vadd.f32 0.0, %v3060
      %v3062 = vpop.f32.mrf.mxu0
      %3063 = vdwg.mxu0
      %v3064 = vadd.f32 %v2957, %v3046
      %v3065 = vadd.f32 %v2958, %v3051
      %v3066 = vadd.f32 %v2959, %v3056
      %v3067 = vadd.f32 %v2960, %v3061
      %v3068 = vmax.f32 %v2596, %v3064
      %v3069 = vmax.f32 %v2597, %v3065
      %v3070 = vmax.f32 %v2598, %v3066
      %v3071 = vmax.f32 %v2599, %v3067
      %v3072 = vld [vmem:[%s4] sm:$0xff]
      %v3073 = vld [vmem:[%s4 + $0x8] sm:$0xff]
      %v3074 = vld [vmem:[%s4 + $0x10] sm:$0xff]
      %v3075 = vld [vmem:[%s4 + $0x18] sm:$0xff]
      %3077 = vset.pattern.permute.xlu0 0
      %3078 = vperm.xlu0 %3077, %v3072
      %v3079 = vpop.permute.xlu0 %3078
      %3082 = vset.pattern.permute.xlu0 0
      %3083 = vperm.xlu0 %3082, %v3073
      %v3084 = vpop.permute.xlu0 %3083
      %3087 = vset.pattern.permute.xlu0 0
      %3088 = vperm.xlu0 %3087, %v3074
      %v3089 = vpop.permute.xlu0 %3088
      %3092 = vset.pattern.permute.xlu0 0
      %3093 = vperm.xlu0 %3092, %v3075
      %v3094 = vpop.permute.xlu0 %3093
      %v3096 = vadd.f32 %v3068, %v3079
      %v3097 = vadd.f32 %v3069, %v3084
      %v3098 = vadd.f32 %v3070, %v3089
      %v3099 = vadd.f32 %v3071, %v3094
      %v3100 = vmax.f32 %v3096, 0.0
      %v3101 = vmax.f32 %v3097, 0.0
      %v3102 = vmax.f32 %v3098, 0.0
      %v3103 = vmax.f32 %v3099, 0.0
      %vm3104 = vcmask 515072
      %3105 = vst.msk [vmem:[%s224] sm:$0xff] %vm3104, %v3100
      %3106 = vst.msk [vmem:[%s224 + $0x8] sm:$0xff] %vm3104, %v3101
      %3107 = vst.msk [vmem:[%s224 + $0x10] sm:$0xff] %vm3104, %v3102
      %3108 = vst.msk [vmem:[%s224 + $0x18] sm:$0xff] %vm3104, %v3103
      %p3109 = scmp.lt.s32.totalorder %s16, 1
      %s3110 = scalar_select %p3109, %s16, 1
      %s3111 = smul.addr %s3110, 4
      %s3112 = smul.addr %s3111, 8
      %s3113 = scalar_lea.vmem %s5, %s3112
      // Predicated region
      $region41: #{forward.2} parent=39 // pred_check
        %p3114 = pneg %p144
      $region42: #{forward.2} parent=39 // pred_check_branch
        %3116 = sbr.rel (%p3114) target = $region44
      $region43: #{forward.2} parent=39 // pred_region
        _
      $region44: #{forward.2} parent=39 // pred_fallthru
        _
    $region40: #{forward.2} parent=5 // pred_fallthru
      _
    %p3117 = scmp.le.s32.totalorder 2, %s11
    // Predicated region
    $region45: #{forward.2} parent=5 // pred_check
      %p3118 = pneg %p3117
    $region46: #{forward.2} parent=5 // pred_check_branch
      %3120 = sbr.rel (%p3118) target = $region48
    $region47: #{forward.2} parent=5 // pred_region
      %s3121 = ssub.s32 %s11, 2
      // Predicated region
      $region49: #{forward.2} parent=47 // pred_check
        %p3122 = pneg %p150
      $region50: #{forward.2} parent=47 // pred_check_branch
        %3124 = sbr.rel (%p3122) target = $region52
      $region51: #{forward.2} parent=47 // pred_region
        %p3125 = scmp.lt.s32.totalorder %s17, 1
        %s3126 = scalar_select %p3125, %s17, 1
        %s3127 = smul.addr %s3126, 4
        %s3128 = smul.addr %s3127, 8
        %s3129 = scalar_lea.vmem %s5, %s3128
      $region52: #{forward.2} parent=47 // pred_fallthru
        _
    $region48: #{forward.2} parent=5 // pred_fallthru
      _
  $region6: #{forward.2} parent=0 // loop_footer
    %s15 = sadd.s32 1, %s11
  $region7: #{forward.2} parent=0 // loop_footer_branch
    %10 = sbr.rel target = $region3
  $region8: #{forward.2} parent=0 // loop_exit
    _

</llo_original>
